<compile_context>
chip_gen: v6e
topology: v6e:2x2x1
jax: 0.10.0
libtpu: 0.0.40
codegen_flags: <defaults>
</compile_context>

<pallas_src>
import functools

import jax
import jax.numpy as jnp
from jax.experimental import pallas as pl
from jax.experimental.pallas import tpu as pltpu


def _lstm_kernel(x_ref, w0_ref, b0_ref, w1_ref, b1_ref, wd_ref, bd_ref, o_ref,
                 *, seq_len, pred_len):
    """Entire autoregressive LSTM rollout in one kernel invocation.

    x_ref:  (seq_len, B, F) f32          time-major input
    w0_ref: (F+H, 4H) bf16  b0_ref: (1, 4H) f32   layer 0 (encoder folded, ih|hh stacked)
    w1_ref: (2H, 4H)  bf16  b1_ref: (1, 4H) f32   layer 1 (ih|hh stacked)
    wd_ref: (H, F)    bf16  bd_ref: (1, F)  f32   decoder Linear
    o_ref:  (pred_len, B, F) f32         collected outputs (time-major)

    Gate ordering along the 4H axis is PyTorch's [i, f, g, o].
    """
    B = x_ref.shape[1]
    F = x_ref.shape[2]
    H = w1_ref.shape[0] // 2

    w0 = w0_ref[...]
    w1 = w1_ref[...]
    wd = wd_ref[...]
    # Hoist bias broadcasts out of the (unrolled) loop.
    b0 = jnp.broadcast_to(b0_ref[...], (B, 4 * H))
    b1 = jnp.broadcast_to(b1_ref[...], (B, 4 * H))
    bd = jnp.broadcast_to(bd_ref[...], (B, F))

    def sigmoid(v):
        return 1.0 / (1.0 + jnp.exp(-v))

    def step(inp, h0, c0, h1, c1):
        # ---- layer 0 (encoder folded into the input-hidden weights) ----
        g0 = jnp.dot(jnp.concatenate([inp, h0], axis=1).astype(jnp.bfloat16), w0,
                     preferred_element_type=jnp.float32) + b0            # (B, 4H) f32
        i0 = sigmoid(g0[:, 0 * H:1 * H])
        f0 = sigmoid(g0[:, 1 * H:2 * H])
        gg0 = jnp.tanh(g0[:, 2 * H:3 * H])
        oo0 = sigmoid(g0[:, 3 * H:4 * H])
        c0n = f0 * c0 + i0 * gg0
        h0n = oo0 * jnp.tanh(c0n)

        # ---- layer 1 ----
        g1 = jnp.dot(jnp.concatenate([h0n, h1], axis=1).astype(jnp.bfloat16), w1,
                     preferred_element_type=jnp.float32) + b1            # (B, 4H) f32
        i1 = sigmoid(g1[:, 0 * H:1 * H])
        f1 = sigmoid(g1[:, 1 * H:2 * H])
        gg1 = jnp.tanh(g1[:, 2 * H:3 * H])
        oo1 = sigmoid(g1[:, 3 * H:4 * H])
        c1n = f1 * c1 + i1 * gg1
        h1n = oo1 * jnp.tanh(c1n)

        # ---- decoder ----
        out = jnp.dot(h1n.astype(jnp.bfloat16), wd,
                      preferred_element_type=jnp.float32) + bd           # (B, F) f32
        return out, h0n, c0n, h1n, c1n

    h0 = jnp.zeros((B, H), jnp.float32)
    c0 = jnp.zeros((B, H), jnp.float32)
    h1 = jnp.zeros((B, H), jnp.float32)
    c1 = jnp.zeros((B, H), jnp.float32)

    # Phase 1: teacher forcing over the observed sequence (static indexing, fully
    # unrolled -> LLO can overlap MXU pushes / EUP transcendentals across steps).
    out = None
    for t in range(seq_len):
        out, h0, c0, h1, c1 = step(x_ref[t], h0, c0, h1, c1)

    # Phase 2: free-running rollout feeding back the decoder output.
    preds = [out]                       # prediction produced at idx == seq_len - 1
    for _ in range(pred_len - 1):
        out, h0, c0, h1, c1 = step(out, h0, c0, h1, c1)
        preds.append(out)

    # Single contiguous store of all predictions.
    o_ref[...] = jnp.stack(preds, axis=0)


def init_params(key, features, input_size, hidden_size):
    """Synthetic parameters with PyTorch-like init, pre-transposed to (in, out)."""
    ks = jax.random.split(key, 14)

    def u(k, shape, fan_in):
        bound = 1.0 / jnp.sqrt(jnp.float32(fan_in))
        return jax.random.uniform(k, shape, jnp.float32, -bound, bound)

    H = hidden_size
    # encoder: Linear(features, input_size)
    we = u(ks[0], (features, input_size), features)
    be = u(ks[1], (input_size,), features)
    # LSTM layer 0: gates ordered [i, f, g, o] along 4H
    wih0 = u(ks[2], (input_size, 4 * H), H)
    whh0 = u(ks[3], (H, 4 * H), H)
    bih0 = u(ks[4], (4 * H,), H)
    bhh0 = u(ks[5], (4 * H,), H)
    # LSTM layer 1
    wih1 = u(ks[6], (H, 4 * H), H)
    whh1 = u(ks[7], (H, 4 * H), H)
    bih1 = u(ks[8], (4 * H,), H)
    bhh1 = u(ks[9], (4 * H,), H)
    # decoder: Linear(hidden_size, features)
    wd = u(ks[10], (H, features), H)
    bd = u(ks[11], (features,), H)
    return (we, be, wih0, whh0, bih0, bhh0, wih1, whh1, bih1, bhh1, wd, bd)


def lstm_forward(x, params, pred_len):
    """x: (B, seq_len, features) f32 -> (B, pred_len, features) f32."""
    B, S, F = x.shape
    (we, be, wih0, whh0, bih0, bhh0, wih1, whh1, bih1, bhh1, wd, bd) = params
    H = whh0.shape[0]

    # Fold encoder into layer 0 and stack ih|hh weights (exact f32 algebra).
    w0 = jnp.concatenate([we @ wih0, whh0], axis=0)            # (F+H, 4H)
    b0 = (be @ wih0 + bih0 + bhh0)[None, :]                    # (1, 4H)
    w1 = jnp.concatenate([wih1, whh1], axis=0)                 # (2H, 4H)
    b1 = (bih1 + bhh1)[None, :]                                # (1, 4H)
    bd2 = bd[None, :]                                          # (1, F)

    # bf16 weights for the MXU; biases / activations / state stay f32.
    w0 = w0.astype(jnp.bfloat16)
    w1 = w1.astype(jnp.bfloat16)
    wd_b = wd.astype(jnp.bfloat16)

    x_tm = jnp.transpose(x, (1, 0, 2)).astype(jnp.float32)     # (S, B, F) time-major

    kernel = functools.partial(_lstm_kernel, seq_len=S, pred_len=pred_len)
    vmem = pl.BlockSpec(memory_space=pltpu.MemorySpace.VMEM)

    out_tm = pl.pallas_call(
        kernel,
        out_shape=jax.ShapeDtypeStruct((pred_len, B, F), jnp.float32),
        in_specs=[vmem] * 7,
        out_specs=vmem,
    )(x_tm, w0, b0, w1, b1, wd_b, bd2)

    # (pred_len, B, F) -> (B, pred_len, F), same as torch.cat(...).permute(1, 0, 2)
    return jnp.transpose(out_tm, (1, 0, 2))


if __name__ == "__main__":
    # Small shapes consistent with the module's forward.
    features = 8
    input_size = 16
    hidden_size = 32
    batch = 2
    seq_len = 8
    pred_len = 4

    key = jax.random.PRNGKey(0)
    k_x, k_p = jax.random.split(key)
    x = jax.random.normal(k_x, (batch, seq_len, features), jnp.float32)
    params = init_params(k_p, features, input_size, hidden_size)

    out = lstm_forward(x, params, pred_len)
    out = jax.block_until_ready(out)
    assert out.shape == (batch, pred_len, features)
    print("KERNEL_OK")
</pallas_src>

<mosaic_0001>
module attributes {stable_mosaic.version = 11 : i64} {
  func.func @_lstm_kernel(%arg0: memref<8x2x8xf32, #tpu.memory_space<vmem>>, %arg1: memref<40x128xbf16, #tpu.memory_space<vmem>>, %arg2: memref<1x128xf32, #tpu.memory_space<vmem>>, %arg3: memref<64x128xbf16, #tpu.memory_space<vmem>>, %arg4: memref<1x128xf32, #tpu.memory_space<vmem>>, %arg5: memref<32x8xbf16, #tpu.memory_space<vmem>>, %arg6: memref<1x8xf32, #tpu.memory_space<vmem>>, %arg7: memref<4x2x8xf32, #tpu.memory_space<vmem>>) attributes {dimension_semantics = [], scalar_prefetch = 0 : i64, scratch_operands = 0 : i64, tpu.core_type = #tpu.core_type<tc>} {
    %c0 = arith.constant 0 : index
    %c0_0 = arith.constant 0 : index
    %0 = vector.load %arg1[%c0, %c0_0] : memref<40x128xbf16, #tpu.memory_space<vmem>>, vector<40x128xbf16>
    %c0_1 = arith.constant 0 : index
    %c0_2 = arith.constant 0 : index
    %1 = vector.load %arg3[%c0_1, %c0_2] : memref<64x128xbf16, #tpu.memory_space<vmem>>, vector<64x128xbf16>
    %c0_3 = arith.constant 0 : index
    %c0_4 = arith.constant 0 : index
    %2 = vector.load %arg5[%c0_3, %c0_4] : memref<32x8xbf16, #tpu.memory_space<vmem>>, vector<32x8xbf16>
    %c0_5 = arith.constant 0 : index
    %c0_6 = arith.constant 0 : index
    %3 = vector.load %arg2[%c0_5, %c0_6] : memref<1x128xf32, #tpu.memory_space<vmem>>, vector<1x128xf32>
    %4 = vector.shape_cast %3 : vector<1x128xf32> to vector<1x128xf32>
    %5 = vector.broadcast %4 : vector<1x128xf32> to vector<2x128xf32>
    %c0_7 = arith.constant 0 : index
    %c0_8 = arith.constant 0 : index
    %6 = vector.load %arg4[%c0_7, %c0_8] : memref<1x128xf32, #tpu.memory_space<vmem>>, vector<1x128xf32>
    %7 = vector.shape_cast %6 : vector<1x128xf32> to vector<1x128xf32>
    %8 = vector.broadcast %7 : vector<1x128xf32> to vector<2x128xf32>
    %c0_9 = arith.constant 0 : index
    %c0_10 = arith.constant 0 : index
    %9 = vector.load %arg6[%c0_9, %c0_10] : memref<1x8xf32, #tpu.memory_space<vmem>>, vector<1x8xf32>
    %10 = vector.shape_cast %9 : vector<1x8xf32> to vector<1x8xf32>
    %11 = vector.broadcast %10 : vector<1x8xf32> to vector<2x8xf32>
    %cst = arith.constant 0.000000e+00 : f32
    %12 = vector.broadcast %cst : f32 to vector<2x32xf32>
    %cst_11 = arith.constant 0.000000e+00 : f32
    %13 = vector.broadcast %cst_11 : f32 to vector<2x32xf32>
    %cst_12 = arith.constant 0.000000e+00 : f32
    %14 = vector.broadcast %cst_12 : f32 to vector<2x32xf32>
    %cst_13 = arith.constant 0.000000e+00 : f32
    %15 = vector.broadcast %cst_13 : f32 to vector<2x32xf32>
    %c0_14 = arith.constant 0 : index
    %c0_15 = arith.constant 0 : index
    %c0_16 = arith.constant 0 : index
    %16 = vector.load %arg0[%c0_14, %c0_15, %c0_16] : memref<8x2x8xf32, #tpu.memory_space<vmem>>, vector<1x2x8xf32>
    %17 = vector.shape_cast %16 : vector<1x2x8xf32> to vector<2x8xf32>
    %18 = tpu.concatenate %17, %12 in 1 : vector<2x8xf32>, vector<2x32xf32> -> vector<2x40xf32>
    %19 = arith.truncf %18 : vector<2x40xf32> to vector<2x40xbf16>
    %cst_17 = arith.constant dense<0.000000e+00> : vector<2x128xf32>
    %20 = tpu.matmul %19, %0, %cst_17 {dimension_numbers = #tpu.dot_dimension_numbers<[1], [0], [0], [1], [0, 0, 1, 1], [], []>} : vector<2x40xbf16>, vector<40x128xbf16>, vector<2x128xf32> -> vector<2x128xf32>
    %21 = arith.addf %20, %5 : vector<2x128xf32>
    %22 = vector.extract_strided_slice %21 {offsets = [0, 0], sizes = [2, 32], strides = [1, 1]} : vector<2x128xf32> to vector<2x32xf32>
    %cst_18 = arith.constant 0.000000e+00 : f32
    %23 = vector.broadcast %cst_18 : f32 to vector<2x32xf32>
    %24 = arith.subf %23, %22 : vector<2x32xf32>
    %25 = math.exp %24 : vector<2x32xf32>
    %cst_19 = arith.constant 1.000000e+00 : f32
    %26 = vector.broadcast %cst_19 : f32 to vector<2x32xf32>
    %27 = arith.addf %26, %25 : vector<2x32xf32>
    %cst_20 = arith.constant 1.000000e+00 : f32
    %28 = vector.broadcast %cst_20 : f32 to vector<2x32xf32>
    %29 = arith.divf %28, %27 : vector<2x32xf32>
    %30 = vector.extract_strided_slice %21 {offsets = [0, 32], sizes = [2, 32], strides = [1, 1]} : vector<2x128xf32> to vector<2x32xf32>
    %cst_21 = arith.constant 0.000000e+00 : f32
    %31 = vector.broadcast %cst_21 : f32 to vector<2x32xf32>
    %32 = arith.subf %31, %30 : vector<2x32xf32>
    %33 = math.exp %32 : vector<2x32xf32>
    %cst_22 = arith.constant 1.000000e+00 : f32
    %34 = vector.broadcast %cst_22 : f32 to vector<2x32xf32>
    %35 = arith.addf %34, %33 : vector<2x32xf32>
    %cst_23 = arith.constant 1.000000e+00 : f32
    %36 = vector.broadcast %cst_23 : f32 to vector<2x32xf32>
    %37 = arith.divf %36, %35 : vector<2x32xf32>
    %38 = vector.extract_strided_slice %21 {offsets = [0, 64], sizes = [2, 32], strides = [1, 1]} : vector<2x128xf32> to vector<2x32xf32>
    %39 = math.tanh %38 : vector<2x32xf32>
    %40 = vector.extract_strided_slice %21 {offsets = [0, 96], sizes = [2, 32], strides = [1, 1]} : vector<2x128xf32> to vector<2x32xf32>
    %cst_24 = arith.constant 0.000000e+00 : f32
    %41 = vector.broadcast %cst_24 : f32 to vector<2x32xf32>
    %42 = arith.subf %41, %40 : vector<2x32xf32>
    %43 = math.exp %42 : vector<2x32xf32>
    %cst_25 = arith.constant 1.000000e+00 : f32
    %44 = vector.broadcast %cst_25 : f32 to vector<2x32xf32>
    %45 = arith.addf %44, %43 : vector<2x32xf32>
    %cst_26 = arith.constant 1.000000e+00 : f32
    %46 = vector.broadcast %cst_26 : f32 to vector<2x32xf32>
    %47 = arith.divf %46, %45 : vector<2x32xf32>
    %48 = arith.mulf %37, %13 : vector<2x32xf32>
    %49 = arith.mulf %29, %39 : vector<2x32xf32>
    %50 = arith.addf %48, %49 : vector<2x32xf32>
    %51 = math.tanh %50 : vector<2x32xf32>
    %52 = arith.mulf %47, %51 : vector<2x32xf32>
    %53 = tpu.concatenate %52, %14 in 1 : vector<2x32xf32>, vector<2x32xf32> -> vector<2x64xf32>
    %54 = arith.truncf %53 : vector<2x64xf32> to vector<2x64xbf16>
    %cst_27 = arith.constant dense<0.000000e+00> : vector<2x128xf32>
    %55 = tpu.matmul %54, %1, %cst_27 {dimension_numbers = #tpu.dot_dimension_numbers<[1], [0], [0], [1], [0, 0, 1, 1], [], []>} : vector<2x64xbf16>, vector<64x128xbf16>, vector<2x128xf32> -> vector<2x128xf32>
    %56 = arith.addf %55, %8 : vector<2x128xf32>
    %57 = vector.extract_strided_slice %56 {offsets = [0, 0], sizes = [2, 32], strides = [1, 1]} : vector<2x128xf32> to vector<2x32xf32>
    %cst_28 = arith.constant 0.000000e+00 : f32
    %58 = vector.broadcast %cst_28 : f32 to vector<2x32xf32>
    %59 = arith.subf %58, %57 : vector<2x32xf32>
    %60 = math.exp %59 : vector<2x32xf32>
    %cst_29 = arith.constant 1.000000e+00 : f32
    %61 = vector.broadcast %cst_29 : f32 to vector<2x32xf32>
    %62 = arith.addf %61, %60 : vector<2x32xf32>
    %cst_30 = arith.constant 1.000000e+00 : f32
    %63 = vector.broadcast %cst_30 : f32 to vector<2x32xf32>
    %64 = arith.divf %63, %62 : vector<2x32xf32>
    %65 = vector.extract_strided_slice %56 {offsets = [0, 32], sizes = [2, 32], strides = [1, 1]} : vector<2x128xf32> to vector<2x32xf32>
    %cst_31 = arith.constant 0.000000e+00 : f32
    %66 = vector.broadcast %cst_31 : f32 to vector<2x32xf32>
    %67 = arith.subf %66, %65 : vector<2x32xf32>
    %68 = math.exp %67 : vector<2x32xf32>
    %cst_32 = arith.constant 1.000000e+00 : f32
    %69 = vector.broadcast %cst_32 : f32 to vector<2x32xf32>
    %70 = arith.addf %69, %68 : vector<2x32xf32>
    %cst_33 = arith.constant 1.000000e+00 : f32
    %71 = vector.broadcast %cst_33 : f32 to vector<2x32xf32>
    %72 = arith.divf %71, %70 : vector<2x32xf32>
    %73 = vector.extract_strided_slice %56 {offsets = [0, 64], sizes = [2, 32], strides = [1, 1]} : vector<2x128xf32> to vector<2x32xf32>
    %74 = math.tanh %73 : vector<2x32xf32>
    %75 = vector.extract_strided_slice %56 {offsets = [0, 96], sizes = [2, 32], strides = [1, 1]} : vector<2x128xf32> to vector<2x32xf32>
    %cst_34 = arith.constant 0.000000e+00 : f32
    %76 = vector.broadcast %cst_34 : f32 to vector<2x32xf32>
    %77 = arith.subf %76, %75 : vector<2x32xf32>
    %78 = math.exp %77 : vector<2x32xf32>
    %cst_35 = arith.constant 1.000000e+00 : f32
    %79 = vector.broadcast %cst_35 : f32 to vector<2x32xf32>
    %80 = arith.addf %79, %78 : vector<2x32xf32>
    %cst_36 = arith.constant 1.000000e+00 : f32
    %81 = vector.broadcast %cst_36 : f32 to vector<2x32xf32>
    %82 = arith.divf %81, %80 : vector<2x32xf32>
    %83 = arith.mulf %72, %15 : vector<2x32xf32>
    %84 = arith.mulf %64, %74 : vector<2x32xf32>
    %85 = arith.addf %83, %84 : vector<2x32xf32>
    %86 = math.tanh %85 : vector<2x32xf32>
    %87 = arith.mulf %82, %86 : vector<2x32xf32>
    %c1 = arith.constant 1 : index
    %c0_37 = arith.constant 0 : index
    %c0_38 = arith.constant 0 : index
    %88 = vector.load %arg0[%c1, %c0_37, %c0_38] : memref<8x2x8xf32, #tpu.memory_space<vmem>>, vector<1x2x8xf32>
    %89 = vector.shape_cast %88 : vector<1x2x8xf32> to vector<2x8xf32>
    %90 = tpu.concatenate %89, %52 in 1 : vector<2x8xf32>, vector<2x32xf32> -> vector<2x40xf32>
    %91 = arith.truncf %90 : vector<2x40xf32> to vector<2x40xbf16>
    %cst_39 = arith.constant dense<0.000000e+00> : vector<2x128xf32>
    %92 = tpu.matmul %91, %0, %cst_39 {dimension_numbers = #tpu.dot_dimension_numbers<[1], [0], [0], [1], [0, 0, 1, 1], [], []>} : vector<2x40xbf16>, vector<40x128xbf16>, vector<2x128xf32> -> vector<2x128xf32>
    %93 = arith.addf %92, %5 : vector<2x128xf32>
    %94 = vector.extract_strided_slice %93 {offsets = [0, 0], sizes = [2, 32], strides = [1, 1]} : vector<2x128xf32> to vector<2x32xf32>
    %cst_40 = arith.constant 0.000000e+00 : f32
    %95 = vector.broadcast %cst_40 : f32 to vector<2x32xf32>
    %96 = arith.subf %95, %94 : vector<2x32xf32>
    %97 = math.exp %96 : vector<2x32xf32>
    %cst_41 = arith.constant 1.000000e+00 : f32
    %98 = vector.broadcast %cst_41 : f32 to vector<2x32xf32>
    %99 = arith.addf %98, %97 : vector<2x32xf32>
    %cst_42 = arith.constant 1.000000e+00 : f32
    %100 = vector.broadcast %cst_42 : f32 to vector<2x32xf32>
    %101 = arith.divf %100, %99 : vector<2x32xf32>
    %102 = vector.extract_strided_slice %93 {offsets = [0, 32], sizes = [2, 32], strides = [1, 1]} : vector<2x128xf32> to vector<2x32xf32>
    %cst_43 = arith.constant 0.000000e+00 : f32
    %103 = vector.broadcast %cst_43 : f32 to vector<2x32xf32>
    %104 = arith.subf %103, %102 : vector<2x32xf32>
    %105 = math.exp %104 : vector<2x32xf32>
    %cst_44 = arith.constant 1.000000e+00 : f32
    %106 = vector.broadcast %cst_44 : f32 to vector<2x32xf32>
    %107 = arith.addf %106, %105 : vector<2x32xf32>
    %cst_45 = arith.constant 1.000000e+00 : f32
    %108 = vector.broadcast %cst_45 : f32 to vector<2x32xf32>
    %109 = arith.divf %108, %107 : vector<2x32xf32>
    %110 = vector.extract_strided_slice %93 {offsets = [0, 64], sizes = [2, 32], strides = [1, 1]} : vector<2x128xf32> to vector<2x32xf32>
    %111 = math.tanh %110 : vector<2x32xf32>
    %112 = vector.extract_strided_slice %93 {offsets = [0, 96], sizes = [2, 32], strides = [1, 1]} : vector<2x128xf32> to vector<2x32xf32>
    %cst_46 = arith.constant 0.000000e+00 : f32
    %113 = vector.broadcast %cst_46 : f32 to vector<2x32xf32>
    %114 = arith.subf %113, %112 : vector<2x32xf32>
    %115 = math.exp %114 : vector<2x32xf32>
    %cst_47 = arith.constant 1.000000e+00 : f32
    %116 = vector.broadcast %cst_47 : f32 to vector<2x32xf32>
    %117 = arith.addf %116, %115 : vector<2x32xf32>
    %cst_48 = arith.constant 1.000000e+00 : f32
    %118 = vector.broadcast %cst_48 : f32 to vector<2x32xf32>
    %119 = arith.divf %118, %117 : vector<2x32xf32>
    %120 = arith.mulf %109, %50 : vector<2x32xf32>
    %121 = arith.mulf %101, %111 : vector<2x32xf32>
    %122 = arith.addf %120, %121 : vector<2x32xf32>
    %123 = math.tanh %122 : vector<2x32xf32>
    %124 = arith.mulf %119, %123 : vector<2x32xf32>
    %125 = tpu.concatenate %124, %87 in 1 : vector<2x32xf32>, vector<2x32xf32> -> vector<2x64xf32>
    %126 = arith.truncf %125 : vector<2x64xf32> to vector<2x64xbf16>
    %cst_49 = arith.constant dense<0.000000e+00> : vector<2x128xf32>
    %127 = tpu.matmul %126, %1, %cst_49 {dimension_numbers = #tpu.dot_dimension_numbers<[1], [0], [0], [1], [0, 0, 1, 1], [], []>} : vector<2x64xbf16>, vector<64x128xbf16>, vector<2x128xf32> -> vector<2x128xf32>
    %128 = arith.addf %127, %8 : vector<2x128xf32>
    %129 = vector.extract_strided_slice %128 {offsets = [0, 0], sizes = [2, 32], strides = [1, 1]} : vector<2x128xf32> to vector<2x32xf32>
    %cst_50 = arith.constant 0.000000e+00 : f32
    %130 = vector.broadcast %cst_50 : f32 to vector<2x32xf32>
    %131 = arith.subf %130, %129 : vector<2x32xf32>
    %132 = math.exp %131 : vector<2x32xf32>
    %cst_51 = arith.constant 1.000000e+00 : f32
    %133 = vector.broadcast %cst_51 : f32 to vector<2x32xf32>
    %134 = arith.addf %133, %132 : vector<2x32xf32>
    %cst_52 = arith.constant 1.000000e+00 : f32
    %135 = vector.broadcast %cst_52 : f32 to vector<2x32xf32>
    %136 = arith.divf %135, %134 : vector<2x32xf32>
    %137 = vector.extract_strided_slice %128 {offsets = [0, 32], sizes = [2, 32], strides = [1, 1]} : vector<2x128xf32> to vector<2x32xf32>
    %cst_53 = arith.constant 0.000000e+00 : f32
    %138 = vector.broadcast %cst_53 : f32 to vector<2x32xf32>
    %139 = arith.subf %138, %137 : vector<2x32xf32>
    %140 = math.exp %139 : vector<2x32xf32>
    %cst_54 = arith.constant 1.000000e+00 : f32
    %141 = vector.broadcast %cst_54 : f32 to vector<2x32xf32>
    %142 = arith.addf %141, %140 : vector<2x32xf32>
    %cst_55 = arith.constant 1.000000e+00 : f32
    %143 = vector.broadcast %cst_55 : f32 to vector<2x32xf32>
    %144 = arith.divf %143, %142 : vector<2x32xf32>
    %145 = vector.extract_strided_slice %128 {offsets = [0, 64], sizes = [2, 32], strides = [1, 1]} : vector<2x128xf32> to vector<2x32xf32>
    %146 = math.tanh %145 : vector<2x32xf32>
    %147 = vector.extract_strided_slice %128 {offsets = [0, 96], sizes = [2, 32], strides = [1, 1]} : vector<2x128xf32> to vector<2x32xf32>
    %cst_56 = arith.constant 0.000000e+00 : f32
    %148 = vector.broadcast %cst_56 : f32 to vector<2x32xf32>
    %149 = arith.subf %148, %147 : vector<2x32xf32>
    %150 = math.exp %149 : vector<2x32xf32>
    %cst_57 = arith.constant 1.000000e+00 : f32
    %151 = vector.broadcast %cst_57 : f32 to vector<2x32xf32>
    %152 = arith.addf %151, %150 : vector<2x32xf32>
    %cst_58 = arith.constant 1.000000e+00 : f32
    %153 = vector.broadcast %cst_58 : f32 to vector<2x32xf32>
    %154 = arith.divf %153, %152 : vector<2x32xf32>
    %155 = arith.mulf %144, %85 : vector<2x32xf32>
    %156 = arith.mulf %136, %146 : vector<2x32xf32>
    %157 = arith.addf %155, %156 : vector<2x32xf32>
    %158 = math.tanh %157 : vector<2x32xf32>
    %159 = arith.mulf %154, %158 : vector<2x32xf32>
    %c2 = arith.constant 2 : index
    %c0_59 = arith.constant 0 : index
    %c0_60 = arith.constant 0 : index
    %160 = vector.load %arg0[%c2, %c0_59, %c0_60] : memref<8x2x8xf32, #tpu.memory_space<vmem>>, vector<1x2x8xf32>
    %161 = vector.shape_cast %160 : vector<1x2x8xf32> to vector<2x8xf32>
    %162 = tpu.concatenate %161, %124 in 1 : vector<2x8xf32>, vector<2x32xf32> -> vector<2x40xf32>
    %163 = arith.truncf %162 : vector<2x40xf32> to vector<2x40xbf16>
    %cst_61 = arith.constant dense<0.000000e+00> : vector<2x128xf32>
    %164 = tpu.matmul %163, %0, %cst_61 {dimension_numbers = #tpu.dot_dimension_numbers<[1], [0], [0], [1], [0, 0, 1, 1], [], []>} : vector<2x40xbf16>, vector<40x128xbf16>, vector<2x128xf32> -> vector<2x128xf32>
    %165 = arith.addf %164, %5 : vector<2x128xf32>
    %166 = vector.extract_strided_slice %165 {offsets = [0, 0], sizes = [2, 32], strides = [1, 1]} : vector<2x128xf32> to vector<2x32xf32>
    %cst_62 = arith.constant 0.000000e+00 : f32
    %167 = vector.broadcast %cst_62 : f32 to vector<2x32xf32>
    %168 = arith.subf %167, %166 : vector<2x32xf32>
    %169 = math.exp %168 : vector<2x32xf32>
    %cst_63 = arith.constant 1.000000e+00 : f32
    %170 = vector.broadcast %cst_63 : f32 to vector<2x32xf32>
    %171 = arith.addf %170, %169 : vector<2x32xf32>
    %cst_64 = arith.constant 1.000000e+00 : f32
    %172 = vector.broadcast %cst_64 : f32 to vector<2x32xf32>
    %173 = arith.divf %172, %171 : vector<2x32xf32>
    %174 = vector.extract_strided_slice %165 {offsets = [0, 32], sizes = [2, 32], strides = [1, 1]} : vector<2x128xf32> to vector<2x32xf32>
    %cst_65 = arith.constant 0.000000e+00 : f32
    %175 = vector.broadcast %cst_65 : f32 to vector<2x32xf32>
    %176 = arith.subf %175, %174 : vector<2x32xf32>
    %177 = math.exp %176 : vector<2x32xf32>
    %cst_66 = arith.constant 1.000000e+00 : f32
    %178 = vector.broadcast %cst_66 : f32 to vector<2x32xf32>
    %179 = arith.addf %178, %177 : vector<2x32xf32>
    %cst_67 = arith.constant 1.000000e+00 : f32
    %180 = vector.broadcast %cst_67 : f32 to vector<2x32xf32>
    %181 = arith.divf %180, %179 : vector<2x32xf32>
    %182 = vector.extract_strided_slice %165 {offsets = [0, 64], sizes = [2, 32], strides = [1, 1]} : vector<2x128xf32> to vector<2x32xf32>
    %183 = math.tanh %182 : vector<2x32xf32>
    %184 = vector.extract_strided_slice %165 {offsets = [0, 96], sizes = [2, 32], strides = [1, 1]} : vector<2x128xf32> to vector<2x32xf32>
    %cst_68 = arith.constant 0.000000e+00 : f32
    %185 = vector.broadcast %cst_68 : f32 to vector<2x32xf32>
    %186 = arith.subf %185, %184 : vector<2x32xf32>
    %187 = math.exp %186 : vector<2x32xf32>
    %cst_69 = arith.constant 1.000000e+00 : f32
    %188 = vector.broadcast %cst_69 : f32 to vector<2x32xf32>
    %189 = arith.addf %188, %187 : vector<2x32xf32>
    %cst_70 = arith.constant 1.000000e+00 : f32
    %190 = vector.broadcast %cst_70 : f32 to vector<2x32xf32>
    %191 = arith.divf %190, %189 : vector<2x32xf32>
    %192 = arith.mulf %181, %122 : vector<2x32xf32>
    %193 = arith.mulf %173, %183 : vector<2x32xf32>
    %194 = arith.addf %192, %193 : vector<2x32xf32>
    %195 = math.tanh %194 : vector<2x32xf32>
    %196 = arith.mulf %191, %195 : vector<2x32xf32>
    %197 = tpu.concatenate %196, %159 in 1 : vector<2x32xf32>, vector<2x32xf32> -> vector<2x64xf32>
    %198 = arith.truncf %197 : vector<2x64xf32> to vector<2x64xbf16>
    %cst_71 = arith.constant dense<0.000000e+00> : vector<2x128xf32>
    %199 = tpu.matmul %198, %1, %cst_71 {dimension_numbers = #tpu.dot_dimension_numbers<[1], [0], [0], [1], [0, 0, 1, 1], [], []>} : vector<2x64xbf16>, vector<64x128xbf16>, vector<2x128xf32> -> vector<2x128xf32>
    %200 = arith.addf %199, %8 : vector<2x128xf32>
    %201 = vector.extract_strided_slice %200 {offsets = [0, 0], sizes = [2, 32], strides = [1, 1]} : vector<2x128xf32> to vector<2x32xf32>
    %cst_72 = arith.constant 0.000000e+00 : f32
    %202 = vector.broadcast %cst_72 : f32 to vector<2x32xf32>
    %203 = arith.subf %202, %201 : vector<2x32xf32>
    %204 = math.exp %203 : vector<2x32xf32>
    %cst_73 = arith.constant 1.000000e+00 : f32
    %205 = vector.broadcast %cst_73 : f32 to vector<2x32xf32>
    %206 = arith.addf %205, %204 : vector<2x32xf32>
    %cst_74 = arith.constant 1.000000e+00 : f32
    %207 = vector.broadcast %cst_74 : f32 to vector<2x32xf32>
    %208 = arith.divf %207, %206 : vector<2x32xf32>
    %209 = vector.extract_strided_slice %200 {offsets = [0, 32], sizes = [2, 32], strides = [1, 1]} : vector<2x128xf32> to vector<2x32xf32>
    %cst_75 = arith.constant 0.000000e+00 : f32
    %210 = vector.broadcast %cst_75 : f32 to vector<2x32xf32>
    %211 = arith.subf %210, %209 : vector<2x32xf32>
    %212 = math.exp %211 : vector<2x32xf32>
    %cst_76 = arith.constant 1.000000e+00 : f32
    %213 = vector.broadcast %cst_76 : f32 to vector<2x32xf32>
    %214 = arith.addf %213, %212 : vector<2x32xf32>
    %cst_77 = arith.constant 1.000000e+00 : f32
    %215 = vector.broadcast %cst_77 : f32 to vector<2x32xf32>
    %216 = arith.divf %215, %214 : vector<2x32xf32>
    %217 = vector.extract_strided_slice %200 {offsets = [0, 64], sizes = [2, 32], strides = [1, 1]} : vector<2x128xf32> to vector<2x32xf32>
    %218 = math.tanh %217 : vector<2x32xf32>
    %219 = vector.extract_strided_slice %200 {offsets = [0, 96], sizes = [2, 32], strides = [1, 1]} : vector<2x128xf32> to vector<2x32xf32>
    %cst_78 = arith.constant 0.000000e+00 : f32
    %220 = vector.broadcast %cst_78 : f32 to vector<2x32xf32>
    %221 = arith.subf %220, %219 : vector<2x32xf32>
    %222 = math.exp %221 : vector<2x32xf32>
    %cst_79 = arith.constant 1.000000e+00 : f32
    %223 = vector.broadcast %cst_79 : f32 to vector<2x32xf32>
    %224 = arith.addf %223, %222 : vector<2x32xf32>
    %cst_80 = arith.constant 1.000000e+00 : f32
    %225 = vector.broadcast %cst_80 : f32 to vector<2x32xf32>
    %226 = arith.divf %225, %224 : vector<2x32xf32>
    %227 = arith.mulf %216, %157 : vector<2x32xf32>
    %228 = arith.mulf %208, %218 : vector<2x32xf32>
    %229 = arith.addf %227, %228 : vector<2x32xf32>
    %230 = math.tanh %229 : vector<2x32xf32>
    %231 = arith.mulf %226, %230 : vector<2x32xf32>
    %c3 = arith.constant 3 : index
    %c0_81 = arith.constant 0 : index
    %c0_82 = arith.constant 0 : index
    %232 = vector.load %arg0[%c3, %c0_81, %c0_82] : memref<8x2x8xf32, #tpu.memory_space<vmem>>, vector<1x2x8xf32>
    %233 = vector.shape_cast %232 : vector<1x2x8xf32> to vector<2x8xf32>
    %234 = tpu.concatenate %233, %196 in 1 : vector<2x8xf32>, vector<2x32xf32> -> vector<2x40xf32>
    %235 = arith.truncf %234 : vector<2x40xf32> to vector<2x40xbf16>
    %cst_83 = arith.constant dense<0.000000e+00> : vector<2x128xf32>
    %236 = tpu.matmul %235, %0, %cst_83 {dimension_numbers = #tpu.dot_dimension_numbers<[1], [0], [0], [1], [0, 0, 1, 1], [], []>} : vector<2x40xbf16>, vector<40x128xbf16>, vector<2x128xf32> -> vector<2x128xf32>
    %237 = arith.addf %236, %5 : vector<2x128xf32>
    %238 = vector.extract_strided_slice %237 {offsets = [0, 0], sizes = [2, 32], strides = [1, 1]} : vector<2x128xf32> to vector<2x32xf32>
    %cst_84 = arith.constant 0.000000e+00 : f32
    %239 = vector.broadcast %cst_84 : f32 to vector<2x32xf32>
    %240 = arith.subf %239, %238 : vector<2x32xf32>
    %241 = math.exp %240 : vector<2x32xf32>
    %cst_85 = arith.constant 1.000000e+00 : f32
    %242 = vector.broadcast %cst_85 : f32 to vector<2x32xf32>
    %243 = arith.addf %242, %241 : vector<2x32xf32>
    %cst_86 = arith.constant 1.000000e+00 : f32
    %244 = vector.broadcast %cst_86 : f32 to vector<2x32xf32>
    %245 = arith.divf %244, %243 : vector<2x32xf32>
    %246 = vector.extract_strided_slice %237 {offsets = [0, 32], sizes = [2, 32], strides = [1, 1]} : vector<2x128xf32> to vector<2x32xf32>
    %cst_87 = arith.constant 0.000000e+00 : f32
    %247 = vector.broadcast %cst_87 : f32 to vector<2x32xf32>
    %248 = arith.subf %247, %246 : vector<2x32xf32>
    %249 = math.exp %248 : vector<2x32xf32>
    %cst_88 = arith.constant 1.000000e+00 : f32
    %250 = vector.broadcast %cst_88 : f32 to vector<2x32xf32>
    %251 = arith.addf %250, %249 : vector<2x32xf32>
    %cst_89 = arith.constant 1.000000e+00 : f32
    %252 = vector.broadcast %cst_89 : f32 to vector<2x32xf32>
    %253 = arith.divf %252, %251 : vector<2x32xf32>
    %254 = vector.extract_strided_slice %237 {offsets = [0, 64], sizes = [2, 32], strides = [1, 1]} : vector<2x128xf32> to vector<2x32xf32>
    %255 = math.tanh %254 : vector<2x32xf32>
    %256 = vector.extract_strided_slice %237 {offsets = [0, 96], sizes = [2, 32], strides = [1, 1]} : vector<2x128xf32> to vector<2x32xf32>
    %cst_90 = arith.constant 0.000000e+00 : f32
    %257 = vector.broadcast %cst_90 : f32 to vector<2x32xf32>
    %258 = arith.subf %257, %256 : vector<2x32xf32>
    %259 = math.exp %258 : vector<2x32xf32>
    %cst_91 = arith.constant 1.000000e+00 : f32
    %260 = vector.broadcast %cst_91 : f32 to vector<2x32xf32>
    %261 = arith.addf %260, %259 : vector<2x32xf32>
    %cst_92 = arith.constant 1.000000e+00 : f32
    %262 = vector.broadcast %cst_92 : f32 to vector<2x32xf32>
    %263 = arith.divf %262, %261 : vector<2x32xf32>
    %264 = arith.mulf %253, %194 : vector<2x32xf32>
    %265 = arith.mulf %245, %255 : vector<2x32xf32>
    %266 = arith.addf %264, %265 : vector<2x32xf32>
    %267 = math.tanh %266 : vector<2x32xf32>
    %268 = arith.mulf %263, %267 : vector<2x32xf32>
    %269 = tpu.concatenate %268, %231 in 1 : vector<2x32xf32>, vector<2x32xf32> -> vector<2x64xf32>
    %270 = arith.truncf %269 : vector<2x64xf32> to vector<2x64xbf16>
    %cst_93 = arith.constant dense<0.000000e+00> : vector<2x128xf32>
    %271 = tpu.matmul %270, %1, %cst_93 {dimension_numbers = #tpu.dot_dimension_numbers<[1], [0], [0], [1], [0, 0, 1, 1], [], []>} : vector<2x64xbf16>, vector<64x128xbf16>, vector<2x128xf32> -> vector<2x128xf32>
    %272 = arith.addf %271, %8 : vector<2x128xf32>
    %273 = vector.extract_strided_slice %272 {offsets = [0, 0], sizes = [2, 32], strides = [1, 1]} : vector<2x128xf32> to vector<2x32xf32>
    %cst_94 = arith.constant 0.000000e+00 : f32
    %274 = vector.broadcast %cst_94 : f32 to vector<2x32xf32>
    %275 = arith.subf %274, %273 : vector<2x32xf32>
    %276 = math.exp %275 : vector<2x32xf32>
    %cst_95 = arith.constant 1.000000e+00 : f32
    %277 = vector.broadcast %cst_95 : f32 to vector<2x32xf32>
    %278 = arith.addf %277, %276 : vector<2x32xf32>
    %cst_96 = arith.constant 1.000000e+00 : f32
    %279 = vector.broadcast %cst_96 : f32 to vector<2x32xf32>
    %280 = arith.divf %279, %278 : vector<2x32xf32>
    %281 = vector.extract_strided_slice %272 {offsets = [0, 32], sizes = [2, 32], strides = [1, 1]} : vector<2x128xf32> to vector<2x32xf32>
    %cst_97 = arith.constant 0.000000e+00 : f32
    %282 = vector.broadcast %cst_97 : f32 to vector<2x32xf32>
    %283 = arith.subf %282, %281 : vector<2x32xf32>
    %284 = math.exp %283 : vector<2x32xf32>
    %cst_98 = arith.constant 1.000000e+00 : f32
    %285 = vector.broadcast %cst_98 : f32 to vector<2x32xf32>
    %286 = arith.addf %285, %284 : vector<2x32xf32>
    %cst_99 = arith.constant 1.000000e+00 : f32
    %287 = vector.broadcast %cst_99 : f32 to vector<2x32xf32>
    %288 = arith.divf %287, %286 : vector<2x32xf32>
    %289 = vector.extract_strided_slice %272 {offsets = [0, 64], sizes = [2, 32], strides = [1, 1]} : vector<2x128xf32> to vector<2x32xf32>
    %290 = math.tanh %289 : vector<2x32xf32>
    %291 = vector.extract_strided_slice %272 {offsets = [0, 96], sizes = [2, 32], strides = [1, 1]} : vector<2x128xf32> to vector<2x32xf32>
    %cst_100 = arith.constant 0.000000e+00 : f32
    %292 = vector.broadcast %cst_100 : f32 to vector<2x32xf32>
    %293 = arith.subf %292, %291 : vector<2x32xf32>
    %294 = math.exp %293 : vector<2x32xf32>
    %cst_101 = arith.constant 1.000000e+00 : f32
    %295 = vector.broadcast %cst_101 : f32 to vector<2x32xf32>
    %296 = arith.addf %295, %294 : vector<2x32xf32>
    %cst_102 = arith.constant 1.000000e+00 : f32
    %297 = vector.broadcast %cst_102 : f32 to vector<2x32xf32>
    %298 = arith.divf %297, %296 : vector<2x32xf32>
    %299 = arith.mulf %288, %229 : vector<2x32xf32>
    %300 = arith.mulf %280, %290 : vector<2x32xf32>
    %301 = arith.addf %299, %300 : vector<2x32xf32>
    %302 = math.tanh %301 : vector<2x32xf32>
    %303 = arith.mulf %298, %302 : vector<2x32xf32>
    %c4 = arith.constant 4 : index
    %c0_103 = arith.constant 0 : index
    %c0_104 = arith.constant 0 : index
    %304 = vector.load %arg0[%c4, %c0_103, %c0_104] : memref<8x2x8xf32, #tpu.memory_space<vmem>>, vector<1x2x8xf32>
    %305 = vector.shape_cast %304 : vector<1x2x8xf32> to vector<2x8xf32>
    %306 = tpu.concatenate %305, %268 in 1 : vector<2x8xf32>, vector<2x32xf32> -> vector<2x40xf32>
    %307 = arith.truncf %306 : vector<2x40xf32> to vector<2x40xbf16>
    %cst_105 = arith.constant dense<0.000000e+00> : vector<2x128xf32>
    %308 = tpu.matmul %307, %0, %cst_105 {dimension_numbers = #tpu.dot_dimension_numbers<[1], [0], [0], [1], [0, 0, 1, 1], [], []>} : vector<2x40xbf16>, vector<40x128xbf16>, vector<2x128xf32> -> vector<2x128xf32>
    %309 = arith.addf %308, %5 : vector<2x128xf32>
    %310 = vector.extract_strided_slice %309 {offsets = [0, 0], sizes = [2, 32], strides = [1, 1]} : vector<2x128xf32> to vector<2x32xf32>
    %cst_106 = arith.constant 0.000000e+00 : f32
    %311 = vector.broadcast %cst_106 : f32 to vector<2x32xf32>
    %312 = arith.subf %311, %310 : vector<2x32xf32>
    %313 = math.exp %312 : vector<2x32xf32>
    %cst_107 = arith.constant 1.000000e+00 : f32
    %314 = vector.broadcast %cst_107 : f32 to vector<2x32xf32>
    %315 = arith.addf %314, %313 : vector<2x32xf32>
    %cst_108 = arith.constant 1.000000e+00 : f32
    %316 = vector.broadcast %cst_108 : f32 to vector<2x32xf32>
    %317 = arith.divf %316, %315 : vector<2x32xf32>
    %318 = vector.extract_strided_slice %309 {offsets = [0, 32], sizes = [2, 32], strides = [1, 1]} : vector<2x128xf32> to vector<2x32xf32>
    %cst_109 = arith.constant 0.000000e+00 : f32
    %319 = vector.broadcast %cst_109 : f32 to vector<2x32xf32>
    %320 = arith.subf %319, %318 : vector<2x32xf32>
    %321 = math.exp %320 : vector<2x32xf32>
    %cst_110 = arith.constant 1.000000e+00 : f32
    %322 = vector.broadcast %cst_110 : f32 to vector<2x32xf32>
    %323 = arith.addf %322, %321 : vector<2x32xf32>
    %cst_111 = arith.constant 1.000000e+00 : f32
    %324 = vector.broadcast %cst_111 : f32 to vector<2x32xf32>
    %325 = arith.divf %324, %323 : vector<2x32xf32>
    %326 = vector.extract_strided_slice %309 {offsets = [0, 64], sizes = [2, 32], strides = [1, 1]} : vector<2x128xf32> to vector<2x32xf32>
    %327 = math.tanh %326 : vector<2x32xf32>
    %328 = vector.extract_strided_slice %309 {offsets = [0, 96], sizes = [2, 32], strides = [1, 1]} : vector<2x128xf32> to vector<2x32xf32>
    %cst_112 = arith.constant 0.000000e+00 : f32
    %329 = vector.broadcast %cst_112 : f32 to vector<2x32xf32>
    %330 = arith.subf %329, %328 : vector<2x32xf32>
    %331 = math.exp %330 : vector<2x32xf32>
    %cst_113 = arith.constant 1.000000e+00 : f32
    %332 = vector.broadcast %cst_113 : f32 to vector<2x32xf32>
    %333 = arith.addf %332, %331 : vector<2x32xf32>
    %cst_114 = arith.constant 1.000000e+00 : f32
    %334 = vector.broadcast %cst_114 : f32 to vector<2x32xf32>
    %335 = arith.divf %334, %333 : vector<2x32xf32>
    %336 = arith.mulf %325, %266 : vector<2x32xf32>
    %337 = arith.mulf %317, %327 : vector<2x32xf32>
    %338 = arith.addf %336, %337 : vector<2x32xf32>
    %339 = math.tanh %338 : vector<2x32xf32>
    %340 = arith.mulf %335, %339 : vector<2x32xf32>
    %341 = tpu.concatenate %340, %303 in 1 : vector<2x32xf32>, vector<2x32xf32> -> vector<2x64xf32>
    %342 = arith.truncf %341 : vector<2x64xf32> to vector<2x64xbf16>
    %cst_115 = arith.constant dense<0.000000e+00> : vector<2x128xf32>
    %343 = tpu.matmul %342, %1, %cst_115 {dimension_numbers = #tpu.dot_dimension_numbers<[1], [0], [0], [1], [0, 0, 1, 1], [], []>} : vector<2x64xbf16>, vector<64x128xbf16>, vector<2x128xf32> -> vector<2x128xf32>
    %344 = arith.addf %343, %8 : vector<2x128xf32>
    %345 = vector.extract_strided_slice %344 {offsets = [0, 0], sizes = [2, 32], strides = [1, 1]} : vector<2x128xf32> to vector<2x32xf32>
    %cst_116 = arith.constant 0.000000e+00 : f32
    %346 = vector.broadcast %cst_116 : f32 to vector<2x32xf32>
    %347 = arith.subf %346, %345 : vector<2x32xf32>
    %348 = math.exp %347 : vector<2x32xf32>
    %cst_117 = arith.constant 1.000000e+00 : f32
    %349 = vector.broadcast %cst_117 : f32 to vector<2x32xf32>
    %350 = arith.addf %349, %348 : vector<2x32xf32>
    %cst_118 = arith.constant 1.000000e+00 : f32
    %351 = vector.broadcast %cst_118 : f32 to vector<2x32xf32>
    %352 = arith.divf %351, %350 : vector<2x32xf32>
    %353 = vector.extract_strided_slice %344 {offsets = [0, 32], sizes = [2, 32], strides = [1, 1]} : vector<2x128xf32> to vector<2x32xf32>
    %cst_119 = arith.constant 0.000000e+00 : f32
    %354 = vector.broadcast %cst_119 : f32 to vector<2x32xf32>
    %355 = arith.subf %354, %353 : vector<2x32xf32>
    %356 = math.exp %355 : vector<2x32xf32>
    %cst_120 = arith.constant 1.000000e+00 : f32
    %357 = vector.broadcast %cst_120 : f32 to vector<2x32xf32>
    %358 = arith.addf %357, %356 : vector<2x32xf32>
    %cst_121 = arith.constant 1.000000e+00 : f32
    %359 = vector.broadcast %cst_121 : f32 to vector<2x32xf32>
    %360 = arith.divf %359, %358 : vector<2x32xf32>
    %361 = vector.extract_strided_slice %344 {offsets = [0, 64], sizes = [2, 32], strides = [1, 1]} : vector<2x128xf32> to vector<2x32xf32>
    %362 = math.tanh %361 : vector<2x32xf32>
    %363 = vector.extract_strided_slice %344 {offsets = [0, 96], sizes = [2, 32], strides = [1, 1]} : vector<2x128xf32> to vector<2x32xf32>
    %cst_122 = arith.constant 0.000000e+00 : f32
    %364 = vector.broadcast %cst_122 : f32 to vector<2x32xf32>
    %365 = arith.subf %364, %363 : vector<2x32xf32>
    %366 = math.exp %365 : vector<2x32xf32>
    %cst_123 = arith.constant 1.000000e+00 : f32
    %367 = vector.broadcast %cst_123 : f32 to vector<2x32xf32>
    %368 = arith.addf %367, %366 : vector<2x32xf32>
    %cst_124 = arith.constant 1.000000e+00 : f32
    %369 = vector.broadcast %cst_124 : f32 to vector<2x32xf32>
    %370 = arith.divf %369, %368 : vector<2x32xf32>
    %371 = arith.mulf %360, %301 : vector<2x32xf32>
    %372 = arith.mulf %352, %362 : vector<2x32xf32>
    %373 = arith.addf %371, %372 : vector<2x32xf32>
    %374 = math.tanh %373 : vector<2x32xf32>
    %375 = arith.mulf %370, %374 : vector<2x32xf32>
    %c5 = arith.constant 5 : index
    %c0_125 = arith.constant 0 : index
    %c0_126 = arith.constant 0 : index
    %376 = vector.load %arg0[%c5, %c0_125, %c0_126] : memref<8x2x8xf32, #tpu.memory_space<vmem>>, vector<1x2x8xf32>
    %377 = vector.shape_cast %376 : vector<1x2x8xf32> to vector<2x8xf32>
    %378 = tpu.concatenate %377, %340 in 1 : vector<2x8xf32>, vector<2x32xf32> -> vector<2x40xf32>
    %379 = arith.truncf %378 : vector<2x40xf32> to vector<2x40xbf16>
    %cst_127 = arith.constant dense<0.000000e+00> : vector<2x128xf32>
    %380 = tpu.matmul %379, %0, %cst_127 {dimension_numbers = #tpu.dot_dimension_numbers<[1], [0], [0], [1], [0, 0, 1, 1], [], []>} : vector<2x40xbf16>, vector<40x128xbf16>, vector<2x128xf32> -> vector<2x128xf32>
    %381 = arith.addf %380, %5 : vector<2x128xf32>
    %382 = vector.extract_strided_slice %381 {offsets = [0, 0], sizes = [2, 32], strides = [1, 1]} : vector<2x128xf32> to vector<2x32xf32>
    %cst_128 = arith.constant 0.000000e+00 : f32
    %383 = vector.broadcast %cst_128 : f32 to vector<2x32xf32>
    %384 = arith.subf %383, %382 : vector<2x32xf32>
    %385 = math.exp %384 : vector<2x32xf32>
    %cst_129 = arith.constant 1.000000e+00 : f32
    %386 = vector.broadcast %cst_129 : f32 to vector<2x32xf32>
    %387 = arith.addf %386, %385 : vector<2x32xf32>
    %cst_130 = arith.constant 1.000000e+00 : f32
    %388 = vector.broadcast %cst_130 : f32 to vector<2x32xf32>
    %389 = arith.divf %388, %387 : vector<2x32xf32>
    %390 = vector.extract_strided_slice %381 {offsets = [0, 32], sizes = [2, 32], strides = [1, 1]} : vector<2x128xf32> to vector<2x32xf32>
    %cst_131 = arith.constant 0.000000e+00 : f32
    %391 = vector.broadcast %cst_131 : f32 to vector<2x32xf32>
    %392 = arith.subf %391, %390 : vector<2x32xf32>
    %393 = math.exp %392 : vector<2x32xf32>
    %cst_132 = arith.constant 1.000000e+00 : f32
    %394 = vector.broadcast %cst_132 : f32 to vector<2x32xf32>
    %395 = arith.addf %394, %393 : vector<2x32xf32>
    %cst_133 = arith.constant 1.000000e+00 : f32
    %396 = vector.broadcast %cst_133 : f32 to vector<2x32xf32>
    %397 = arith.divf %396, %395 : vector<2x32xf32>
    %398 = vector.extract_strided_slice %381 {offsets = [0, 64], sizes = [2, 32], strides = [1, 1]} : vector<2x128xf32> to vector<2x32xf32>
    %399 = math.tanh %398 : vector<2x32xf32>
    %400 = vector.extract_strided_slice %381 {offsets = [0, 96], sizes = [2, 32], strides = [1, 1]} : vector<2x128xf32> to vector<2x32xf32>
    %cst_134 = arith.constant 0.000000e+00 : f32
    %401 = vector.broadcast %cst_134 : f32 to vector<2x32xf32>
    %402 = arith.subf %401, %400 : vector<2x32xf32>
    %403 = math.exp %402 : vector<2x32xf32>
    %cst_135 = arith.constant 1.000000e+00 : f32
    %404 = vector.broadcast %cst_135 : f32 to vector<2x32xf32>
    %405 = arith.addf %404, %403 : vector<2x32xf32>
    %cst_136 = arith.constant 1.000000e+00 : f32
    %406 = vector.broadcast %cst_136 : f32 to vector<2x32xf32>
    %407 = arith.divf %406, %405 : vector<2x32xf32>
    %408 = arith.mulf %397, %338 : vector<2x32xf32>
    %409 = arith.mulf %389, %399 : vector<2x32xf32>
    %410 = arith.addf %408, %409 : vector<2x32xf32>
    %411 = math.tanh %410 : vector<2x32xf32>
    %412 = arith.mulf %407, %411 : vector<2x32xf32>
    %413 = tpu.concatenate %412, %375 in 1 : vector<2x32xf32>, vector<2x32xf32> -> vector<2x64xf32>
    %414 = arith.truncf %413 : vector<2x64xf32> to vector<2x64xbf16>
    %cst_137 = arith.constant dense<0.000000e+00> : vector<2x128xf32>
    %415 = tpu.matmul %414, %1, %cst_137 {dimension_numbers = #tpu.dot_dimension_numbers<[1], [0], [0], [1], [0, 0, 1, 1], [], []>} : vector<2x64xbf16>, vector<64x128xbf16>, vector<2x128xf32> -> vector<2x128xf32>
    %416 = arith.addf %415, %8 : vector<2x128xf32>
    %417 = vector.extract_strided_slice %416 {offsets = [0, 0], sizes = [2, 32], strides = [1, 1]} : vector<2x128xf32> to vector<2x32xf32>
    %cst_138 = arith.constant 0.000000e+00 : f32
    %418 = vector.broadcast %cst_138 : f32 to vector<2x32xf32>
    %419 = arith.subf %418, %417 : vector<2x32xf32>
    %420 = math.exp %419 : vector<2x32xf32>
    %cst_139 = arith.constant 1.000000e+00 : f32
    %421 = vector.broadcast %cst_139 : f32 to vector<2x32xf32>
    %422 = arith.addf %421, %420 : vector<2x32xf32>
    %cst_140 = arith.constant 1.000000e+00 : f32
    %423 = vector.broadcast %cst_140 : f32 to vector<2x32xf32>
    %424 = arith.divf %423, %422 : vector<2x32xf32>
    %425 = vector.extract_strided_slice %416 {offsets = [0, 32], sizes = [2, 32], strides = [1, 1]} : vector<2x128xf32> to vector<2x32xf32>
    %cst_141 = arith.constant 0.000000e+00 : f32
    %426 = vector.broadcast %cst_141 : f32 to vector<2x32xf32>
    %427 = arith.subf %426, %425 : vector<2x32xf32>
    %428 = math.exp %427 : vector<2x32xf32>
    %cst_142 = arith.constant 1.000000e+00 : f32
    %429 = vector.broadcast %cst_142 : f32 to vector<2x32xf32>
    %430 = arith.addf %429, %428 : vector<2x32xf32>
    %cst_143 = arith.constant 1.000000e+00 : f32
    %431 = vector.broadcast %cst_143 : f32 to vector<2x32xf32>
    %432 = arith.divf %431, %430 : vector<2x32xf32>
    %433 = vector.extract_strided_slice %416 {offsets = [0, 64], sizes = [2, 32], strides = [1, 1]} : vector<2x128xf32> to vector<2x32xf32>
    %434 = math.tanh %433 : vector<2x32xf32>
    %435 = vector.extract_strided_slice %416 {offsets = [0, 96], sizes = [2, 32], strides = [1, 1]} : vector<2x128xf32> to vector<2x32xf32>
    %cst_144 = arith.constant 0.000000e+00 : f32
    %436 = vector.broadcast %cst_144 : f32 to vector<2x32xf32>
    %437 = arith.subf %436, %435 : vector<2x32xf32>
    %438 = math.exp %437 : vector<2x32xf32>
    %cst_145 = arith.constant 1.000000e+00 : f32
    %439 = vector.broadcast %cst_145 : f32 to vector<2x32xf32>
    %440 = arith.addf %439, %438 : vector<2x32xf32>
    %cst_146 = arith.constant 1.000000e+00 : f32
    %441 = vector.broadcast %cst_146 : f32 to vector<2x32xf32>
    %442 = arith.divf %441, %440 : vector<2x32xf32>
    %443 = arith.mulf %432, %373 : vector<2x32xf32>
    %444 = arith.mulf %424, %434 : vector<2x32xf32>
    %445 = arith.addf %443, %444 : vector<2x32xf32>
    %446 = math.tanh %445 : vector<2x32xf32>
    %447 = arith.mulf %442, %446 : vector<2x32xf32>
    %c6 = arith.constant 6 : index
    %c0_147 = arith.constant 0 : index
    %c0_148 = arith.constant 0 : index
    %448 = vector.load %arg0[%c6, %c0_147, %c0_148] : memref<8x2x8xf32, #tpu.memory_space<vmem>>, vector<1x2x8xf32>
    %449 = vector.shape_cast %448 : vector<1x2x8xf32> to vector<2x8xf32>
    %450 = tpu.concatenate %449, %412 in 1 : vector<2x8xf32>, vector<2x32xf32> -> vector<2x40xf32>
    %451 = arith.truncf %450 : vector<2x40xf32> to vector<2x40xbf16>
    %cst_149 = arith.constant dense<0.000000e+00> : vector<2x128xf32>
    %452 = tpu.matmul %451, %0, %cst_149 {dimension_numbers = #tpu.dot_dimension_numbers<[1], [0], [0], [1], [0, 0, 1, 1], [], []>} : vector<2x40xbf16>, vector<40x128xbf16>, vector<2x128xf32> -> vector<2x128xf32>
    %453 = arith.addf %452, %5 : vector<2x128xf32>
    %454 = vector.extract_strided_slice %453 {offsets = [0, 0], sizes = [2, 32], strides = [1, 1]} : vector<2x128xf32> to vector<2x32xf32>
    %cst_150 = arith.constant 0.000000e+00 : f32
    %455 = vector.broadcast %cst_150 : f32 to vector<2x32xf32>
    %456 = arith.subf %455, %454 : vector<2x32xf32>
    %457 = math.exp %456 : vector<2x32xf32>
    %cst_151 = arith.constant 1.000000e+00 : f32
    %458 = vector.broadcast %cst_151 : f32 to vector<2x32xf32>
    %459 = arith.addf %458, %457 : vector<2x32xf32>
    %cst_152 = arith.constant 1.000000e+00 : f32
    %460 = vector.broadcast %cst_152 : f32 to vector<2x32xf32>
    %461 = arith.divf %460, %459 : vector<2x32xf32>
    %462 = vector.extract_strided_slice %453 {offsets = [0, 32], sizes = [2, 32], strides = [1, 1]} : vector<2x128xf32> to vector<2x32xf32>
    %cst_153 = arith.constant 0.000000e+00 : f32
    %463 = vector.broadcast %cst_153 : f32 to vector<2x32xf32>
    %464 = arith.subf %463, %462 : vector<2x32xf32>
    %465 = math.exp %464 : vector<2x32xf32>
    %cst_154 = arith.constant 1.000000e+00 : f32
    %466 = vector.broadcast %cst_154 : f32 to vector<2x32xf32>
    %467 = arith.addf %466, %465 : vector<2x32xf32>
    %cst_155 = arith.constant 1.000000e+00 : f32
    %468 = vector.broadcast %cst_155 : f32 to vector<2x32xf32>
    %469 = arith.divf %468, %467 : vector<2x32xf32>
    %470 = vector.extract_strided_slice %453 {offsets = [0, 64], sizes = [2, 32], strides = [1, 1]} : vector<2x128xf32> to vector<2x32xf32>
    %471 = math.tanh %470 : vector<2x32xf32>
    %472 = vector.extract_strided_slice %453 {offsets = [0, 96], sizes = [2, 32], strides = [1, 1]} : vector<2x128xf32> to vector<2x32xf32>
    %cst_156 = arith.constant 0.000000e+00 : f32
    %473 = vector.broadcast %cst_156 : f32 to vector<2x32xf32>
    %474 = arith.subf %473, %472 : vector<2x32xf32>
    %475 = math.exp %474 : vector<2x32xf32>
    %cst_157 = arith.constant 1.000000e+00 : f32
    %476 = vector.broadcast %cst_157 : f32 to vector<2x32xf32>
    %477 = arith.addf %476, %475 : vector<2x32xf32>
    %cst_158 = arith.constant 1.000000e+00 : f32
    %478 = vector.broadcast %cst_158 : f32 to vector<2x32xf32>
    %479 = arith.divf %478, %477 : vector<2x32xf32>
    %480 = arith.mulf %469, %410 : vector<2x32xf32>
    %481 = arith.mulf %461, %471 : vector<2x32xf32>
    %482 = arith.addf %480, %481 : vector<2x32xf32>
    %483 = math.tanh %482 : vector<2x32xf32>
    %484 = arith.mulf %479, %483 : vector<2x32xf32>
    %485 = tpu.concatenate %484, %447 in 1 : vector<2x32xf32>, vector<2x32xf32> -> vector<2x64xf32>
    %486 = arith.truncf %485 : vector<2x64xf32> to vector<2x64xbf16>
    %cst_159 = arith.constant dense<0.000000e+00> : vector<2x128xf32>
    %487 = tpu.matmul %486, %1, %cst_159 {dimension_numbers = #tpu.dot_dimension_numbers<[1], [0], [0], [1], [0, 0, 1, 1], [], []>} : vector<2x64xbf16>, vector<64x128xbf16>, vector<2x128xf32> -> vector<2x128xf32>
    %488 = arith.addf %487, %8 : vector<2x128xf32>
    %489 = vector.extract_strided_slice %488 {offsets = [0, 0], sizes = [2, 32], strides = [1, 1]} : vector<2x128xf32> to vector<2x32xf32>
    %cst_160 = arith.constant 0.000000e+00 : f32
    %490 = vector.broadcast %cst_160 : f32 to vector<2x32xf32>
    %491 = arith.subf %490, %489 : vector<2x32xf32>
    %492 = math.exp %491 : vector<2x32xf32>
    %cst_161 = arith.constant 1.000000e+00 : f32
    %493 = vector.broadcast %cst_161 : f32 to vector<2x32xf32>
    %494 = arith.addf %493, %492 : vector<2x32xf32>
    %cst_162 = arith.constant 1.000000e+00 : f32
    %495 = vector.broadcast %cst_162 : f32 to vector<2x32xf32>
    %496 = arith.divf %495, %494 : vector<2x32xf32>
    %497 = vector.extract_strided_slice %488 {offsets = [0, 32], sizes = [2, 32], strides = [1, 1]} : vector<2x128xf32> to vector<2x32xf32>
    %cst_163 = arith.constant 0.000000e+00 : f32
    %498 = vector.broadcast %cst_163 : f32 to vector<2x32xf32>
    %499 = arith.subf %498, %497 : vector<2x32xf32>
    %500 = math.exp %499 : vector<2x32xf32>
    %cst_164 = arith.constant 1.000000e+00 : f32
    %501 = vector.broadcast %cst_164 : f32 to vector<2x32xf32>
    %502 = arith.addf %501, %500 : vector<2x32xf32>
    %cst_165 = arith.constant 1.000000e+00 : f32
    %503 = vector.broadcast %cst_165 : f32 to vector<2x32xf32>
    %504 = arith.divf %503, %502 : vector<2x32xf32>
    %505 = vector.extract_strided_slice %488 {offsets = [0, 64], sizes = [2, 32], strides = [1, 1]} : vector<2x128xf32> to vector<2x32xf32>
    %506 = math.tanh %505 : vector<2x32xf32>
    %507 = vector.extract_strided_slice %488 {offsets = [0, 96], sizes = [2, 32], strides = [1, 1]} : vector<2x128xf32> to vector<2x32xf32>
    %cst_166 = arith.constant 0.000000e+00 : f32
    %508 = vector.broadcast %cst_166 : f32 to vector<2x32xf32>
    %509 = arith.subf %508, %507 : vector<2x32xf32>
    %510 = math.exp %509 : vector<2x32xf32>
    %cst_167 = arith.constant 1.000000e+00 : f32
    %511 = vector.broadcast %cst_167 : f32 to vector<2x32xf32>
    %512 = arith.addf %511, %510 : vector<2x32xf32>
    %cst_168 = arith.constant 1.000000e+00 : f32
    %513 = vector.broadcast %cst_168 : f32 to vector<2x32xf32>
    %514 = arith.divf %513, %512 : vector<2x32xf32>
    %515 = arith.mulf %504, %445 : vector<2x32xf32>
    %516 = arith.mulf %496, %506 : vector<2x32xf32>
    %517 = arith.addf %515, %516 : vector<2x32xf32>
    %518 = math.tanh %517 : vector<2x32xf32>
    %519 = arith.mulf %514, %518 : vector<2x32xf32>
    %c7 = arith.constant 7 : index
    %c0_169 = arith.constant 0 : index
    %c0_170 = arith.constant 0 : index
    %520 = vector.load %arg0[%c7, %c0_169, %c0_170] : memref<8x2x8xf32, #tpu.memory_space<vmem>>, vector<1x2x8xf32>
    %521 = vector.shape_cast %520 : vector<1x2x8xf32> to vector<2x8xf32>
    %522 = tpu.concatenate %521, %484 in 1 : vector<2x8xf32>, vector<2x32xf32> -> vector<2x40xf32>
    %523 = arith.truncf %522 : vector<2x40xf32> to vector<2x40xbf16>
    %cst_171 = arith.constant dense<0.000000e+00> : vector<2x128xf32>
    %524 = tpu.matmul %523, %0, %cst_171 {dimension_numbers = #tpu.dot_dimension_numbers<[1], [0], [0], [1], [0, 0, 1, 1], [], []>} : vector<2x40xbf16>, vector<40x128xbf16>, vector<2x128xf32> -> vector<2x128xf32>
    %525 = arith.addf %524, %5 : vector<2x128xf32>
    %526 = vector.extract_strided_slice %525 {offsets = [0, 0], sizes = [2, 32], strides = [1, 1]} : vector<2x128xf32> to vector<2x32xf32>
    %cst_172 = arith.constant 0.000000e+00 : f32
    %527 = vector.broadcast %cst_172 : f32 to vector<2x32xf32>
    %528 = arith.subf %527, %526 : vector<2x32xf32>
    %529 = math.exp %528 : vector<2x32xf32>
    %cst_173 = arith.constant 1.000000e+00 : f32
    %530 = vector.broadcast %cst_173 : f32 to vector<2x32xf32>
    %531 = arith.addf %530, %529 : vector<2x32xf32>
    %cst_174 = arith.constant 1.000000e+00 : f32
    %532 = vector.broadcast %cst_174 : f32 to vector<2x32xf32>
    %533 = arith.divf %532, %531 : vector<2x32xf32>
    %534 = vector.extract_strided_slice %525 {offsets = [0, 32], sizes = [2, 32], strides = [1, 1]} : vector<2x128xf32> to vector<2x32xf32>
    %cst_175 = arith.constant 0.000000e+00 : f32
    %535 = vector.broadcast %cst_175 : f32 to vector<2x32xf32>
    %536 = arith.subf %535, %534 : vector<2x32xf32>
    %537 = math.exp %536 : vector<2x32xf32>
    %cst_176 = arith.constant 1.000000e+00 : f32
    %538 = vector.broadcast %cst_176 : f32 to vector<2x32xf32>
    %539 = arith.addf %538, %537 : vector<2x32xf32>
    %cst_177 = arith.constant 1.000000e+00 : f32
    %540 = vector.broadcast %cst_177 : f32 to vector<2x32xf32>
    %541 = arith.divf %540, %539 : vector<2x32xf32>
    %542 = vector.extract_strided_slice %525 {offsets = [0, 64], sizes = [2, 32], strides = [1, 1]} : vector<2x128xf32> to vector<2x32xf32>
    %543 = math.tanh %542 : vector<2x32xf32>
    %544 = vector.extract_strided_slice %525 {offsets = [0, 96], sizes = [2, 32], strides = [1, 1]} : vector<2x128xf32> to vector<2x32xf32>
    %cst_178 = arith.constant 0.000000e+00 : f32
    %545 = vector.broadcast %cst_178 : f32 to vector<2x32xf32>
    %546 = arith.subf %545, %544 : vector<2x32xf32>
    %547 = math.exp %546 : vector<2x32xf32>
    %cst_179 = arith.constant 1.000000e+00 : f32
    %548 = vector.broadcast %cst_179 : f32 to vector<2x32xf32>
    %549 = arith.addf %548, %547 : vector<2x32xf32>
    %cst_180 = arith.constant 1.000000e+00 : f32
    %550 = vector.broadcast %cst_180 : f32 to vector<2x32xf32>
    %551 = arith.divf %550, %549 : vector<2x32xf32>
    %552 = arith.mulf %541, %482 : vector<2x32xf32>
    %553 = arith.mulf %533, %543 : vector<2x32xf32>
    %554 = arith.addf %552, %553 : vector<2x32xf32>
    %555 = math.tanh %554 : vector<2x32xf32>
    %556 = arith.mulf %551, %555 : vector<2x32xf32>
    %557 = tpu.concatenate %556, %519 in 1 : vector<2x32xf32>, vector<2x32xf32> -> vector<2x64xf32>
    %558 = arith.truncf %557 : vector<2x64xf32> to vector<2x64xbf16>
    %cst_181 = arith.constant dense<0.000000e+00> : vector<2x128xf32>
    %559 = tpu.matmul %558, %1, %cst_181 {dimension_numbers = #tpu.dot_dimension_numbers<[1], [0], [0], [1], [0, 0, 1, 1], [], []>} : vector<2x64xbf16>, vector<64x128xbf16>, vector<2x128xf32> -> vector<2x128xf32>
    %560 = arith.addf %559, %8 : vector<2x128xf32>
    %561 = vector.extract_strided_slice %560 {offsets = [0, 0], sizes = [2, 32], strides = [1, 1]} : vector<2x128xf32> to vector<2x32xf32>
    %cst_182 = arith.constant 0.000000e+00 : f32
    %562 = vector.broadcast %cst_182 : f32 to vector<2x32xf32>
    %563 = arith.subf %562, %561 : vector<2x32xf32>
    %564 = math.exp %563 : vector<2x32xf32>
    %cst_183 = arith.constant 1.000000e+00 : f32
    %565 = vector.broadcast %cst_183 : f32 to vector<2x32xf32>
    %566 = arith.addf %565, %564 : vector<2x32xf32>
    %cst_184 = arith.constant 1.000000e+00 : f32
    %567 = vector.broadcast %cst_184 : f32 to vector<2x32xf32>
    %568 = arith.divf %567, %566 : vector<2x32xf32>
    %569 = vector.extract_strided_slice %560 {offsets = [0, 32], sizes = [2, 32], strides = [1, 1]} : vector<2x128xf32> to vector<2x32xf32>
    %cst_185 = arith.constant 0.000000e+00 : f32
    %570 = vector.broadcast %cst_185 : f32 to vector<2x32xf32>
    %571 = arith.subf %570, %569 : vector<2x32xf32>
    %572 = math.exp %571 : vector<2x32xf32>
    %cst_186 = arith.constant 1.000000e+00 : f32
    %573 = vector.broadcast %cst_186 : f32 to vector<2x32xf32>
    %574 = arith.addf %573, %572 : vector<2x32xf32>
    %cst_187 = arith.constant 1.000000e+00 : f32
    %575 = vector.broadcast %cst_187 : f32 to vector<2x32xf32>
    %576 = arith.divf %575, %574 : vector<2x32xf32>
    %577 = vector.extract_strided_slice %560 {offsets = [0, 64], sizes = [2, 32], strides = [1, 1]} : vector<2x128xf32> to vector<2x32xf32>
    %578 = math.tanh %577 : vector<2x32xf32>
    %579 = vector.extract_strided_slice %560 {offsets = [0, 96], sizes = [2, 32], strides = [1, 1]} : vector<2x128xf32> to vector<2x32xf32>
    %cst_188 = arith.constant 0.000000e+00 : f32
    %580 = vector.broadcast %cst_188 : f32 to vector<2x32xf32>
    %581 = arith.subf %580, %579 : vector<2x32xf32>
    %582 = math.exp %581 : vector<2x32xf32>
    %cst_189 = arith.constant 1.000000e+00 : f32
    %583 = vector.broadcast %cst_189 : f32 to vector<2x32xf32>
    %584 = arith.addf %583, %582 : vector<2x32xf32>
    %cst_190 = arith.constant 1.000000e+00 : f32
    %585 = vector.broadcast %cst_190 : f32 to vector<2x32xf32>
    %586 = arith.divf %585, %584 : vector<2x32xf32>
    %587 = arith.mulf %576, %517 : vector<2x32xf32>
    %588 = arith.mulf %568, %578 : vector<2x32xf32>
    %589 = arith.addf %587, %588 : vector<2x32xf32>
    %590 = math.tanh %589 : vector<2x32xf32>
    %591 = arith.mulf %586, %590 : vector<2x32xf32>
    %592 = arith.truncf %591 : vector<2x32xf32> to vector<2x32xbf16>
    %cst_191 = arith.constant dense<0.000000e+00> : vector<2x8xf32>
    %593 = tpu.matmul %592, %2, %cst_191 {dimension_numbers = #tpu.dot_dimension_numbers<[1], [0], [0], [1], [0, 0, 1, 1], [], []>} : vector<2x32xbf16>, vector<32x8xbf16>, vector<2x8xf32> -> vector<2x8xf32>
    %594 = arith.addf %593, %11 : vector<2x8xf32>
    %595 = tpu.concatenate %594, %556 in 1 : vector<2x8xf32>, vector<2x32xf32> -> vector<2x40xf32>
    %596 = arith.truncf %595 : vector<2x40xf32> to vector<2x40xbf16>
    %cst_192 = arith.constant dense<0.000000e+00> : vector<2x128xf32>
    %597 = tpu.matmul %596, %0, %cst_192 {dimension_numbers = #tpu.dot_dimension_numbers<[1], [0], [0], [1], [0, 0, 1, 1], [], []>} : vector<2x40xbf16>, vector<40x128xbf16>, vector<2x128xf32> -> vector<2x128xf32>
    %598 = arith.addf %597, %5 : vector<2x128xf32>
    %599 = vector.extract_strided_slice %598 {offsets = [0, 0], sizes = [2, 32], strides = [1, 1]} : vector<2x128xf32> to vector<2x32xf32>
    %cst_193 = arith.constant 0.000000e+00 : f32
    %600 = vector.broadcast %cst_193 : f32 to vector<2x32xf32>
    %601 = arith.subf %600, %599 : vector<2x32xf32>
    %602 = math.exp %601 : vector<2x32xf32>
    %cst_194 = arith.constant 1.000000e+00 : f32
    %603 = vector.broadcast %cst_194 : f32 to vector<2x32xf32>
    %604 = arith.addf %603, %602 : vector<2x32xf32>
    %cst_195 = arith.constant 1.000000e+00 : f32
    %605 = vector.broadcast %cst_195 : f32 to vector<2x32xf32>
    %606 = arith.divf %605, %604 : vector<2x32xf32>
    %607 = vector.extract_strided_slice %598 {offsets = [0, 32], sizes = [2, 32], strides = [1, 1]} : vector<2x128xf32> to vector<2x32xf32>
    %cst_196 = arith.constant 0.000000e+00 : f32
    %608 = vector.broadcast %cst_196 : f32 to vector<2x32xf32>
    %609 = arith.subf %608, %607 : vector<2x32xf32>
    %610 = math.exp %609 : vector<2x32xf32>
    %cst_197 = arith.constant 1.000000e+00 : f32
    %611 = vector.broadcast %cst_197 : f32 to vector<2x32xf32>
    %612 = arith.addf %611, %610 : vector<2x32xf32>
    %cst_198 = arith.constant 1.000000e+00 : f32
    %613 = vector.broadcast %cst_198 : f32 to vector<2x32xf32>
    %614 = arith.divf %613, %612 : vector<2x32xf32>
    %615 = vector.extract_strided_slice %598 {offsets = [0, 64], sizes = [2, 32], strides = [1, 1]} : vector<2x128xf32> to vector<2x32xf32>
    %616 = math.tanh %615 : vector<2x32xf32>
    %617 = vector.extract_strided_slice %598 {offsets = [0, 96], sizes = [2, 32], strides = [1, 1]} : vector<2x128xf32> to vector<2x32xf32>
    %cst_199 = arith.constant 0.000000e+00 : f32
    %618 = vector.broadcast %cst_199 : f32 to vector<2x32xf32>
    %619 = arith.subf %618, %617 : vector<2x32xf32>
    %620 = math.exp %619 : vector<2x32xf32>
    %cst_200 = arith.constant 1.000000e+00 : f32
    %621 = vector.broadcast %cst_200 : f32 to vector<2x32xf32>
    %622 = arith.addf %621, %620 : vector<2x32xf32>
    %cst_201 = arith.constant 1.000000e+00 : f32
    %623 = vector.broadcast %cst_201 : f32 to vector<2x32xf32>
    %624 = arith.divf %623, %622 : vector<2x32xf32>
    %625 = arith.mulf %614, %554 : vector<2x32xf32>
    %626 = arith.mulf %606, %616 : vector<2x32xf32>
    %627 = arith.addf %625, %626 : vector<2x32xf32>
    %628 = math.tanh %627 : vector<2x32xf32>
    %629 = arith.mulf %624, %628 : vector<2x32xf32>
    %630 = tpu.concatenate %629, %591 in 1 : vector<2x32xf32>, vector<2x32xf32> -> vector<2x64xf32>
    %631 = arith.truncf %630 : vector<2x64xf32> to vector<2x64xbf16>
    %cst_202 = arith.constant dense<0.000000e+00> : vector<2x128xf32>
    %632 = tpu.matmul %631, %1, %cst_202 {dimension_numbers = #tpu.dot_dimension_numbers<[1], [0], [0], [1], [0, 0, 1, 1], [], []>} : vector<2x64xbf16>, vector<64x128xbf16>, vector<2x128xf32> -> vector<2x128xf32>
    %633 = arith.addf %632, %8 : vector<2x128xf32>
    %634 = vector.extract_strided_slice %633 {offsets = [0, 0], sizes = [2, 32], strides = [1, 1]} : vector<2x128xf32> to vector<2x32xf32>
    %cst_203 = arith.constant 0.000000e+00 : f32
    %635 = vector.broadcast %cst_203 : f32 to vector<2x32xf32>
    %636 = arith.subf %635, %634 : vector<2x32xf32>
    %637 = math.exp %636 : vector<2x32xf32>
    %cst_204 = arith.constant 1.000000e+00 : f32
    %638 = vector.broadcast %cst_204 : f32 to vector<2x32xf32>
    %639 = arith.addf %638, %637 : vector<2x32xf32>
    %cst_205 = arith.constant 1.000000e+00 : f32
    %640 = vector.broadcast %cst_205 : f32 to vector<2x32xf32>
    %641 = arith.divf %640, %639 : vector<2x32xf32>
    %642 = vector.extract_strided_slice %633 {offsets = [0, 32], sizes = [2, 32], strides = [1, 1]} : vector<2x128xf32> to vector<2x32xf32>
    %cst_206 = arith.constant 0.000000e+00 : f32
    %643 = vector.broadcast %cst_206 : f32 to vector<2x32xf32>
    %644 = arith.subf %643, %642 : vector<2x32xf32>
    %645 = math.exp %644 : vector<2x32xf32>
    %cst_207 = arith.constant 1.000000e+00 : f32
    %646 = vector.broadcast %cst_207 : f32 to vector<2x32xf32>
    %647 = arith.addf %646, %645 : vector<2x32xf32>
    %cst_208 = arith.constant 1.000000e+00 : f32
    %648 = vector.broadcast %cst_208 : f32 to vector<2x32xf32>
    %649 = arith.divf %648, %647 : vector<2x32xf32>
    %650 = vector.extract_strided_slice %633 {offsets = [0, 64], sizes = [2, 32], strides = [1, 1]} : vector<2x128xf32> to vector<2x32xf32>
    %651 = math.tanh %650 : vector<2x32xf32>
    %652 = vector.extract_strided_slice %633 {offsets = [0, 96], sizes = [2, 32], strides = [1, 1]} : vector<2x128xf32> to vector<2x32xf32>
    %cst_209 = arith.constant 0.000000e+00 : f32
    %653 = vector.broadcast %cst_209 : f32 to vector<2x32xf32>
    %654 = arith.subf %653, %652 : vector<2x32xf32>
    %655 = math.exp %654 : vector<2x32xf32>
    %cst_210 = arith.constant 1.000000e+00 : f32
    %656 = vector.broadcast %cst_210 : f32 to vector<2x32xf32>
    %657 = arith.addf %656, %655 : vector<2x32xf32>
    %cst_211 = arith.constant 1.000000e+00 : f32
    %658 = vector.broadcast %cst_211 : f32 to vector<2x32xf32>
    %659 = arith.divf %658, %657 : vector<2x32xf32>
    %660 = arith.mulf %649, %589 : vector<2x32xf32>
    %661 = arith.mulf %641, %651 : vector<2x32xf32>
    %662 = arith.addf %660, %661 : vector<2x32xf32>
    %663 = math.tanh %662 : vector<2x32xf32>
    %664 = arith.mulf %659, %663 : vector<2x32xf32>
    %665 = arith.truncf %664 : vector<2x32xf32> to vector<2x32xbf16>
    %cst_212 = arith.constant dense<0.000000e+00> : vector<2x8xf32>
    %666 = tpu.matmul %665, %2, %cst_212 {dimension_numbers = #tpu.dot_dimension_numbers<[1], [0], [0], [1], [0, 0, 1, 1], [], []>} : vector<2x32xbf16>, vector<32x8xbf16>, vector<2x8xf32> -> vector<2x8xf32>
    %667 = arith.addf %666, %11 : vector<2x8xf32>
    %668 = tpu.concatenate %667, %629 in 1 : vector<2x8xf32>, vector<2x32xf32> -> vector<2x40xf32>
    %669 = arith.truncf %668 : vector<2x40xf32> to vector<2x40xbf16>
    %cst_213 = arith.constant dense<0.000000e+00> : vector<2x128xf32>
    %670 = tpu.matmul %669, %0, %cst_213 {dimension_numbers = #tpu.dot_dimension_numbers<[1], [0], [0], [1], [0, 0, 1, 1], [], []>} : vector<2x40xbf16>, vector<40x128xbf16>, vector<2x128xf32> -> vector<2x128xf32>
    %671 = arith.addf %670, %5 : vector<2x128xf32>
    %672 = vector.extract_strided_slice %671 {offsets = [0, 0], sizes = [2, 32], strides = [1, 1]} : vector<2x128xf32> to vector<2x32xf32>
    %cst_214 = arith.constant 0.000000e+00 : f32
    %673 = vector.broadcast %cst_214 : f32 to vector<2x32xf32>
    %674 = arith.subf %673, %672 : vector<2x32xf32>
    %675 = math.exp %674 : vector<2x32xf32>
    %cst_215 = arith.constant 1.000000e+00 : f32
    %676 = vector.broadcast %cst_215 : f32 to vector<2x32xf32>
    %677 = arith.addf %676, %675 : vector<2x32xf32>
    %cst_216 = arith.constant 1.000000e+00 : f32
    %678 = vector.broadcast %cst_216 : f32 to vector<2x32xf32>
    %679 = arith.divf %678, %677 : vector<2x32xf32>
    %680 = vector.extract_strided_slice %671 {offsets = [0, 32], sizes = [2, 32], strides = [1, 1]} : vector<2x128xf32> to vector<2x32xf32>
    %cst_217 = arith.constant 0.000000e+00 : f32
    %681 = vector.broadcast %cst_217 : f32 to vector<2x32xf32>
    %682 = arith.subf %681, %680 : vector<2x32xf32>
    %683 = math.exp %682 : vector<2x32xf32>
    %cst_218 = arith.constant 1.000000e+00 : f32
    %684 = vector.broadcast %cst_218 : f32 to vector<2x32xf32>
    %685 = arith.addf %684, %683 : vector<2x32xf32>
    %cst_219 = arith.constant 1.000000e+00 : f32
    %686 = vector.broadcast %cst_219 : f32 to vector<2x32xf32>
    %687 = arith.divf %686, %685 : vector<2x32xf32>
    %688 = vector.extract_strided_slice %671 {offsets = [0, 64], sizes = [2, 32], strides = [1, 1]} : vector<2x128xf32> to vector<2x32xf32>
    %689 = math.tanh %688 : vector<2x32xf32>
    %690 = vector.extract_strided_slice %671 {offsets = [0, 96], sizes = [2, 32], strides = [1, 1]} : vector<2x128xf32> to vector<2x32xf32>
    %cst_220 = arith.constant 0.000000e+00 : f32
    %691 = vector.broadcast %cst_220 : f32 to vector<2x32xf32>
    %692 = arith.subf %691, %690 : vector<2x32xf32>
    %693 = math.exp %692 : vector<2x32xf32>
    %cst_221 = arith.constant 1.000000e+00 : f32
    %694 = vector.broadcast %cst_221 : f32 to vector<2x32xf32>
    %695 = arith.addf %694, %693 : vector<2x32xf32>
    %cst_222 = arith.constant 1.000000e+00 : f32
    %696 = vector.broadcast %cst_222 : f32 to vector<2x32xf32>
    %697 = arith.divf %696, %695 : vector<2x32xf32>
    %698 = arith.mulf %687, %627 : vector<2x32xf32>
    %699 = arith.mulf %679, %689 : vector<2x32xf32>
    %700 = arith.addf %698, %699 : vector<2x32xf32>
    %701 = math.tanh %700 : vector<2x32xf32>
    %702 = arith.mulf %697, %701 : vector<2x32xf32>
    %703 = tpu.concatenate %702, %664 in 1 : vector<2x32xf32>, vector<2x32xf32> -> vector<2x64xf32>
    %704 = arith.truncf %703 : vector<2x64xf32> to vector<2x64xbf16>
    %cst_223 = arith.constant dense<0.000000e+00> : vector<2x128xf32>
    %705 = tpu.matmul %704, %1, %cst_223 {dimension_numbers = #tpu.dot_dimension_numbers<[1], [0], [0], [1], [0, 0, 1, 1], [], []>} : vector<2x64xbf16>, vector<64x128xbf16>, vector<2x128xf32> -> vector<2x128xf32>
    %706 = arith.addf %705, %8 : vector<2x128xf32>
    %707 = vector.extract_strided_slice %706 {offsets = [0, 0], sizes = [2, 32], strides = [1, 1]} : vector<2x128xf32> to vector<2x32xf32>
    %cst_224 = arith.constant 0.000000e+00 : f32
    %708 = vector.broadcast %cst_224 : f32 to vector<2x32xf32>
    %709 = arith.subf %708, %707 : vector<2x32xf32>
    %710 = math.exp %709 : vector<2x32xf32>
    %cst_225 = arith.constant 1.000000e+00 : f32
    %711 = vector.broadcast %cst_225 : f32 to vector<2x32xf32>
    %712 = arith.addf %711, %710 : vector<2x32xf32>
    %cst_226 = arith.constant 1.000000e+00 : f32
    %713 = vector.broadcast %cst_226 : f32 to vector<2x32xf32>
    %714 = arith.divf %713, %712 : vector<2x32xf32>
    %715 = vector.extract_strided_slice %706 {offsets = [0, 32], sizes = [2, 32], strides = [1, 1]} : vector<2x128xf32> to vector<2x32xf32>
    %cst_227 = arith.constant 0.000000e+00 : f32
    %716 = vector.broadcast %cst_227 : f32 to vector<2x32xf32>
    %717 = arith.subf %716, %715 : vector<2x32xf32>
    %718 = math.exp %717 : vector<2x32xf32>
    %cst_228 = arith.constant 1.000000e+00 : f32
    %719 = vector.broadcast %cst_228 : f32 to vector<2x32xf32>
    %720 = arith.addf %719, %718 : vector<2x32xf32>
    %cst_229 = arith.constant 1.000000e+00 : f32
    %721 = vector.broadcast %cst_229 : f32 to vector<2x32xf32>
    %722 = arith.divf %721, %720 : vector<2x32xf32>
    %723 = vector.extract_strided_slice %706 {offsets = [0, 64], sizes = [2, 32], strides = [1, 1]} : vector<2x128xf32> to vector<2x32xf32>
    %724 = math.tanh %723 : vector<2x32xf32>
    %725 = vector.extract_strided_slice %706 {offsets = [0, 96], sizes = [2, 32], strides = [1, 1]} : vector<2x128xf32> to vector<2x32xf32>
    %cst_230 = arith.constant 0.000000e+00 : f32
    %726 = vector.broadcast %cst_230 : f32 to vector<2x32xf32>
    %727 = arith.subf %726, %725 : vector<2x32xf32>
    %728 = math.exp %727 : vector<2x32xf32>
    %cst_231 = arith.constant 1.000000e+00 : f32
    %729 = vector.broadcast %cst_231 : f32 to vector<2x32xf32>
    %730 = arith.addf %729, %728 : vector<2x32xf32>
    %cst_232 = arith.constant 1.000000e+00 : f32
    %731 = vector.broadcast %cst_232 : f32 to vector<2x32xf32>
    %732 = arith.divf %731, %730 : vector<2x32xf32>
    %733 = arith.mulf %722, %662 : vector<2x32xf32>
    %734 = arith.mulf %714, %724 : vector<2x32xf32>
    %735 = arith.addf %733, %734 : vector<2x32xf32>
    %736 = math.tanh %735 : vector<2x32xf32>
    %737 = arith.mulf %732, %736 : vector<2x32xf32>
    %738 = arith.truncf %737 : vector<2x32xf32> to vector<2x32xbf16>
    %cst_233 = arith.constant dense<0.000000e+00> : vector<2x8xf32>
    %739 = tpu.matmul %738, %2, %cst_233 {dimension_numbers = #tpu.dot_dimension_numbers<[1], [0], [0], [1], [0, 0, 1, 1], [], []>} : vector<2x32xbf16>, vector<32x8xbf16>, vector<2x8xf32> -> vector<2x8xf32>
    %740 = arith.addf %739, %11 : vector<2x8xf32>
    %741 = tpu.concatenate %740, %702 in 1 : vector<2x8xf32>, vector<2x32xf32> -> vector<2x40xf32>
    %742 = arith.truncf %741 : vector<2x40xf32> to vector<2x40xbf16>
    %cst_234 = arith.constant dense<0.000000e+00> : vector<2x128xf32>
    %743 = tpu.matmul %742, %0, %cst_234 {dimension_numbers = #tpu.dot_dimension_numbers<[1], [0], [0], [1], [0, 0, 1, 1], [], []>} : vector<2x40xbf16>, vector<40x128xbf16>, vector<2x128xf32> -> vector<2x128xf32>
    %744 = arith.addf %743, %5 : vector<2x128xf32>
    %745 = vector.extract_strided_slice %744 {offsets = [0, 0], sizes = [2, 32], strides = [1, 1]} : vector<2x128xf32> to vector<2x32xf32>
    %cst_235 = arith.constant 0.000000e+00 : f32
    %746 = vector.broadcast %cst_235 : f32 to vector<2x32xf32>
    %747 = arith.subf %746, %745 : vector<2x32xf32>
    %748 = math.exp %747 : vector<2x32xf32>
    %cst_236 = arith.constant 1.000000e+00 : f32
    %749 = vector.broadcast %cst_236 : f32 to vector<2x32xf32>
    %750 = arith.addf %749, %748 : vector<2x32xf32>
    %cst_237 = arith.constant 1.000000e+00 : f32
    %751 = vector.broadcast %cst_237 : f32 to vector<2x32xf32>
    %752 = arith.divf %751, %750 : vector<2x32xf32>
    %753 = vector.extract_strided_slice %744 {offsets = [0, 32], sizes = [2, 32], strides = [1, 1]} : vector<2x128xf32> to vector<2x32xf32>
    %cst_238 = arith.constant 0.000000e+00 : f32
    %754 = vector.broadcast %cst_238 : f32 to vector<2x32xf32>
    %755 = arith.subf %754, %753 : vector<2x32xf32>
    %756 = math.exp %755 : vector<2x32xf32>
    %cst_239 = arith.constant 1.000000e+00 : f32
    %757 = vector.broadcast %cst_239 : f32 to vector<2x32xf32>
    %758 = arith.addf %757, %756 : vector<2x32xf32>
    %cst_240 = arith.constant 1.000000e+00 : f32
    %759 = vector.broadcast %cst_240 : f32 to vector<2x32xf32>
    %760 = arith.divf %759, %758 : vector<2x32xf32>
    %761 = vector.extract_strided_slice %744 {offsets = [0, 64], sizes = [2, 32], strides = [1, 1]} : vector<2x128xf32> to vector<2x32xf32>
    %762 = math.tanh %761 : vector<2x32xf32>
    %763 = vector.extract_strided_slice %744 {offsets = [0, 96], sizes = [2, 32], strides = [1, 1]} : vector<2x128xf32> to vector<2x32xf32>
    %cst_241 = arith.constant 0.000000e+00 : f32
    %764 = vector.broadcast %cst_241 : f32 to vector<2x32xf32>
    %765 = arith.subf %764, %763 : vector<2x32xf32>
    %766 = math.exp %765 : vector<2x32xf32>
    %cst_242 = arith.constant 1.000000e+00 : f32
    %767 = vector.broadcast %cst_242 : f32 to vector<2x32xf32>
    %768 = arith.addf %767, %766 : vector<2x32xf32>
    %cst_243 = arith.constant 1.000000e+00 : f32
    %769 = vector.broadcast %cst_243 : f32 to vector<2x32xf32>
    %770 = arith.divf %769, %768 : vector<2x32xf32>
    %771 = arith.mulf %760, %700 : vector<2x32xf32>
    %772 = arith.mulf %752, %762 : vector<2x32xf32>
    %773 = arith.addf %771, %772 : vector<2x32xf32>
    %774 = math.tanh %773 : vector<2x32xf32>
    %775 = arith.mulf %770, %774 : vector<2x32xf32>
    %776 = tpu.concatenate %775, %737 in 1 : vector<2x32xf32>, vector<2x32xf32> -> vector<2x64xf32>
    %777 = arith.truncf %776 : vector<2x64xf32> to vector<2x64xbf16>
    %cst_244 = arith.constant dense<0.000000e+00> : vector<2x128xf32>
    %778 = tpu.matmul %777, %1, %cst_244 {dimension_numbers = #tpu.dot_dimension_numbers<[1], [0], [0], [1], [0, 0, 1, 1], [], []>} : vector<2x64xbf16>, vector<64x128xbf16>, vector<2x128xf32> -> vector<2x128xf32>
    %779 = arith.addf %778, %8 : vector<2x128xf32>
    %780 = vector.extract_strided_slice %779 {offsets = [0, 0], sizes = [2, 32], strides = [1, 1]} : vector<2x128xf32> to vector<2x32xf32>
    %cst_245 = arith.constant 0.000000e+00 : f32
    %781 = vector.broadcast %cst_245 : f32 to vector<2x32xf32>
    %782 = arith.subf %781, %780 : vector<2x32xf32>
    %783 = math.exp %782 : vector<2x32xf32>
    %cst_246 = arith.constant 1.000000e+00 : f32
    %784 = vector.broadcast %cst_246 : f32 to vector<2x32xf32>
    %785 = arith.addf %784, %783 : vector<2x32xf32>
    %cst_247 = arith.constant 1.000000e+00 : f32
    %786 = vector.broadcast %cst_247 : f32 to vector<2x32xf32>
    %787 = arith.divf %786, %785 : vector<2x32xf32>
    %788 = vector.extract_strided_slice %779 {offsets = [0, 32], sizes = [2, 32], strides = [1, 1]} : vector<2x128xf32> to vector<2x32xf32>
    %cst_248 = arith.constant 0.000000e+00 : f32
    %789 = vector.broadcast %cst_248 : f32 to vector<2x32xf32>
    %790 = arith.subf %789, %788 : vector<2x32xf32>
    %791 = math.exp %790 : vector<2x32xf32>
    %cst_249 = arith.constant 1.000000e+00 : f32
    %792 = vector.broadcast %cst_249 : f32 to vector<2x32xf32>
    %793 = arith.addf %792, %791 : vector<2x32xf32>
    %cst_250 = arith.constant 1.000000e+00 : f32
    %794 = vector.broadcast %cst_250 : f32 to vector<2x32xf32>
    %795 = arith.divf %794, %793 : vector<2x32xf32>
    %796 = vector.extract_strided_slice %779 {offsets = [0, 64], sizes = [2, 32], strides = [1, 1]} : vector<2x128xf32> to vector<2x32xf32>
    %797 = math.tanh %796 : vector<2x32xf32>
    %798 = vector.extract_strided_slice %779 {offsets = [0, 96], sizes = [2, 32], strides = [1, 1]} : vector<2x128xf32> to vector<2x32xf32>
    %cst_251 = arith.constant 0.000000e+00 : f32
    %799 = vector.broadcast %cst_251 : f32 to vector<2x32xf32>
    %800 = arith.subf %799, %798 : vector<2x32xf32>
    %801 = math.exp %800 : vector<2x32xf32>
    %cst_252 = arith.constant 1.000000e+00 : f32
    %802 = vector.broadcast %cst_252 : f32 to vector<2x32xf32>
    %803 = arith.addf %802, %801 : vector<2x32xf32>
    %cst_253 = arith.constant 1.000000e+00 : f32
    %804 = vector.broadcast %cst_253 : f32 to vector<2x32xf32>
    %805 = arith.divf %804, %803 : vector<2x32xf32>
    %806 = arith.mulf %795, %735 : vector<2x32xf32>
    %807 = arith.mulf %787, %797 : vector<2x32xf32>
    %808 = arith.addf %806, %807 : vector<2x32xf32>
    %809 = math.tanh %808 : vector<2x32xf32>
    %810 = arith.mulf %805, %809 : vector<2x32xf32>
    %811 = arith.truncf %810 : vector<2x32xf32> to vector<2x32xbf16>
    %cst_254 = arith.constant dense<0.000000e+00> : vector<2x8xf32>
    %812 = tpu.matmul %811, %2, %cst_254 {dimension_numbers = #tpu.dot_dimension_numbers<[1], [0], [0], [1], [0, 0, 1, 1], [], []>} : vector<2x32xbf16>, vector<32x8xbf16>, vector<2x8xf32> -> vector<2x8xf32>
    %813 = arith.addf %812, %11 : vector<2x8xf32>
    %814 = vector.shape_cast %594 : vector<2x8xf32> to vector<1x2x8xf32>
    %815 = vector.shape_cast %667 : vector<2x8xf32> to vector<1x2x8xf32>
    %816 = vector.shape_cast %740 : vector<2x8xf32> to vector<1x2x8xf32>
    %817 = vector.shape_cast %813 : vector<2x8xf32> to vector<1x2x8xf32>
    %818 = tpu.concatenate %814, %815, %816, %817 in 0 : vector<1x2x8xf32>, vector<1x2x8xf32>, vector<1x2x8xf32>, vector<1x2x8xf32> -> vector<4x2x8xf32>
    %c0_255 = arith.constant 0 : index
    %c0_256 = arith.constant 0 : index
    %c0_257 = arith.constant 0 : index
    %819 = vector.load %arg7[%c0_255, %c0_256, %c0_257] : memref<4x2x8xf32, #tpu.memory_space<vmem>>, vector<4x2x8xf32>
    tpu.vector_store %arg7[%c0_255, %c0_256, %c0_257], %818 {strides = array<i32>} : memref<4x2x8xf32, #tpu.memory_space<vmem>>, vector<4x2x8xf32>,
    return
  }
}

</mosaic_0001>

<llo_original>
// kernel: tpu_custom_call.1
$region0: #{tpu_custom_call.1}
  #allocation0 [shape = 'u32[]', space=smem, size = 0x4, offset = 0x4, fixed_abs, tag = 'smem constant byte address 0x4 - core index']
  #allocation1 [shape = 'u32[144,128]{1,0:T(1,128)}', space=vmem, size = 0x12000, scoped, tag = 'internal scratch']
  %s0 = inlined_call_operand.hbm [shape: f32[8,2,8], index: 0, kind: input, shape index: {}]
  %s1 = inlined_call_operand.vmem [shape: bf16[40,128], index: 1, kind: input, shape index: {}]
  %s2 = inlined_call_operand.vmem [shape: f32[1,128], index: 2, kind: input, shape index: {}]
  %s3 = inlined_call_operand.hbm [shape: bf16[64,128], index: 3, kind: input, shape index: {}]
  %s4 = inlined_call_operand.vmem [shape: f32[1,128], index: 4, kind: input, shape index: {}]
  %s5 = inlined_call_operand.vmem [shape: bf16[32,8], index: 5, kind: input, shape index: {}]
  %s6 = inlined_call_operand.vmem [shape: f32[1,8], index: 6, kind: input, shape index: {}]
  %s7 = inlined_call_operand.hbm [shape: f32[4,2,8], index: 7, kind: output, shape index: {}]
  %s8 = sld [smem:[#allocation0]]
  $region46: #{tpu_custom_call.1} parent=0
    _
  %s10 = ssub.s32 1, %s8
  %s11 = scalar_select 0, %s10, %s8
  $region1: #{tpu_custom_call.1} parent=0
    #allocation2 [shape = 'u8[8192]{0}', space=vmem, size = 0x2000, scoped, tag = 'input window, operand 0, single buffered']
    #allocation3 [shape = 's32[1]{0}', space=sflag, size = 0x4, scoped, tag = 'scoped memory for tpu_custom_call.1']
    #allocation4 [shape = 's32[1]{0}', space=sflag, size = 0x4, scoped, tag = 'scoped memory for tpu_custom_call.1']
    #allocation5 [shape = 'u8[16384]{0}', space=vmem, size = 0x4000, scoped, tag = 'input window, operand 3, single buffered']
    #allocation6 [shape = 's32[1]{0}', space=sflag, size = 0x4, scoped, tag = 'scoped memory for tpu_custom_call.1']
    #allocation7 [shape = 'u8[4096]{0}', space=vmem, size = 0x1000, scoped, tag = 'output window, operand 0, single buffered']
    %12 = vsyncpa [#allocation3], 0
    %13 = vsyncpa [#allocation6], 0
    %14 = vsyncpa [#allocation4], 0
    // Predicated region
    $region2: #{tpu_custom_call.1} parent=1 // pred_check
      _
    $region3: #{tpu_custom_call.1} parent=1 // pred_check_branch
      %16 = sbr.rel (0) target = $region5
    $region4: #{tpu_custom_call.1} parent=1 // pred_region
      %s18 = ssub.s32 256, 256
      %19 = vsyncadd [#allocation3], %s18
      %s20 = sshll.u32 [#allocation2], 4
      %s21 = int_to_ptr.vmem [resolvable:$true] %s20
      %26 = dma.hbm_to_vmem [thread:$0]  %s0, 256, %s21, [#allocation3], 32, 32, 2
    $region5: #{tpu_custom_call.1} parent=1 // pred_fallthru
      _
    // Predicated region
    $region6: #{tpu_custom_call.1} parent=1 // pred_check
      _
    $region7: #{tpu_custom_call.1} parent=1 // pred_check_branch
      %28 = sbr.rel (0) target = $region9
    $region8: #{tpu_custom_call.1} parent=1 // pred_region
      _
    $region9: #{tpu_custom_call.1} parent=1 // pred_fallthru
      _
    // Predicated region
    $region10: #{tpu_custom_call.1} parent=1 // pred_check
      _
    $region11: #{tpu_custom_call.1} parent=1 // pred_check_branch
      %30 = sbr.rel (0) target = $region13
    $region12: #{tpu_custom_call.1} parent=1 // pred_region
      _
    $region13: #{tpu_custom_call.1} parent=1 // pred_fallthru
      _
    // Predicated region
    $region14: #{tpu_custom_call.1} parent=1 // pred_check
      _
    $region15: #{tpu_custom_call.1} parent=1 // pred_check_branch
      %32 = sbr.rel (0) target = $region17
    $region16: #{tpu_custom_call.1} parent=1 // pred_region
      %s34 = ssub.s32 512, 512
      %35 = vsyncadd [#allocation6], %s34
      %s36 = sshll.u32 [#allocation5], 4
      %s37 = int_to_ptr.vmem [resolvable:$true] %s36
      %42 = dma.hbm_to_vmem [thread:$0]  %s3, 512, %s37, [#allocation6], 64, 64, 4
    $region17: #{tpu_custom_call.1} parent=1 // pred_fallthru
      _
    // Predicated region
    $region18: #{tpu_custom_call.1} parent=1 // pred_check
      _
    $region19: #{tpu_custom_call.1} parent=1 // pred_check_branch
      %44 = sbr.rel (0) target = $region21
    $region20: #{tpu_custom_call.1} parent=1 // pred_region
      _
    $region21: #{tpu_custom_call.1} parent=1 // pred_fallthru
      _
    // Predicated region
    $region22: #{tpu_custom_call.1} parent=1 // pred_check
      _
    $region23: #{tpu_custom_call.1} parent=1 // pred_check_branch
      %46 = sbr.rel (0) target = $region25
    $region24: #{tpu_custom_call.1} parent=1 // pred_region
      _
    $region25: #{tpu_custom_call.1} parent=1 // pred_fallthru
      _
    // Predicated region
    $region26: #{tpu_custom_call.1} parent=1 // pred_check
      _
    $region27: #{tpu_custom_call.1} parent=1 // pred_check_branch
      %48 = sbr.rel (0) target = $region29
    $region28: #{tpu_custom_call.1} parent=1 // pred_region
      _
    $region29: #{tpu_custom_call.1} parent=1 // pred_fallthru
      _
    // Predicated region
    $region30: #{tpu_custom_call.1} parent=1 // pred_check
      _
    $region31: #{tpu_custom_call.1} parent=1 // pred_check_branch
      %50 = sbr.rel (0) target = $region33
    $region32: #{tpu_custom_call.1} parent=1 // pred_region
      %51 = dma.done [#allocation3], 256
    $region33: #{tpu_custom_call.1} parent=1 // pred_fallthru
      _
    // Predicated region
    $region34: #{tpu_custom_call.1} parent=1 // pred_check
      _
    $region35: #{tpu_custom_call.1} parent=1 // pred_check_branch
      %53 = sbr.rel (0) target = $region37
    $region36: #{tpu_custom_call.1} parent=1 // pred_region
      %54 = dma.done [#allocation6], 512
    $region37: #{tpu_custom_call.1} parent=1 // pred_fallthru
      _
    %v56 = vld [vmem:[%s1] sm:$0xf]
    %v57 = vld [vmem:[%s1 + $0x4] sm:$0xf]
    %v58 = vld [vmem:[%s1 + $0x8] sm:$0xf]
    %v59 = vld [vmem:[%s1 + $0xc] sm:$0xf]
    %v60 = vld [vmem:[%s1 + $0x10] sm:$0xf]
    %v61 = vld [vmem:[#allocation5] sm:$0xf]
    %v62 = vld [vmem:[#allocation5 + $0x4] sm:$0xf]
    %v63 = vld [vmem:[#allocation5 + $0x8] sm:$0xf]
    %v64 = vld [vmem:[#allocation5 + $0xc] sm:$0xf]
    %v65 = vld [vmem:[#allocation5 + $0x10] sm:$0xf]
    %v66 = vld [vmem:[#allocation5 + $0x14] sm:$0xf]
    %v67 = vld [vmem:[#allocation5 + $0x18] sm:$0xf]
    %v68 = vld [vmem:[#allocation5 + $0x1c] sm:$0xf]
    %v69 = vld [vmem:[%s5] sm:$0xf]
    %v70 = vld [vmem:[%s5 + $0x4] sm:$0xf]
    %v71 = vld [vmem:[%s5 + $0x8] sm:$0xf]
    %v72 = vld [vmem:[%s5 + $0xc] sm:$0xf]
    %v73 = vld [vmem:[%s2] sm:$0x1]
    %v75 = vlaneseq
    %v76 = vshrl.u32 %v75, 7
    %v77 = vsub.s32 0, %v76
    %v78 = vrot.slane %v73, %v77
    %v80 = vld [vmem:[%s4] sm:$0x1]
    %v82 = vlaneseq
    %v83 = vshrl.u32 %v82, 7
    %v84 = vsub.s32 0, %v83
    %v85 = vrot.slane %v80, %v84
    %v87 = vld [vmem:[%s6] sm:$0x1]
    %v89 = vlaneseq
    %v90 = vshrl.u32 %v89, 7
    %v91 = vsub.s32 0, %v90
    %v92 = vrot.slane %v87, %v91
    %v94 = vld [vmem:[#allocation2] sm:$0x3]
    %vm95 = vcmask 64512
    %v96 = vsel %vm95, %v94, 0.0
    %v97 = vpack.c.bf16 %v96, %v96
    %v103 = vunpack.c.l.b16 %v56
    %v104 = vunpack.c.l.b16 %v57
    %v105 = vunpack.c.l.b16 %v58
    %v106 = vunpack.c.l.b16 %v59
    %v107 = vunpack.c.l.b16 %v60
    %v108 = vpack.c.b16 %v104, %v103
    %v109 = vpack.c.b16 %v106, %v105
    %v110 = vpack.c.b16 %v107, %v107
    %vm113 = vcmask 326656
    %v115 = vsel %vm113, %v97, 0
    %vm117 = vcmask 1043456
    %v119 = vsel %vm117, %v110, 0
    %121 = vmatprep.subr.bf16.mxu0 0
    %122 = vmatpush1.bf16.msra.mxu0 0
    %123 = vmatprep.subr.bf16.mxu0 0
    %124 = vmatpush1.bf16.msra.mxu0 0
    %125 = vmatprep.subr.bf16.mxu0 0
    %126 = vmatpush1.bf16.msra.mxu0 0
    %127 = vmatprep.subr.bf16.mxu0 0
    %128 = vmatpush1.bf16.msra.mxu0 0
    %129 = vmatprep.subr.bf16.mxu0 0
    %130 = vmatpush1.bf16.msra.mxu0 0
    %131 = vmatprep.subr.bf16.mxu0 0
    %132 = vmatpush1.bf16.msra.mxu0 %v119
    %133 = vmatprep.subr.bf16.mxu0 0
    %134 = vmatpush1.bf16.msra.mxu0 %v109
    %135 = vmatprep.subr.bf16.mxu0 0
    %136 = vmatpush1.bf16.msra.mxu0 %v108
    %137 = vmatprep.subr.bf16.mxu0 0
    %138 = vmatpush2.bf16.msra.mxu0 0
    %139 = vmatprep.subr.bf16.mxu0 0
    %140 = vmatpush2.bf16.msra.mxu0 0
    %141 = vmatprep.subr.bf16.mxu0 0
    %142 = vmatpush2.bf16.msra.mxu0 0
    %143 = vmatprep.subr.bf16.mxu0 0
    %144 = vmatpush2.bf16.msra.mxu0 0
    %145 = vmatprep.subr.bf16.mxu0 0
    %146 = vmatpush2.bf16.msra.mxu0 0
    %147 = vmatprep.subr.bf16.mxu0 0
    %148 = vmatpush2.bf16.msra.mxu0 0
    %149 = vmatprep.subr.bf16.mxu0 0
    %150 = vmatpush2.bf16.msra.mxu0 0
    %151 = vmatprep.subr.bf16.mxu0 0
    %152 = vmatpush2.bf16.msra.mxu0 0
    %153 = vmatprep.mubr.bf16.mxu0 0
    %154 = vmatmul.mubr.bf16.gmra.mxu0 %v115
    %v155 = vpop.f32.mrf.mxu0
    %v156 = vadd.f32 %v78, %v155
    %v157 = vpop.f32.mrf.mxu0
    %v158 = vpop.f32.mrf.mxu0
    %v159 = vpop.f32.mrf.mxu0
    %160 = vdwg.mxu0
    %v161 = vsub.f32 0.0, %v156
    %v162 = vmul.f32 %v161, 1.442695
    %v163 = vpow.pop %v162
    %v164 = vadd.f32 %v163, 1.0
    %v165 = vrcp.pop %v164
    %v166 = vmul.f32 1.0, %v165
    %v167 = vtanh.pop %v156
    %v168 = vmul.f32 %v166, 0.0
    %170 = vrot.lane.b32.xlu0 %v167, 64
    %v171 = vpop.permute.xlu0 %170
    %v173 = vmul.f32 %v166, %v171
    %175 = vrot.lane.b32.xlu0 %v173, 32
    %v176 = vpop.permute.xlu0 %175
    %v178 = vadd.f32 %v168, %v176
    %v179 = vtanh.pop %v178
    %181 = vrot.lane.b32.xlu0 %v179, 64
    %v182 = vpop.permute.xlu0 %181
    %v184 = vmul.f32 %v166, %v182
    %186 = vrot.lane.b32.xlu0 %v184, 32
    %v187 = vpop.permute.xlu0 %186
    %vm189 = vcmask 261120
    %v190 = vsel %vm189, %v187, 0.0
    %v191 = vpack.c.bf16 %v190, %v190
    %v200 = vunpack.c.l.b16 %v61
    %v201 = vunpack.c.l.b16 %v62
    %v202 = vunpack.c.l.b16 %v63
    %v203 = vunpack.c.l.b16 %v64
    %v204 = vunpack.c.l.b16 %v65
    %v205 = vunpack.c.l.b16 %v66
    %v206 = vunpack.c.l.b16 %v67
    %v207 = vunpack.c.l.b16 %v68
    %v208 = vpack.c.b16 %v201, %v200
    %v209 = vpack.c.b16 %v203, %v202
    %v210 = vpack.c.b16 %v205, %v204
    %v211 = vpack.c.b16 %v207, %v206
    %vm216 = vcmask 523264
    %v218 = vsel %vm216, %v191, 0
    %220 = vmatprep.subr.bf16.mxu0 0
    %221 = vmatpush1.bf16.msra.mxu0 0
    %222 = vmatprep.subr.bf16.mxu0 0
    %223 = vmatpush1.bf16.msra.mxu0 0
    %224 = vmatprep.subr.bf16.mxu0 0
    %225 = vmatpush1.bf16.msra.mxu0 0
    %226 = vmatprep.subr.bf16.mxu0 0
    %227 = vmatpush1.bf16.msra.mxu0 0
    %228 = vmatprep.subr.bf16.mxu0 0
    %229 = vmatpush1.bf16.msra.mxu0 %v211
    %230 = vmatprep.subr.bf16.mxu0 0
    %231 = vmatpush1.bf16.msra.mxu0 %v210
    %232 = vmatprep.subr.bf16.mxu0 0
    %233 = vmatpush1.bf16.msra.mxu0 %v209
    %234 = vmatprep.subr.bf16.mxu0 0
    %235 = vmatpush1.bf16.msra.mxu0 %v208
    %236 = vmatprep.subr.bf16.mxu0 0
    %237 = vmatpush2.bf16.msra.mxu0 0
    %238 = vmatprep.subr.bf16.mxu0 0
    %239 = vmatpush2.bf16.msra.mxu0 0
    %240 = vmatprep.subr.bf16.mxu0 0
    %241 = vmatpush2.bf16.msra.mxu0 0
    %242 = vmatprep.subr.bf16.mxu0 0
    %243 = vmatpush2.bf16.msra.mxu0 0
    %244 = vmatprep.subr.bf16.mxu0 0
    %245 = vmatpush2.bf16.msra.mxu0 0
    %246 = vmatprep.subr.bf16.mxu0 0
    %247 = vmatpush2.bf16.msra.mxu0 0
    %248 = vmatprep.subr.bf16.mxu0 0
    %249 = vmatpush2.bf16.msra.mxu0 0
    %250 = vmatprep.subr.bf16.mxu0 0
    %251 = vmatpush2.bf16.msra.mxu0 0
    %252 = vmatprep.mubr.bf16.mxu0 0
    %253 = vmatmul.mubr.bf16.gmra.mxu0 %v218
    %v254 = vpop.f32.mrf.mxu0
    %v255 = vadd.f32 %v85, %v254
    %v256 = vpop.f32.mrf.mxu0
    %v257 = vpop.f32.mrf.mxu0
    %v258 = vpop.f32.mrf.mxu0
    %259 = vdwg.mxu0
    %v260 = vsub.f32 0.0, %v255
    %v261 = vmul.f32 %v260, 1.442695
    %v262 = vpow.pop %v261
    %v263 = vadd.f32 %v262, 1.0
    %v264 = vrcp.pop %v263
    %v265 = vmul.f32 1.0, %v264
    %v266 = vtanh.pop %v255
    %v267 = vmul.f32 %v265, 0.0
    %269 = vrot.lane.b32.xlu0 %v266, 64
    %v270 = vpop.permute.xlu0 %269
    %v272 = vmul.f32 %v265, %v270
    %274 = vrot.lane.b32.xlu0 %v272, 32
    %v275 = vpop.permute.xlu0 %274
    %v277 = vadd.f32 %v267, %v275
    %v278 = vtanh.pop %v277
    %280 = vrot.lane.b32.xlu0 %v278, 64
    %v281 = vpop.permute.xlu0 %280
    %v283 = vmul.f32 %v265, %v281
    %s284 = scalar_lea.vmem [#allocation2], 2
    %v285 = vld [vmem:[%s284] sm:$0x3]
    %286 = vrot.lane.b32.xlu0 %v184, 40
    %v287 = vpop.permute.xlu0 %286
    %v289 = vsel %vm95, %v285, %v287
    %v290 = vpack.c.bf16 %v289, %v289
    %v292 = vsel %vm113, %v290, 0
    %294 = vmatprep.subr.bf16.mxu0 0
    %295 = vmatpush1.bf16.msra.mxu0 0
    %296 = vmatprep.subr.bf16.mxu0 0
    %297 = vmatpush1.bf16.msra.mxu0 0
    %298 = vmatprep.subr.bf16.mxu0 0
    %299 = vmatpush1.bf16.msra.mxu0 0
    %300 = vmatprep.subr.bf16.mxu0 0
    %301 = vmatpush1.bf16.msra.mxu0 0
    %302 = vmatprep.subr.bf16.mxu0 0
    %303 = vmatpush1.bf16.msra.mxu0 0
    %304 = vmatprep.subr.bf16.mxu0 0
    %305 = vmatpush1.bf16.msra.mxu0 %v119
    %306 = vmatprep.subr.bf16.mxu0 0
    %307 = vmatpush1.bf16.msra.mxu0 %v109
    %308 = vmatprep.subr.bf16.mxu0 0
    %309 = vmatpush1.bf16.msra.mxu0 %v108
    %310 = vmatprep.subr.bf16.mxu0 0
    %311 = vmatpush2.bf16.msra.mxu0 0
    %312 = vmatprep.subr.bf16.mxu0 0
    %313 = vmatpush2.bf16.msra.mxu0 0
    %314 = vmatprep.subr.bf16.mxu0 0
    %315 = vmatpush2.bf16.msra.mxu0 0
    %316 = vmatprep.subr.bf16.mxu0 0
    %317 = vmatpush2.bf16.msra.mxu0 0
    %318 = vmatprep.subr.bf16.mxu0 0
    %319 = vmatpush2.bf16.msra.mxu0 0
    %320 = vmatprep.subr.bf16.mxu0 0
    %321 = vmatpush2.bf16.msra.mxu0 0
    %322 = vmatprep.subr.bf16.mxu0 0
    %323 = vmatpush2.bf16.msra.mxu0 0
    %324 = vmatprep.subr.bf16.mxu0 0
    %325 = vmatpush2.bf16.msra.mxu0 0
    %326 = vmatprep.mubr.bf16.mxu0 0
    %327 = vmatmul.mubr.bf16.gmra.mxu0 %v292
    %v328 = vpop.f32.mrf.mxu0
    %v329 = vadd.f32 %v78, %v328
    %v330 = vpop.f32.mrf.mxu0
    %v331 = vpop.f32.mrf.mxu0
    %v332 = vpop.f32.mrf.mxu0
    %333 = vdwg.mxu0
    %v334 = vsub.f32 0.0, %v329
    %v335 = vmul.f32 %v334, 1.442695
    %v336 = vpow.pop %v335
    %v337 = vadd.f32 %v336, 1.0
    %v338 = vrcp.pop %v337
    %v339 = vmul.f32 1.0, %v338
    %v340 = vtanh.pop %v329
    %v341 = vmul.f32 %v339, %v178
    %343 = vrot.lane.b32.xlu0 %v340, 64
    %v344 = vpop.permute.xlu0 %343
    %v346 = vmul.f32 %v339, %v344
    %348 = vrot.lane.b32.xlu0 %v346, 32
    %v349 = vpop.permute.xlu0 %348
    %v351 = vadd.f32 %v341, %v349
    %v352 = vtanh.pop %v351
    %354 = vrot.lane.b32.xlu0 %v352, 64
    %v355 = vpop.permute.xlu0 %354
    %v357 = vmul.f32 %v339, %v355
    %359 = vrot.lane.b32.xlu0 %v357, 32
    %v360 = vpop.permute.xlu0 %359
    %363 = vrot.lane.b32.xlu0 %v283, 64
    %v364 = vpop.permute.xlu0 %363
    %v366 = vsel %vm189, %v360, %v364
    %v367 = vpack.c.bf16 %v366, %v366
    %v369 = vsel %vm216, %v367, 0
    %371 = vmatprep.subr.bf16.mxu0 0
    %372 = vmatpush1.bf16.msra.mxu0 0
    %373 = vmatprep.subr.bf16.mxu0 0
    %374 = vmatpush1.bf16.msra.mxu0 0
    %375 = vmatprep.subr.bf16.mxu0 0
    %376 = vmatpush1.bf16.msra.mxu0 0
    %377 = vmatprep.subr.bf16.mxu0 0
    %378 = vmatpush1.bf16.msra.mxu0 0
    %379 = vmatprep.subr.bf16.mxu0 0
    %380 = vmatpush1.bf16.msra.mxu0 %v211
    %381 = vmatprep.subr.bf16.mxu0 0
    %382 = vmatpush1.bf16.msra.mxu0 %v210
    %383 = vmatprep.subr.bf16.mxu0 0
    %384 = vmatpush1.bf16.msra.mxu0 %v209
    %385 = vmatprep.subr.bf16.mxu0 0
    %386 = vmatpush1.bf16.msra.mxu0 %v208
    %387 = vmatprep.subr.bf16.mxu0 0
    %388 = vmatpush2.bf16.msra.mxu0 0
    %389 = vmatprep.subr.bf16.mxu0 0
    %390 = vmatpush2.bf16.msra.mxu0 0
    %391 = vmatprep.subr.bf16.mxu0 0
    %392 = vmatpush2.bf16.msra.mxu0 0
    %393 = vmatprep.subr.bf16.mxu0 0
    %394 = vmatpush2.bf16.msra.mxu0 0
    %395 = vmatprep.subr.bf16.mxu0 0
    %396 = vmatpush2.bf16.msra.mxu0 0
    %397 = vmatprep.subr.bf16.mxu0 0
    %398 = vmatpush2.bf16.msra.mxu0 0
    %399 = vmatprep.subr.bf16.mxu0 0
    %400 = vmatpush2.bf16.msra.mxu0 0
    %401 = vmatprep.subr.bf16.mxu0 0
    %402 = vmatpush2.bf16.msra.mxu0 0
    %403 = vmatprep.mubr.bf16.mxu0 0
    %404 = vmatmul.mubr.bf16.gmra.mxu0 %v369
    %v405 = vpop.f32.mrf.mxu0
    %v406 = vadd.f32 %v85, %v405
    %v407 = vpop.f32.mrf.mxu0
    %v408 = vpop.f32.mrf.mxu0
    %v409 = vpop.f32.mrf.mxu0
    %410 = vdwg.mxu0
    %v411 = vsub.f32 0.0, %v406
    %v412 = vmul.f32 %v411, 1.442695
    %v413 = vpow.pop %v412
    %v414 = vadd.f32 %v413, 1.0
    %v415 = vrcp.pop %v414
    %v416 = vmul.f32 1.0, %v415
    %v417 = vtanh.pop %v406
    %v418 = vmul.f32 %v416, %v277
    %420 = vrot.lane.b32.xlu0 %v417, 64
    %v421 = vpop.permute.xlu0 %420
    %v423 = vmul.f32 %v416, %v421
    %425 = vrot.lane.b32.xlu0 %v423, 32
    %v426 = vpop.permute.xlu0 %425
    %v428 = vadd.f32 %v418, %v426
    %v429 = vtanh.pop %v428
    %431 = vrot.lane.b32.xlu0 %v429, 64
    %v432 = vpop.permute.xlu0 %431
    %v434 = vmul.f32 %v416, %v432
    %s435 = scalar_lea.vmem [#allocation2], 4
    %v436 = vld [vmem:[%s435] sm:$0x3]
    %437 = vrot.lane.b32.xlu0 %v357, 40
    %v438 = vpop.permute.xlu0 %437
    %v440 = vsel %vm95, %v436, %v438
    %v441 = vpack.c.bf16 %v440, %v440
    %v443 = vsel %vm113, %v441, 0
    %445 = vmatprep.subr.bf16.mxu0 0
    %446 = vmatpush1.bf16.msra.mxu0 0
    %447 = vmatprep.subr.bf16.mxu0 0
    %448 = vmatpush1.bf16.msra.mxu0 0
    %449 = vmatprep.subr.bf16.mxu0 0
    %450 = vmatpush1.bf16.msra.mxu0 0
    %451 = vmatprep.subr.bf16.mxu0 0
    %452 = vmatpush1.bf16.msra.mxu0 0
    %453 = vmatprep.subr.bf16.mxu0 0
    %454 = vmatpush1.bf16.msra.mxu0 0
    %455 = vmatprep.subr.bf16.mxu0 0
    %456 = vmatpush1.bf16.msra.mxu0 %v119
    %457 = vmatprep.subr.bf16.mxu0 0
    %458 = vmatpush1.bf16.msra.mxu0 %v109
    %459 = vmatprep.subr.bf16.mxu0 0
    %460 = vmatpush1.bf16.msra.mxu0 %v108
    %461 = vmatprep.subr.bf16.mxu0 0
    %462 = vmatpush2.bf16.msra.mxu0 0
    %463 = vmatprep.subr.bf16.mxu0 0
    %464 = vmatpush2.bf16.msra.mxu0 0
    %465 = vmatprep.subr.bf16.mxu0 0
    %466 = vmatpush2.bf16.msra.mxu0 0
    %467 = vmatprep.subr.bf16.mxu0 0
    %468 = vmatpush2.bf16.msra.mxu0 0
    %469 = vmatprep.subr.bf16.mxu0 0
    %470 = vmatpush2.bf16.msra.mxu0 0
    %471 = vmatprep.subr.bf16.mxu0 0
    %472 = vmatpush2.bf16.msra.mxu0 0
    %473 = vmatprep.subr.bf16.mxu0 0
    %474 = vmatpush2.bf16.msra.mxu0 0
    %475 = vmatprep.subr.bf16.mxu0 0
    %476 = vmatpush2.bf16.msra.mxu0 0
    %477 = vmatprep.mubr.bf16.mxu0 0
    %478 = vmatmul.mubr.bf16.gmra.mxu0 %v443
    %v479 = vpop.f32.mrf.mxu0
    %v480 = vadd.f32 %v78, %v479
    %v481 = vpop.f32.mrf.mxu0
    %v482 = vpop.f32.mrf.mxu0
    %v483 = vpop.f32.mrf.mxu0
    %484 = vdwg.mxu0
    %v485 = vsub.f32 0.0, %v480
    %v486 = vmul.f32 %v485, 1.442695
    %v487 = vpow.pop %v486
    %v488 = vadd.f32 %v487, 1.0
    %v489 = vrcp.pop %v488
    %v490 = vmul.f32 1.0, %v489
    %v491 = vtanh.pop %v480
    %v492 = vmul.f32 %v490, %v351
    %494 = vrot.lane.b32.xlu0 %v491, 64
    %v495 = vpop.permute.xlu0 %494
    %v497 = vmul.f32 %v490, %v495
    %499 = vrot.lane.b32.xlu0 %v497, 32
    %v500 = vpop.permute.xlu0 %499
    %v502 = vadd.f32 %v492, %v500
    %v503 = vtanh.pop %v502
    %505 = vrot.lane.b32.xlu0 %v503, 64
    %v506 = vpop.permute.xlu0 %505
    %v508 = vmul.f32 %v490, %v506
    %510 = vrot.lane.b32.xlu0 %v508, 32
    %v511 = vpop.permute.xlu0 %510
    %514 = vrot.lane.b32.xlu0 %v434, 64
    %v515 = vpop.permute.xlu0 %514
    %v517 = vsel %vm189, %v511, %v515
    %v518 = vpack.c.bf16 %v517, %v517
    %v520 = vsel %vm216, %v518, 0
    %522 = vmatprep.subr.bf16.mxu0 0
    %523 = vmatpush1.bf16.msra.mxu0 0
    %524 = vmatprep.subr.bf16.mxu0 0
    %525 = vmatpush1.bf16.msra.mxu0 0
    %526 = vmatprep.subr.bf16.mxu0 0
    %527 = vmatpush1.bf16.msra.mxu0 0
    %528 = vmatprep.subr.bf16.mxu0 0
    %529 = vmatpush1.bf16.msra.mxu0 0
    %530 = vmatprep.subr.bf16.mxu0 0
    %531 = vmatpush1.bf16.msra.mxu0 %v211
    %532 = vmatprep.subr.bf16.mxu0 0
    %533 = vmatpush1.bf16.msra.mxu0 %v210
    %534 = vmatprep.subr.bf16.mxu0 0
    %535 = vmatpush1.bf16.msra.mxu0 %v209
    %536 = vmatprep.subr.bf16.mxu0 0
    %537 = vmatpush1.bf16.msra.mxu0 %v208
    %538 = vmatprep.subr.bf16.mxu0 0
    %539 = vmatpush2.bf16.msra.mxu0 0
    %540 = vmatprep.subr.bf16.mxu0 0
    %541 = vmatpush2.bf16.msra.mxu0 0
    %542 = vmatprep.subr.bf16.mxu0 0
    %543 = vmatpush2.bf16.msra.mxu0 0
    %544 = vmatprep.subr.bf16.mxu0 0
    %545 = vmatpush2.bf16.msra.mxu0 0
    %546 = vmatprep.subr.bf16.mxu0 0
    %547 = vmatpush2.bf16.msra.mxu0 0
    %548 = vmatprep.subr.bf16.mxu0 0
    %549 = vmatpush2.bf16.msra.mxu0 0
    %550 = vmatprep.subr.bf16.mxu0 0
    %551 = vmatpush2.bf16.msra.mxu0 0
    %552 = vmatprep.subr.bf16.mxu0 0
    %553 = vmatpush2.bf16.msra.mxu0 0
    %554 = vmatprep.mubr.bf16.mxu0 0
    %555 = vmatmul.mubr.bf16.gmra.mxu0 %v520
    %v556 = vpop.f32.mrf.mxu0
    %v557 = vadd.f32 %v85, %v556
    %v558 = vpop.f32.mrf.mxu0
    %v559 = vpop.f32.mrf.mxu0
    %v560 = vpop.f32.mrf.mxu0
    %561 = vdwg.mxu0
    %v562 = vsub.f32 0.0, %v557
    %v563 = vmul.f32 %v562, 1.442695
    %v564 = vpow.pop %v563
    %v565 = vadd.f32 %v564, 1.0
    %v566 = vrcp.pop %v565
    %v567 = vmul.f32 1.0, %v566
    %v568 = vtanh.pop %v557
    %v569 = vmul.f32 %v567, %v428
    %571 = vrot.lane.b32.xlu0 %v568, 64
    %v572 = vpop.permute.xlu0 %571
    %v574 = vmul.f32 %v567, %v572
    %576 = vrot.lane.b32.xlu0 %v574, 32
    %v577 = vpop.permute.xlu0 %576
    %v579 = vadd.f32 %v569, %v577
    %v580 = vtanh.pop %v579
    %582 = vrot.lane.b32.xlu0 %v580, 64
    %v583 = vpop.permute.xlu0 %582
    %v585 = vmul.f32 %v567, %v583
    %s586 = scalar_lea.vmem [#allocation2], 6
    %v587 = vld [vmem:[%s586] sm:$0x3]
    %588 = vrot.lane.b32.xlu0 %v508, 40
    %v589 = vpop.permute.xlu0 %588
    %v591 = vsel %vm95, %v587, %v589
    %v592 = vpack.c.bf16 %v591, %v591
    %v594 = vsel %vm113, %v592, 0
    %596 = vmatprep.subr.bf16.mxu0 0
    %597 = vmatpush1.bf16.msra.mxu0 0
    %598 = vmatprep.subr.bf16.mxu0 0
    %599 = vmatpush1.bf16.msra.mxu0 0
    %600 = vmatprep.subr.bf16.mxu0 0
    %601 = vmatpush1.bf16.msra.mxu0 0
    %602 = vmatprep.subr.bf16.mxu0 0
    %603 = vmatpush1.bf16.msra.mxu0 0
    %604 = vmatprep.subr.bf16.mxu0 0
    %605 = vmatpush1.bf16.msra.mxu0 0
    %606 = vmatprep.subr.bf16.mxu0 0
    %607 = vmatpush1.bf16.msra.mxu0 %v119
    %608 = vmatprep.subr.bf16.mxu0 0
    %609 = vmatpush1.bf16.msra.mxu0 %v109
    %610 = vmatprep.subr.bf16.mxu0 0
    %611 = vmatpush1.bf16.msra.mxu0 %v108
    %612 = vmatprep.subr.bf16.mxu0 0
    %613 = vmatpush2.bf16.msra.mxu0 0
    %614 = vmatprep.subr.bf16.mxu0 0
    %615 = vmatpush2.bf16.msra.mxu0 0
    %616 = vmatprep.subr.bf16.mxu0 0
    %617 = vmatpush2.bf16.msra.mxu0 0
    %618 = vmatprep.subr.bf16.mxu0 0
    %619 = vmatpush2.bf16.msra.mxu0 0
    %620 = vmatprep.subr.bf16.mxu0 0
    %621 = vmatpush2.bf16.msra.mxu0 0
    %622 = vmatprep.subr.bf16.mxu0 0
    %623 = vmatpush2.bf16.msra.mxu0 0
    %624 = vmatprep.subr.bf16.mxu0 0
    %625 = vmatpush2.bf16.msra.mxu0 0
    %626 = vmatprep.subr.bf16.mxu0 0
    %627 = vmatpush2.bf16.msra.mxu0 0
    %628 = vmatprep.mubr.bf16.mxu0 0
    %629 = vmatmul.mubr.bf16.gmra.mxu0 %v594
    %v630 = vpop.f32.mrf.mxu0
    %v631 = vadd.f32 %v78, %v630
    %v632 = vpop.f32.mrf.mxu0
    %v633 = vpop.f32.mrf.mxu0
    %v634 = vpop.f32.mrf.mxu0
    %635 = vdwg.mxu0
    %v636 = vsub.f32 0.0, %v631
    %v637 = vmul.f32 %v636, 1.442695
    %v638 = vpow.pop %v637
    %v639 = vadd.f32 %v638, 1.0
    %v640 = vrcp.pop %v639
    %v641 = vmul.f32 1.0, %v640
    %v642 = vtanh.pop %v631
    %v643 = vmul.f32 %v641, %v502
    %645 = vrot.lane.b32.xlu0 %v642, 64
    %v646 = vpop.permute.xlu0 %645
    %v648 = vmul.f32 %v641, %v646
    %650 = vrot.lane.b32.xlu0 %v648, 32
    %v651 = vpop.permute.xlu0 %650
    %v653 = vadd.f32 %v643, %v651
    %v654 = vtanh.pop %v653
    %656 = vrot.lane.b32.xlu0 %v654, 64
    %v657 = vpop.permute.xlu0 %656
    %v659 = vmul.f32 %v641, %v657
    %661 = vrot.lane.b32.xlu0 %v659, 32
    %v662 = vpop.permute.xlu0 %661
    %665 = vrot.lane.b32.xlu0 %v585, 64
    %v666 = vpop.permute.xlu0 %665
    %v668 = vsel %vm189, %v662, %v666
    %v669 = vpack.c.bf16 %v668, %v668
    %v671 = vsel %vm216, %v669, 0
    %673 = vmatprep.subr.bf16.mxu0 0
    %674 = vmatpush1.bf16.msra.mxu0 0
    %675 = vmatprep.subr.bf16.mxu0 0
    %676 = vmatpush1.bf16.msra.mxu0 0
    %677 = vmatprep.subr.bf16.mxu0 0
    %678 = vmatpush1.bf16.msra.mxu0 0
    %679 = vmatprep.subr.bf16.mxu0 0
    %680 = vmatpush1.bf16.msra.mxu0 0
    %681 = vmatprep.subr.bf16.mxu0 0
    %682 = vmatpush1.bf16.msra.mxu0 %v211
    %683 = vmatprep.subr.bf16.mxu0 0
    %684 = vmatpush1.bf16.msra.mxu0 %v210
    %685 = vmatprep.subr.bf16.mxu0 0
    %686 = vmatpush1.bf16.msra.mxu0 %v209
    %687 = vmatprep.subr.bf16.mxu0 0
    %688 = vmatpush1.bf16.msra.mxu0 %v208
    %689 = vmatprep.subr.bf16.mxu0 0
    %690 = vmatpush2.bf16.msra.mxu0 0
    %691 = vmatprep.subr.bf16.mxu0 0
    %692 = vmatpush2.bf16.msra.mxu0 0
    %693 = vmatprep.subr.bf16.mxu0 0
    %694 = vmatpush2.bf16.msra.mxu0 0
    %695 = vmatprep.subr.bf16.mxu0 0
    %696 = vmatpush2.bf16.msra.mxu0 0
    %697 = vmatprep.subr.bf16.mxu0 0
    %698 = vmatpush2.bf16.msra.mxu0 0
    %699 = vmatprep.subr.bf16.mxu0 0
    %700 = vmatpush2.bf16.msra.mxu0 0
    %701 = vmatprep.subr.bf16.mxu0 0
    %702 = vmatpush2.bf16.msra.mxu0 0
    %703 = vmatprep.subr.bf16.mxu0 0
    %704 = vmatpush2.bf16.msra.mxu0 0
    %705 = vmatprep.mubr.bf16.mxu0 0
    %706 = vmatmul.mubr.bf16.gmra.mxu0 %v671
    %v707 = vpop.f32.mrf.mxu0
    %v708 = vadd.f32 %v85, %v707
    %v709 = vpop.f32.mrf.mxu0
    %v710 = vpop.f32.mrf.mxu0
    %v711 = vpop.f32.mrf.mxu0
    %712 = vdwg.mxu0
    %v713 = vsub.f32 0.0, %v708
    %v714 = vmul.f32 %v713, 1.442695
    %v715 = vpow.pop %v714
    %v716 = vadd.f32 %v715, 1.0
    %v717 = vrcp.pop %v716
    %v718 = vmul.f32 1.0, %v717
    %v719 = vtanh.pop %v708
    %v720 = vmul.f32 %v718, %v579
    %722 = vrot.lane.b32.xlu0 %v719, 64
    %v723 = vpop.permute.xlu0 %722
    %v725 = vmul.f32 %v718, %v723
    %727 = vrot.lane.b32.xlu0 %v725, 32
    %v728 = vpop.permute.xlu0 %727
    %v730 = vadd.f32 %v720, %v728
    %v731 = vtanh.pop %v730
    %733 = vrot.lane.b32.xlu0 %v731, 64
    %v734 = vpop.permute.xlu0 %733
    %v736 = vmul.f32 %v718, %v734
    %s737 = scalar_lea.vmem [#allocation2], 8
    %v738 = vld [vmem:[%s737] sm:$0x3]
    %739 = vrot.lane.b32.xlu0 %v659, 40
    %v740 = vpop.permute.xlu0 %739
    %v742 = vsel %vm95, %v738, %v740
    %v743 = vpack.c.bf16 %v742, %v742
    %v745 = vsel %vm113, %v743, 0
    %747 = vmatprep.subr.bf16.mxu0 0
    %748 = vmatpush1.bf16.msra.mxu0 0
    %749 = vmatprep.subr.bf16.mxu0 0
    %750 = vmatpush1.bf16.msra.mxu0 0
    %751 = vmatprep.subr.bf16.mxu0 0
    %752 = vmatpush1.bf16.msra.mxu0 0
    %753 = vmatprep.subr.bf16.mxu0 0
    %754 = vmatpush1.bf16.msra.mxu0 0
    %755 = vmatprep.subr.bf16.mxu0 0
    %756 = vmatpush1.bf16.msra.mxu0 0
    %757 = vmatprep.subr.bf16.mxu0 0
    %758 = vmatpush1.bf16.msra.mxu0 %v119
    %759 = vmatprep.subr.bf16.mxu0 0
    %760 = vmatpush1.bf16.msra.mxu0 %v109
    %761 = vmatprep.subr.bf16.mxu0 0
    %762 = vmatpush1.bf16.msra.mxu0 %v108
    %763 = vmatprep.subr.bf16.mxu0 0
    %764 = vmatpush2.bf16.msra.mxu0 0
    %765 = vmatprep.subr.bf16.mxu0 0
    %766 = vmatpush2.bf16.msra.mxu0 0
    %767 = vmatprep.subr.bf16.mxu0 0
    %768 = vmatpush2.bf16.msra.mxu0 0
    %769 = vmatprep.subr.bf16.mxu0 0
    %770 = vmatpush2.bf16.msra.mxu0 0
    %771 = vmatprep.subr.bf16.mxu0 0
    %772 = vmatpush2.bf16.msra.mxu0 0
    %773 = vmatprep.subr.bf16.mxu0 0
    %774 = vmatpush2.bf16.msra.mxu0 0
    %775 = vmatprep.subr.bf16.mxu0 0
    %776 = vmatpush2.bf16.msra.mxu0 0
    %777 = vmatprep.subr.bf16.mxu0 0
    %778 = vmatpush2.bf16.msra.mxu0 0
    %779 = vmatprep.mubr.bf16.mxu0 0
    %780 = vmatmul.mubr.bf16.gmra.mxu0 %v745
    %v781 = vpop.f32.mrf.mxu0
    %v782 = vadd.f32 %v78, %v781
    %v783 = vpop.f32.mrf.mxu0
    %v784 = vpop.f32.mrf.mxu0
    %v785 = vpop.f32.mrf.mxu0
    %786 = vdwg.mxu0
    %v787 = vsub.f32 0.0, %v782
    %v788 = vmul.f32 %v787, 1.442695
    %v789 = vpow.pop %v788
    %v790 = vadd.f32 %v789, 1.0
    %v791 = vrcp.pop %v790
    %v792 = vmul.f32 1.0, %v791
    %v793 = vtanh.pop %v782
    %v794 = vmul.f32 %v792, %v653
    %796 = vrot.lane.b32.xlu0 %v793, 64
    %v797 = vpop.permute.xlu0 %796
    %v799 = vmul.f32 %v792, %v797
    %801 = vrot.lane.b32.xlu0 %v799, 32
    %v802 = vpop.permute.xlu0 %801
    %v804 = vadd.f32 %v794, %v802
    %v805 = vtanh.pop %v804
    %807 = vrot.lane.b32.xlu0 %v805, 64
    %v808 = vpop.permute.xlu0 %807
    %v810 = vmul.f32 %v792, %v808
    %812 = vrot.lane.b32.xlu0 %v810, 32
    %v813 = vpop.permute.xlu0 %812
    %816 = vrot.lane.b32.xlu0 %v736, 64
    %v817 = vpop.permute.xlu0 %816
    %v819 = vsel %vm189, %v813, %v817
    %v820 = vpack.c.bf16 %v819, %v819
    %v822 = vsel %vm216, %v820, 0
    %824 = vmatprep.subr.bf16.mxu0 0
    %825 = vmatpush1.bf16.msra.mxu0 0
    %826 = vmatprep.subr.bf16.mxu0 0
    %827 = vmatpush1.bf16.msra.mxu0 0
    %828 = vmatprep.subr.bf16.mxu0 0
    %829 = vmatpush1.bf16.msra.mxu0 0
    %830 = vmatprep.subr.bf16.mxu0 0
    %831 = vmatpush1.bf16.msra.mxu0 0
    %832 = vmatprep.subr.bf16.mxu0 0
    %833 = vmatpush1.bf16.msra.mxu0 %v211
    %834 = vmatprep.subr.bf16.mxu0 0
    %835 = vmatpush1.bf16.msra.mxu0 %v210
    %836 = vmatprep.subr.bf16.mxu0 0
    %837 = vmatpush1.bf16.msra.mxu0 %v209
    %838 = vmatprep.subr.bf16.mxu0 0
    %839 = vmatpush1.bf16.msra.mxu0 %v208
    %840 = vmatprep.subr.bf16.mxu0 0
    %841 = vmatpush2.bf16.msra.mxu0 0
    %842 = vmatprep.subr.bf16.mxu0 0
    %843 = vmatpush2.bf16.msra.mxu0 0
    %844 = vmatprep.subr.bf16.mxu0 0
    %845 = vmatpush2.bf16.msra.mxu0 0
    %846 = vmatprep.subr.bf16.mxu0 0
    %847 = vmatpush2.bf16.msra.mxu0 0
    %848 = vmatprep.subr.bf16.mxu0 0
    %849 = vmatpush2.bf16.msra.mxu0 0
    %850 = vmatprep.subr.bf16.mxu0 0
    %851 = vmatpush2.bf16.msra.mxu0 0
    %852 = vmatprep.subr.bf16.mxu0 0
    %853 = vmatpush2.bf16.msra.mxu0 0
    %854 = vmatprep.subr.bf16.mxu0 0
    %855 = vmatpush2.bf16.msra.mxu0 0
    %856 = vmatprep.mubr.bf16.mxu0 0
    %857 = vmatmul.mubr.bf16.gmra.mxu0 %v822
    %v858 = vpop.f32.mrf.mxu0
    %v859 = vadd.f32 %v85, %v858
    %v860 = vpop.f32.mrf.mxu0
    %v861 = vpop.f32.mrf.mxu0
    %v862 = vpop.f32.mrf.mxu0
    %863 = vdwg.mxu0
    %v864 = vsub.f32 0.0, %v859
    %v865 = vmul.f32 %v864, 1.442695
    %v866 = vpow.pop %v865
    %v867 = vadd.f32 %v866, 1.0
    %v868 = vrcp.pop %v867
    %v869 = vmul.f32 1.0, %v868
    %v870 = vtanh.pop %v859
    %v871 = vmul.f32 %v869, %v730
    %873 = vrot.lane.b32.xlu0 %v870, 64
    %v874 = vpop.permute.xlu0 %873
    %v876 = vmul.f32 %v869, %v874
    %878 = vrot.lane.b32.xlu0 %v876, 32
    %v879 = vpop.permute.xlu0 %878
    %v881 = vadd.f32 %v871, %v879
    %v882 = vtanh.pop %v881
    %884 = vrot.lane.b32.xlu0 %v882, 64
    %v885 = vpop.permute.xlu0 %884
    %v887 = vmul.f32 %v869, %v885
    %s888 = scalar_lea.vmem [#allocation2], 10
    %v889 = vld [vmem:[%s888] sm:$0x3]
    %890 = vrot.lane.b32.xlu0 %v810, 40
    %v891 = vpop.permute.xlu0 %890
    %v893 = vsel %vm95, %v889, %v891
    %v894 = vpack.c.bf16 %v893, %v893
    %v896 = vsel %vm113, %v894, 0
    %898 = vmatprep.subr.bf16.mxu0 0
    %899 = vmatpush1.bf16.msra.mxu0 0
    %900 = vmatprep.subr.bf16.mxu0 0
    %901 = vmatpush1.bf16.msra.mxu0 0
    %902 = vmatprep.subr.bf16.mxu0 0
    %903 = vmatpush1.bf16.msra.mxu0 0
    %904 = vmatprep.subr.bf16.mxu0 0
    %905 = vmatpush1.bf16.msra.mxu0 0
    %906 = vmatprep.subr.bf16.mxu0 0
    %907 = vmatpush1.bf16.msra.mxu0 0
    %908 = vmatprep.subr.bf16.mxu0 0
    %909 = vmatpush1.bf16.msra.mxu0 %v119
    %910 = vmatprep.subr.bf16.mxu0 0
    %911 = vmatpush1.bf16.msra.mxu0 %v109
    %912 = vmatprep.subr.bf16.mxu0 0
    %913 = vmatpush1.bf16.msra.mxu0 %v108
    %914 = vmatprep.subr.bf16.mxu0 0
    %915 = vmatpush2.bf16.msra.mxu0 0
    %916 = vmatprep.subr.bf16.mxu0 0
    %917 = vmatpush2.bf16.msra.mxu0 0
    %918 = vmatprep.subr.bf16.mxu0 0
    %919 = vmatpush2.bf16.msra.mxu0 0
    %920 = vmatprep.subr.bf16.mxu0 0
    %921 = vmatpush2.bf16.msra.mxu0 0
    %922 = vmatprep.subr.bf16.mxu0 0
    %923 = vmatpush2.bf16.msra.mxu0 0
    %924 = vmatprep.subr.bf16.mxu0 0
    %925 = vmatpush2.bf16.msra.mxu0 0
    %926 = vmatprep.subr.bf16.mxu0 0
    %927 = vmatpush2.bf16.msra.mxu0 0
    %928 = vmatprep.subr.bf16.mxu0 0
    %929 = vmatpush2.bf16.msra.mxu0 0
    %930 = vmatprep.mubr.bf16.mxu0 0
    %931 = vmatmul.mubr.bf16.gmra.mxu0 %v896
    %v932 = vpop.f32.mrf.mxu0
    %v933 = vadd.f32 %v78, %v932
    %v934 = vpop.f32.mrf.mxu0
    %v935 = vpop.f32.mrf.mxu0
    %v936 = vpop.f32.mrf.mxu0
    %937 = vdwg.mxu0
    %v938 = vsub.f32 0.0, %v933
    %v939 = vmul.f32 %v938, 1.442695
    %v940 = vpow.pop %v939
    %v941 = vadd.f32 %v940, 1.0
    %v942 = vrcp.pop %v941
    %v943 = vmul.f32 1.0, %v942
    %v944 = vtanh.pop %v933
    %v945 = vmul.f32 %v943, %v804
    %947 = vrot.lane.b32.xlu0 %v944, 64
    %v948 = vpop.permute.xlu0 %947
    %v950 = vmul.f32 %v943, %v948
    %952 = vrot.lane.b32.xlu0 %v950, 32
    %v953 = vpop.permute.xlu0 %952
    %v955 = vadd.f32 %v945, %v953
    %v956 = vtanh.pop %v955
    %958 = vrot.lane.b32.xlu0 %v956, 64
    %v959 = vpop.permute.xlu0 %958
    %v961 = vmul.f32 %v943, %v959
    %963 = vrot.lane.b32.xlu0 %v961, 32
    %v964 = vpop.permute.xlu0 %963
    %967 = vrot.lane.b32.xlu0 %v887, 64
    %v968 = vpop.permute.xlu0 %967
    %v970 = vsel %vm189, %v964, %v968
    %v971 = vpack.c.bf16 %v970, %v970
    %v973 = vsel %vm216, %v971, 0
    %975 = vmatprep.subr.bf16.mxu0 0
    %976 = vmatpush1.bf16.msra.mxu0 0
    %977 = vmatprep.subr.bf16.mxu0 0
    %978 = vmatpush1.bf16.msra.mxu0 0
    %979 = vmatprep.subr.bf16.mxu0 0
    %980 = vmatpush1.bf16.msra.mxu0 0
    %981 = vmatprep.subr.bf16.mxu0 0
    %982 = vmatpush1.bf16.msra.mxu0 0
    %983 = vmatprep.subr.bf16.mxu0 0
    %984 = vmatpush1.bf16.msra.mxu0 %v211
    %985 = vmatprep.subr.bf16.mxu0 0
    %986 = vmatpush1.bf16.msra.mxu0 %v210
    %987 = vmatprep.subr.bf16.mxu0 0
    %988 = vmatpush1.bf16.msra.mxu0 %v209
    %989 = vmatprep.subr.bf16.mxu0 0
    %990 = vmatpush1.bf16.msra.mxu0 %v208
    %991 = vmatprep.subr.bf16.mxu0 0
    %992 = vmatpush2.bf16.msra.mxu0 0
    %993 = vmatprep.subr.bf16.mxu0 0
    %994 = vmatpush2.bf16.msra.mxu0 0
    %995 = vmatprep.subr.bf16.mxu0 0
    %996 = vmatpush2.bf16.msra.mxu0 0
    %997 = vmatprep.subr.bf16.mxu0 0
    %998 = vmatpush2.bf16.msra.mxu0 0
    %999 = vmatprep.subr.bf16.mxu0 0
    %1000 = vmatpush2.bf16.msra.mxu0 0
    %1001 = vmatprep.subr.bf16.mxu0 0
    %1002 = vmatpush2.bf16.msra.mxu0 0
    %1003 = vmatprep.subr.bf16.mxu0 0
    %1004 = vmatpush2.bf16.msra.mxu0 0
    %1005 = vmatprep.subr.bf16.mxu0 0
    %1006 = vmatpush2.bf16.msra.mxu0 0
    %1007 = vmatprep.mubr.bf16.mxu0 0
    %1008 = vmatmul.mubr.bf16.gmra.mxu0 %v973
    %v1009 = vpop.f32.mrf.mxu0
    %v1010 = vadd.f32 %v85, %v1009
    %v1011 = vpop.f32.mrf.mxu0
    %v1012 = vpop.f32.mrf.mxu0
    %v1013 = vpop.f32.mrf.mxu0
    %1014 = vdwg.mxu0
    %v1015 = vsub.f32 0.0, %v1010
    %v1016 = vmul.f32 %v1015, 1.442695
    %v1017 = vpow.pop %v1016
    %v1018 = vadd.f32 %v1017, 1.0
    %v1019 = vrcp.pop %v1018
    %v1020 = vmul.f32 1.0, %v1019
    %v1021 = vtanh.pop %v1010
    %v1022 = vmul.f32 %v1020, %v881
    %1024 = vrot.lane.b32.xlu0 %v1021, 64
    %v1025 = vpop.permute.xlu0 %1024
    %v1027 = vmul.f32 %v1020, %v1025
    %1029 = vrot.lane.b32.xlu0 %v1027, 32
    %v1030 = vpop.permute.xlu0 %1029
    %v1032 = vadd.f32 %v1022, %v1030
    %v1033 = vtanh.pop %v1032
    %1035 = vrot.lane.b32.xlu0 %v1033, 64
    %v1036 = vpop.permute.xlu0 %1035
    %v1038 = vmul.f32 %v1020, %v1036
    %s1039 = scalar_lea.vmem [#allocation2], 12
    %v1040 = vld [vmem:[%s1039] sm:$0x3]
    %1041 = vrot.lane.b32.xlu0 %v961, 40
    %v1042 = vpop.permute.xlu0 %1041
    %v1044 = vsel %vm95, %v1040, %v1042
    %v1045 = vpack.c.bf16 %v1044, %v1044
    %v1047 = vsel %vm113, %v1045, 0
    %1049 = vmatprep.subr.bf16.mxu0 0
    %1050 = vmatpush1.bf16.msra.mxu0 0
    %1051 = vmatprep.subr.bf16.mxu0 0
    %1052 = vmatpush1.bf16.msra.mxu0 0
    %1053 = vmatprep.subr.bf16.mxu0 0
    %1054 = vmatpush1.bf16.msra.mxu0 0
    %1055 = vmatprep.subr.bf16.mxu0 0
    %1056 = vmatpush1.bf16.msra.mxu0 0
    %1057 = vmatprep.subr.bf16.mxu0 0
    %1058 = vmatpush1.bf16.msra.mxu0 0
    %1059 = vmatprep.subr.bf16.mxu0 0
    %1060 = vmatpush1.bf16.msra.mxu0 %v119
    %1061 = vmatprep.subr.bf16.mxu0 0
    %1062 = vmatpush1.bf16.msra.mxu0 %v109
    %1063 = vmatprep.subr.bf16.mxu0 0
    %1064 = vmatpush1.bf16.msra.mxu0 %v108
    %1065 = vmatprep.subr.bf16.mxu0 0
    %1066 = vmatpush2.bf16.msra.mxu0 0
    %1067 = vmatprep.subr.bf16.mxu0 0
    %1068 = vmatpush2.bf16.msra.mxu0 0
    %1069 = vmatprep.subr.bf16.mxu0 0
    %1070 = vmatpush2.bf16.msra.mxu0 0
    %1071 = vmatprep.subr.bf16.mxu0 0
    %1072 = vmatpush2.bf16.msra.mxu0 0
    %1073 = vmatprep.subr.bf16.mxu0 0
    %1074 = vmatpush2.bf16.msra.mxu0 0
    %1075 = vmatprep.subr.bf16.mxu0 0
    %1076 = vmatpush2.bf16.msra.mxu0 0
    %1077 = vmatprep.subr.bf16.mxu0 0
    %1078 = vmatpush2.bf16.msra.mxu0 0
    %1079 = vmatprep.subr.bf16.mxu0 0
    %1080 = vmatpush2.bf16.msra.mxu0 0
    %1081 = vmatprep.mubr.bf16.mxu0 0
    %1082 = vmatmul.mubr.bf16.gmra.mxu0 %v1047
    %v1083 = vpop.f32.mrf.mxu0
    %v1084 = vadd.f32 %v78, %v1083
    %v1085 = vpop.f32.mrf.mxu0
    %v1086 = vpop.f32.mrf.mxu0
    %v1087 = vpop.f32.mrf.mxu0
    %1088 = vdwg.mxu0
    %v1089 = vsub.f32 0.0, %v1084
    %v1090 = vmul.f32 %v1089, 1.442695
    %v1091 = vpow.pop %v1090
    %v1092 = vadd.f32 %v1091, 1.0
    %v1093 = vrcp.pop %v1092
    %v1094 = vmul.f32 1.0, %v1093
    %v1095 = vtanh.pop %v1084
    %v1096 = vmul.f32 %v1094, %v955
    %1098 = vrot.lane.b32.xlu0 %v1095, 64
    %v1099 = vpop.permute.xlu0 %1098
    %v1101 = vmul.f32 %v1094, %v1099
    %1103 = vrot.lane.b32.xlu0 %v1101, 32
    %v1104 = vpop.permute.xlu0 %1103
    %v1106 = vadd.f32 %v1096, %v1104
    %v1107 = vtanh.pop %v1106
    %1109 = vrot.lane.b32.xlu0 %v1107, 64
    %v1110 = vpop.permute.xlu0 %1109
    %v1112 = vmul.f32 %v1094, %v1110
    %1114 = vrot.lane.b32.xlu0 %v1112, 32
    %v1115 = vpop.permute.xlu0 %1114
    %1118 = vrot.lane.b32.xlu0 %v1038, 64
    %v1119 = vpop.permute.xlu0 %1118
    %v1121 = vsel %vm189, %v1115, %v1119
    %v1122 = vpack.c.bf16 %v1121, %v1121
    %v1124 = vsel %vm216, %v1122, 0
    %1126 = vmatprep.subr.bf16.mxu0 0
    %1127 = vmatpush1.bf16.msra.mxu0 0
    %1128 = vmatprep.subr.bf16.mxu0 0
    %1129 = vmatpush1.bf16.msra.mxu0 0
    %1130 = vmatprep.subr.bf16.mxu0 0
    %1131 = vmatpush1.bf16.msra.mxu0 0
    %1132 = vmatprep.subr.bf16.mxu0 0
    %1133 = vmatpush1.bf16.msra.mxu0 0
    %1134 = vmatprep.subr.bf16.mxu0 0
    %1135 = vmatpush1.bf16.msra.mxu0 %v211
    %1136 = vmatprep.subr.bf16.mxu0 0
    %1137 = vmatpush1.bf16.msra.mxu0 %v210
    %1138 = vmatprep.subr.bf16.mxu0 0
    %1139 = vmatpush1.bf16.msra.mxu0 %v209
    %1140 = vmatprep.subr.bf16.mxu0 0
    %1141 = vmatpush1.bf16.msra.mxu0 %v208
    %1142 = vmatprep.subr.bf16.mxu0 0
    %1143 = vmatpush2.bf16.msra.mxu0 0
    %1144 = vmatprep.subr.bf16.mxu0 0
    %1145 = vmatpush2.bf16.msra.mxu0 0
    %1146 = vmatprep.subr.bf16.mxu0 0
    %1147 = vmatpush2.bf16.msra.mxu0 0
    %1148 = vmatprep.subr.bf16.mxu0 0
    %1149 = vmatpush2.bf16.msra.mxu0 0
    %1150 = vmatprep.subr.bf16.mxu0 0
    %1151 = vmatpush2.bf16.msra.mxu0 0
    %1152 = vmatprep.subr.bf16.mxu0 0
    %1153 = vmatpush2.bf16.msra.mxu0 0
    %1154 = vmatprep.subr.bf16.mxu0 0
    %1155 = vmatpush2.bf16.msra.mxu0 0
    %1156 = vmatprep.subr.bf16.mxu0 0
    %1157 = vmatpush2.bf16.msra.mxu0 0
    %1158 = vmatprep.mubr.bf16.mxu0 0
    %1159 = vmatmul.mubr.bf16.gmra.mxu0 %v1124
    %v1160 = vpop.f32.mrf.mxu0
    %v1161 = vadd.f32 %v85, %v1160
    %v1162 = vpop.f32.mrf.mxu0
    %v1163 = vpop.f32.mrf.mxu0
    %v1164 = vpop.f32.mrf.mxu0
    %1165 = vdwg.mxu0
    %v1166 = vsub.f32 0.0, %v1161
    %v1167 = vmul.f32 %v1166, 1.442695
    %v1168 = vpow.pop %v1167
    %v1169 = vadd.f32 %v1168, 1.0
    %v1170 = vrcp.pop %v1169
    %v1171 = vmul.f32 1.0, %v1170
    %v1172 = vtanh.pop %v1161
    %v1173 = vmul.f32 %v1171, %v1032
    %1175 = vrot.lane.b32.xlu0 %v1172, 64
    %v1176 = vpop.permute.xlu0 %1175
    %v1178 = vmul.f32 %v1171, %v1176
    %1180 = vrot.lane.b32.xlu0 %v1178, 32
    %v1181 = vpop.permute.xlu0 %1180
    %v1183 = vadd.f32 %v1173, %v1181
    %v1184 = vtanh.pop %v1183
    %1186 = vrot.lane.b32.xlu0 %v1184, 64
    %v1187 = vpop.permute.xlu0 %1186
    %v1189 = vmul.f32 %v1171, %v1187
    %s1190 = scalar_lea.vmem [#allocation2], 14
    %v1191 = vld [vmem:[%s1190] sm:$0x3]
    %1192 = vrot.lane.b32.xlu0 %v1112, 40
    %v1193 = vpop.permute.xlu0 %1192
    %v1195 = vsel %vm95, %v1191, %v1193
    %v1196 = vpack.c.bf16 %v1195, %v1195
    %v1198 = vsel %vm113, %v1196, 0
    %1200 = vmatprep.subr.bf16.mxu0 0
    %1201 = vmatpush1.bf16.msra.mxu0 0
    %1202 = vmatprep.subr.bf16.mxu0 0
    %1203 = vmatpush1.bf16.msra.mxu0 0
    %1204 = vmatprep.subr.bf16.mxu0 0
    %1205 = vmatpush1.bf16.msra.mxu0 0
    %1206 = vmatprep.subr.bf16.mxu0 0
    %1207 = vmatpush1.bf16.msra.mxu0 0
    %1208 = vmatprep.subr.bf16.mxu0 0
    %1209 = vmatpush1.bf16.msra.mxu0 0
    %1210 = vmatprep.subr.bf16.mxu0 0
    %1211 = vmatpush1.bf16.msra.mxu0 %v119
    %1212 = vmatprep.subr.bf16.mxu0 0
    %1213 = vmatpush1.bf16.msra.mxu0 %v109
    %1214 = vmatprep.subr.bf16.mxu0 0
    %1215 = vmatpush1.bf16.msra.mxu0 %v108
    %1216 = vmatprep.subr.bf16.mxu0 0
    %1217 = vmatpush2.bf16.msra.mxu0 0
    %1218 = vmatprep.subr.bf16.mxu0 0
    %1219 = vmatpush2.bf16.msra.mxu0 0
    %1220 = vmatprep.subr.bf16.mxu0 0
    %1221 = vmatpush2.bf16.msra.mxu0 0
    %1222 = vmatprep.subr.bf16.mxu0 0
    %1223 = vmatpush2.bf16.msra.mxu0 0
    %1224 = vmatprep.subr.bf16.mxu0 0
    %1225 = vmatpush2.bf16.msra.mxu0 0
    %1226 = vmatprep.subr.bf16.mxu0 0
    %1227 = vmatpush2.bf16.msra.mxu0 0
    %1228 = vmatprep.subr.bf16.mxu0 0
    %1229 = vmatpush2.bf16.msra.mxu0 0
    %1230 = vmatprep.subr.bf16.mxu0 0
    %1231 = vmatpush2.bf16.msra.mxu0 0
    %1232 = vmatprep.mubr.bf16.mxu0 0
    %1233 = vmatmul.mubr.bf16.gmra.mxu0 %v1198
    %v1234 = vpop.f32.mrf.mxu0
    %v1235 = vadd.f32 %v78, %v1234
    %v1236 = vpop.f32.mrf.mxu0
    %v1237 = vpop.f32.mrf.mxu0
    %v1238 = vpop.f32.mrf.mxu0
    %1239 = vdwg.mxu0
    %v1240 = vsub.f32 0.0, %v1235
    %v1241 = vmul.f32 %v1240, 1.442695
    %v1242 = vpow.pop %v1241
    %v1243 = vadd.f32 %v1242, 1.0
    %v1244 = vrcp.pop %v1243
    %v1245 = vmul.f32 1.0, %v1244
    %v1246 = vtanh.pop %v1235
    %v1247 = vmul.f32 %v1245, %v1106
    %1249 = vrot.lane.b32.xlu0 %v1246, 64
    %v1250 = vpop.permute.xlu0 %1249
    %v1252 = vmul.f32 %v1245, %v1250
    %1254 = vrot.lane.b32.xlu0 %v1252, 32
    %v1255 = vpop.permute.xlu0 %1254
    %v1257 = vadd.f32 %v1247, %v1255
    %v1258 = vtanh.pop %v1257
    %1260 = vrot.lane.b32.xlu0 %v1258, 64
    %v1261 = vpop.permute.xlu0 %1260
    %v1263 = vmul.f32 %v1245, %v1261
    %1265 = vrot.lane.b32.xlu0 %v1263, 32
    %v1266 = vpop.permute.xlu0 %1265
    %1269 = vrot.lane.b32.xlu0 %v1189, 64
    %v1270 = vpop.permute.xlu0 %1269
    %v1272 = vsel %vm189, %v1266, %v1270
    %v1273 = vpack.c.bf16 %v1272, %v1272
    %v1275 = vsel %vm216, %v1273, 0
    %1277 = vmatprep.subr.bf16.mxu0 0
    %1278 = vmatpush1.bf16.msra.mxu0 0
    %1279 = vmatprep.subr.bf16.mxu0 0
    %1280 = vmatpush1.bf16.msra.mxu0 0
    %1281 = vmatprep.subr.bf16.mxu0 0
    %1282 = vmatpush1.bf16.msra.mxu0 0
    %1283 = vmatprep.subr.bf16.mxu0 0
    %1284 = vmatpush1.bf16.msra.mxu0 0
    %1285 = vmatprep.subr.bf16.mxu0 0
    %1286 = vmatpush1.bf16.msra.mxu0 %v211
    %1287 = vmatprep.subr.bf16.mxu0 0
    %1288 = vmatpush1.bf16.msra.mxu0 %v210
    %1289 = vmatprep.subr.bf16.mxu0 0
    %1290 = vmatpush1.bf16.msra.mxu0 %v209
    %1291 = vmatprep.subr.bf16.mxu0 0
    %1292 = vmatpush1.bf16.msra.mxu0 %v208
    %1293 = vmatprep.subr.bf16.mxu0 0
    %1294 = vmatpush2.bf16.msra.mxu0 0
    %1295 = vmatprep.subr.bf16.mxu0 0
    %1296 = vmatpush2.bf16.msra.mxu0 0
    %1297 = vmatprep.subr.bf16.mxu0 0
    %1298 = vmatpush2.bf16.msra.mxu0 0
    %1299 = vmatprep.subr.bf16.mxu0 0
    %1300 = vmatpush2.bf16.msra.mxu0 0
    %1301 = vmatprep.subr.bf16.mxu0 0
    %1302 = vmatpush2.bf16.msra.mxu0 0
    %1303 = vmatprep.subr.bf16.mxu0 0
    %1304 = vmatpush2.bf16.msra.mxu0 0
    %1305 = vmatprep.subr.bf16.mxu0 0
    %1306 = vmatpush2.bf16.msra.mxu0 0
    %1307 = vmatprep.subr.bf16.mxu0 0
    %1308 = vmatpush2.bf16.msra.mxu0 0
    %1309 = vmatprep.mubr.bf16.mxu0 0
    %1310 = vmatmul.mubr.bf16.gmra.mxu0 %v1275
    %v1311 = vpop.f32.mrf.mxu0
    %v1312 = vadd.f32 %v85, %v1311
    %v1313 = vpop.f32.mrf.mxu0
    %v1314 = vpop.f32.mrf.mxu0
    %v1315 = vpop.f32.mrf.mxu0
    %1316 = vdwg.mxu0
    %v1317 = vsub.f32 0.0, %v1312
    %v1318 = vmul.f32 %v1317, 1.442695
    %v1319 = vpow.pop %v1318
    %v1320 = vadd.f32 %v1319, 1.0
    %v1321 = vrcp.pop %v1320
    %v1322 = vmul.f32 1.0, %v1321
    %v1323 = vtanh.pop %v1312
    %v1324 = vmul.f32 %v1322, %v1183
    %1326 = vrot.lane.b32.xlu0 %v1323, 64
    %v1327 = vpop.permute.xlu0 %1326
    %v1329 = vmul.f32 %v1322, %v1327
    %1331 = vrot.lane.b32.xlu0 %v1329, 32
    %v1332 = vpop.permute.xlu0 %1331
    %v1334 = vadd.f32 %v1324, %v1332
    %v1335 = vtanh.pop %v1334
    %1337 = vrot.lane.b32.xlu0 %v1335, 64
    %v1338 = vpop.permute.xlu0 %1337
    %v1340 = vmul.f32 %v1322, %v1338
    %v1341 = vpack.c.bf16 %v1340, %v1340
    %1343 = vrot.lane.b32.xlu0 %v1341, 32
    %v1344 = vpop.permute.xlu0 %1343
    %v1349 = vunpack.c.l.b16 %v69
    %v1350 = vunpack.c.l.b16 %v70
    %v1351 = vunpack.c.l.b16 %v71
    %v1352 = vunpack.c.l.b16 %v72
    %v1353 = vpack.c.b16 %v1350, %v1349
    %v1354 = vpack.c.b16 %v1352, %v1351
    %v1358 = vsel %vm189, %v1344, 0
    %1360 = vmatprep.subr.bf16.mxu0 0
    %1361 = vmatpush1.bf16.msra.mxu0 0
    %1362 = vmatprep.subr.bf16.mxu0 0
    %1363 = vmatpush1.bf16.msra.mxu0 0
    %1364 = vmatprep.subr.bf16.mxu0 0
    %1365 = vmatpush1.bf16.msra.mxu0 0
    %1366 = vmatprep.subr.bf16.mxu0 0
    %1367 = vmatpush1.bf16.msra.mxu0 0
    %1368 = vmatprep.subr.bf16.mxu0 0
    %1369 = vmatpush1.bf16.msra.mxu0 0
    %1370 = vmatprep.subr.bf16.mxu0 0
    %1371 = vmatpush1.bf16.msra.mxu0 0
    %1372 = vmatprep.subr.bf16.mxu0 0
    %1373 = vmatpush1.bf16.msra.mxu0 %v1354
    %1374 = vmatprep.subr.bf16.mxu0 0
    %1375 = vmatpush1.bf16.msra.mxu0 %v1353
    %1376 = vmatprep.subr.bf16.mxu0 0
    %1377 = vmatpush2.bf16.msra.mxu0 0
    %1378 = vmatprep.subr.bf16.mxu0 0
    %1379 = vmatpush2.bf16.msra.mxu0 0
    %1380 = vmatprep.subr.bf16.mxu0 0
    %1381 = vmatpush2.bf16.msra.mxu0 0
    %1382 = vmatprep.subr.bf16.mxu0 0
    %1383 = vmatpush2.bf16.msra.mxu0 0
    %1384 = vmatprep.subr.bf16.mxu0 0
    %1385 = vmatpush2.bf16.msra.mxu0 0
    %1386 = vmatprep.subr.bf16.mxu0 0
    %1387 = vmatpush2.bf16.msra.mxu0 0
    %1388 = vmatprep.subr.bf16.mxu0 0
    %1389 = vmatpush2.bf16.msra.mxu0 0
    %1390 = vmatprep.subr.bf16.mxu0 0
    %1391 = vmatpush2.bf16.msra.mxu0 0
    %1392 = vmatprep.mubr.bf16.mxu0 0
    %1393 = vmatmul.mubr.bf16.gmra.mxu0 %v1358
    %v1394 = vpop.f32.mrf.mxu0
    %v1395 = vadd.f32 %v92, %v1394
    %v1396 = vpop.f32.mrf.mxu0
    %v1397 = vpop.f32.mrf.mxu0
    %v1398 = vpop.f32.mrf.mxu0
    %1399 = vdwg.mxu0
    %1400 = vrot.lane.b32.xlu0 %v1263, 40
    %v1401 = vpop.permute.xlu0 %1400
    %v1403 = vsel %vm95, %v1395, %v1401
    %v1404 = vpack.c.bf16 %v1403, %v1403
    %v1406 = vsel %vm113, %v1404, 0
    %1408 = vmatprep.subr.bf16.mxu0 0
    %1409 = vmatpush1.bf16.msra.mxu0 0
    %1410 = vmatprep.subr.bf16.mxu0 0
    %1411 = vmatpush1.bf16.msra.mxu0 0
    %1412 = vmatprep.subr.bf16.mxu0 0
    %1413 = vmatpush1.bf16.msra.mxu0 0
    %1414 = vmatprep.subr.bf16.mxu0 0
    %1415 = vmatpush1.bf16.msra.mxu0 0
    %1416 = vmatprep.subr.bf16.mxu0 0
    %1417 = vmatpush1.bf16.msra.mxu0 0
    %1418 = vmatprep.subr.bf16.mxu0 0
    %1419 = vmatpush1.bf16.msra.mxu0 %v119
    %1420 = vmatprep.subr.bf16.mxu0 0
    %1421 = vmatpush1.bf16.msra.mxu0 %v109
    %1422 = vmatprep.subr.bf16.mxu0 0
    %1423 = vmatpush1.bf16.msra.mxu0 %v108
    %1424 = vmatprep.subr.bf16.mxu0 0
    %1425 = vmatpush2.bf16.msra.mxu0 0
    %1426 = vmatprep.subr.bf16.mxu0 0
    %1427 = vmatpush2.bf16.msra.mxu0 0
    %1428 = vmatprep.subr.bf16.mxu0 0
    %1429 = vmatpush2.bf16.msra.mxu0 0
    %1430 = vmatprep.subr.bf16.mxu0 0
    %1431 = vmatpush2.bf16.msra.mxu0 0
    %1432 = vmatprep.subr.bf16.mxu0 0
    %1433 = vmatpush2.bf16.msra.mxu0 0
    %1434 = vmatprep.subr.bf16.mxu0 0
    %1435 = vmatpush2.bf16.msra.mxu0 0
    %1436 = vmatprep.subr.bf16.mxu0 0
    %1437 = vmatpush2.bf16.msra.mxu0 0
    %1438 = vmatprep.subr.bf16.mxu0 0
    %1439 = vmatpush2.bf16.msra.mxu0 0
    %1440 = vmatprep.mubr.bf16.mxu0 0
    %1441 = vmatmul.mubr.bf16.gmra.mxu0 %v1406
    %v1442 = vpop.f32.mrf.mxu0
    %v1443 = vadd.f32 %v78, %v1442
    %v1444 = vpop.f32.mrf.mxu0
    %v1445 = vpop.f32.mrf.mxu0
    %v1446 = vpop.f32.mrf.mxu0
    %1447 = vdwg.mxu0
    %v1448 = vsub.f32 0.0, %v1443
    %v1449 = vmul.f32 %v1448, 1.442695
    %v1450 = vpow.pop %v1449
    %v1451 = vadd.f32 %v1450, 1.0
    %v1452 = vrcp.pop %v1451
    %v1453 = vmul.f32 1.0, %v1452
    %v1454 = vtanh.pop %v1443
    %v1455 = vmul.f32 %v1453, %v1257
    %1457 = vrot.lane.b32.xlu0 %v1454, 64
    %v1458 = vpop.permute.xlu0 %1457
    %v1460 = vmul.f32 %v1453, %v1458
    %1462 = vrot.lane.b32.xlu0 %v1460, 32
    %v1463 = vpop.permute.xlu0 %1462
    %v1465 = vadd.f32 %v1455, %v1463
    %v1466 = vtanh.pop %v1465
    %1468 = vrot.lane.b32.xlu0 %v1466, 64
    %v1469 = vpop.permute.xlu0 %1468
    %v1471 = vmul.f32 %v1453, %v1469
    %1473 = vrot.lane.b32.xlu0 %v1471, 32
    %v1474 = vpop.permute.xlu0 %1473
    %1477 = vrot.lane.b32.xlu0 %v1340, 64
    %v1478 = vpop.permute.xlu0 %1477
    %v1480 = vsel %vm189, %v1474, %v1478
    %v1481 = vpack.c.bf16 %v1480, %v1480
    %v1483 = vsel %vm216, %v1481, 0
    %1485 = vmatprep.subr.bf16.mxu0 0
    %1486 = vmatpush1.bf16.msra.mxu0 0
    %1487 = vmatprep.subr.bf16.mxu0 0
    %1488 = vmatpush1.bf16.msra.mxu0 0
    %1489 = vmatprep.subr.bf16.mxu0 0
    %1490 = vmatpush1.bf16.msra.mxu0 0
    %1491 = vmatprep.subr.bf16.mxu0 0
    %1492 = vmatpush1.bf16.msra.mxu0 0
    %1493 = vmatprep.subr.bf16.mxu0 0
    %1494 = vmatpush1.bf16.msra.mxu0 %v211
    %1495 = vmatprep.subr.bf16.mxu0 0
    %1496 = vmatpush1.bf16.msra.mxu0 %v210
    %1497 = vmatprep.subr.bf16.mxu0 0
    %1498 = vmatpush1.bf16.msra.mxu0 %v209
    %1499 = vmatprep.subr.bf16.mxu0 0
    %1500 = vmatpush1.bf16.msra.mxu0 %v208
    %1501 = vmatprep.subr.bf16.mxu0 0
    %1502 = vmatpush2.bf16.msra.mxu0 0
    %1503 = vmatprep.subr.bf16.mxu0 0
    %1504 = vmatpush2.bf16.msra.mxu0 0
    %1505 = vmatprep.subr.bf16.mxu0 0
    %1506 = vmatpush2.bf16.msra.mxu0 0
    %1507 = vmatprep.subr.bf16.mxu0 0
    %1508 = vmatpush2.bf16.msra.mxu0 0
    %1509 = vmatprep.subr.bf16.mxu0 0
    %1510 = vmatpush2.bf16.msra.mxu0 0
    %1511 = vmatprep.subr.bf16.mxu0 0
    %1512 = vmatpush2.bf16.msra.mxu0 0
    %1513 = vmatprep.subr.bf16.mxu0 0
    %1514 = vmatpush2.bf16.msra.mxu0 0
    %1515 = vmatprep.subr.bf16.mxu0 0
    %1516 = vmatpush2.bf16.msra.mxu0 0
    %1517 = vmatprep.mubr.bf16.mxu0 0
    %1518 = vmatmul.mubr.bf16.gmra.mxu0 %v1483
    %v1519 = vpop.f32.mrf.mxu0
    %v1520 = vadd.f32 %v85, %v1519
    %v1521 = vpop.f32.mrf.mxu0
    %v1522 = vpop.f32.mrf.mxu0
    %v1523 = vpop.f32.mrf.mxu0
    %1524 = vdwg.mxu0
    %v1525 = vsub.f32 0.0, %v1520
    %v1526 = vmul.f32 %v1525, 1.442695
    %v1527 = vpow.pop %v1526
    %v1528 = vadd.f32 %v1527, 1.0
    %v1529 = vrcp.pop %v1528
    %v1530 = vmul.f32 1.0, %v1529
    %v1531 = vtanh.pop %v1520
    %v1532 = vmul.f32 %v1530, %v1334
    %1534 = vrot.lane.b32.xlu0 %v1531, 64
    %v1535 = vpop.permute.xlu0 %1534
    %v1537 = vmul.f32 %v1530, %v1535
    %1539 = vrot.lane.b32.xlu0 %v1537, 32
    %v1540 = vpop.permute.xlu0 %1539
    %v1542 = vadd.f32 %v1532, %v1540
    %v1543 = vtanh.pop %v1542
    %1545 = vrot.lane.b32.xlu0 %v1543, 64
    %v1546 = vpop.permute.xlu0 %1545
    %v1548 = vmul.f32 %v1530, %v1546
    %v1549 = vpack.c.bf16 %v1548, %v1548
    %1551 = vrot.lane.b32.xlu0 %v1549, 32
    %v1552 = vpop.permute.xlu0 %1551
    %v1554 = vsel %vm189, %v1552, 0
    %1556 = vmatprep.subr.bf16.mxu0 0
    %1557 = vmatpush1.bf16.msra.mxu0 0
    %1558 = vmatprep.subr.bf16.mxu0 0
    %1559 = vmatpush1.bf16.msra.mxu0 0
    %1560 = vmatprep.subr.bf16.mxu0 0
    %1561 = vmatpush1.bf16.msra.mxu0 0
    %1562 = vmatprep.subr.bf16.mxu0 0
    %1563 = vmatpush1.bf16.msra.mxu0 0
    %1564 = vmatprep.subr.bf16.mxu0 0
    %1565 = vmatpush1.bf16.msra.mxu0 0
    %1566 = vmatprep.subr.bf16.mxu0 0
    %1567 = vmatpush1.bf16.msra.mxu0 0
    %1568 = vmatprep.subr.bf16.mxu0 0
    %1569 = vmatpush1.bf16.msra.mxu0 %v1354
    %1570 = vmatprep.subr.bf16.mxu0 0
    %1571 = vmatpush1.bf16.msra.mxu0 %v1353
    %1572 = vmatprep.subr.bf16.mxu0 0
    %1573 = vmatpush2.bf16.msra.mxu0 0
    %1574 = vmatprep.subr.bf16.mxu0 0
    %1575 = vmatpush2.bf16.msra.mxu0 0
    %1576 = vmatprep.subr.bf16.mxu0 0
    %1577 = vmatpush2.bf16.msra.mxu0 0
    %1578 = vmatprep.subr.bf16.mxu0 0
    %1579 = vmatpush2.bf16.msra.mxu0 0
    %1580 = vmatprep.subr.bf16.mxu0 0
    %1581 = vmatpush2.bf16.msra.mxu0 0
    %1582 = vmatprep.subr.bf16.mxu0 0
    %1583 = vmatpush2.bf16.msra.mxu0 0
    %1584 = vmatprep.subr.bf16.mxu0 0
    %1585 = vmatpush2.bf16.msra.mxu0 0
    %1586 = vmatprep.subr.bf16.mxu0 0
    %1587 = vmatpush2.bf16.msra.mxu0 0
    %1588 = vmatprep.mubr.bf16.mxu0 0
    %1589 = vmatmul.mubr.bf16.gmra.mxu0 %v1554
    %v1590 = vpop.f32.mrf.mxu0
    %v1591 = vadd.f32 %v92, %v1590
    %v1592 = vpop.f32.mrf.mxu0
    %v1593 = vpop.f32.mrf.mxu0
    %v1594 = vpop.f32.mrf.mxu0
    %1595 = vdwg.mxu0
    %1596 = vrot.lane.b32.xlu0 %v1471, 40
    %v1597 = vpop.permute.xlu0 %1596
    %v1599 = vsel %vm95, %v1591, %v1597
    %v1600 = vpack.c.bf16 %v1599, %v1599
    %v1602 = vsel %vm113, %v1600, 0
    %1604 = vmatprep.subr.bf16.mxu0 0
    %1605 = vmatpush1.bf16.msra.mxu0 0
    %1606 = vmatprep.subr.bf16.mxu0 0
    %1607 = vmatpush1.bf16.msra.mxu0 0
    %1608 = vmatprep.subr.bf16.mxu0 0
    %1609 = vmatpush1.bf16.msra.mxu0 0
    %1610 = vmatprep.subr.bf16.mxu0 0
    %1611 = vmatpush1.bf16.msra.mxu0 0
    %1612 = vmatprep.subr.bf16.mxu0 0
    %1613 = vmatpush1.bf16.msra.mxu0 0
    %1614 = vmatprep.subr.bf16.mxu0 0
    %1615 = vmatpush1.bf16.msra.mxu0 %v119
    %1616 = vmatprep.subr.bf16.mxu0 0
    %1617 = vmatpush1.bf16.msra.mxu0 %v109
    %1618 = vmatprep.subr.bf16.mxu0 0
    %1619 = vmatpush1.bf16.msra.mxu0 %v108
    %1620 = vmatprep.subr.bf16.mxu0 0
    %1621 = vmatpush2.bf16.msra.mxu0 0
    %1622 = vmatprep.subr.bf16.mxu0 0
    %1623 = vmatpush2.bf16.msra.mxu0 0
    %1624 = vmatprep.subr.bf16.mxu0 0
    %1625 = vmatpush2.bf16.msra.mxu0 0
    %1626 = vmatprep.subr.bf16.mxu0 0
    %1627 = vmatpush2.bf16.msra.mxu0 0
    %1628 = vmatprep.subr.bf16.mxu0 0
    %1629 = vmatpush2.bf16.msra.mxu0 0
    %1630 = vmatprep.subr.bf16.mxu0 0
    %1631 = vmatpush2.bf16.msra.mxu0 0
    %1632 = vmatprep.subr.bf16.mxu0 0
    %1633 = vmatpush2.bf16.msra.mxu0 0
    %1634 = vmatprep.subr.bf16.mxu0 0
    %1635 = vmatpush2.bf16.msra.mxu0 0
    %1636 = vmatprep.mubr.bf16.mxu0 0
    %1637 = vmatmul.mubr.bf16.gmra.mxu0 %v1602
    %v1638 = vpop.f32.mrf.mxu0
    %v1639 = vadd.f32 %v78, %v1638
    %v1640 = vpop.f32.mrf.mxu0
    %v1641 = vpop.f32.mrf.mxu0
    %v1642 = vpop.f32.mrf.mxu0
    %1643 = vdwg.mxu0
    %v1644 = vsub.f32 0.0, %v1639
    %v1645 = vmul.f32 %v1644, 1.442695
    %v1646 = vpow.pop %v1645
    %v1647 = vadd.f32 %v1646, 1.0
    %v1648 = vrcp.pop %v1647
    %v1649 = vmul.f32 1.0, %v1648
    %v1650 = vtanh.pop %v1639
    %v1651 = vmul.f32 %v1649, %v1465
    %1653 = vrot.lane.b32.xlu0 %v1650, 64
    %v1654 = vpop.permute.xlu0 %1653
    %v1656 = vmul.f32 %v1649, %v1654
    %1658 = vrot.lane.b32.xlu0 %v1656, 32
    %v1659 = vpop.permute.xlu0 %1658
    %v1661 = vadd.f32 %v1651, %v1659
    %v1662 = vtanh.pop %v1661
    %1664 = vrot.lane.b32.xlu0 %v1662, 64
    %v1665 = vpop.permute.xlu0 %1664
    %v1667 = vmul.f32 %v1649, %v1665
    %1669 = vrot.lane.b32.xlu0 %v1667, 32
    %v1670 = vpop.permute.xlu0 %1669
    %1673 = vrot.lane.b32.xlu0 %v1548, 64
    %v1674 = vpop.permute.xlu0 %1673
    %v1676 = vsel %vm189, %v1670, %v1674
    %v1677 = vpack.c.bf16 %v1676, %v1676
    %v1679 = vsel %vm216, %v1677, 0
    %1681 = vmatprep.subr.bf16.mxu0 0
    %1682 = vmatpush1.bf16.msra.mxu0 0
    %1683 = vmatprep.subr.bf16.mxu0 0
    %1684 = vmatpush1.bf16.msra.mxu0 0
    %1685 = vmatprep.subr.bf16.mxu0 0
    %1686 = vmatpush1.bf16.msra.mxu0 0
    %1687 = vmatprep.subr.bf16.mxu0 0
    %1688 = vmatpush1.bf16.msra.mxu0 0
    %1689 = vmatprep.subr.bf16.mxu0 0
    %1690 = vmatpush1.bf16.msra.mxu0 %v211
    %1691 = vmatprep.subr.bf16.mxu0 0
    %1692 = vmatpush1.bf16.msra.mxu0 %v210
    %1693 = vmatprep.subr.bf16.mxu0 0
    %1694 = vmatpush1.bf16.msra.mxu0 %v209
    %1695 = vmatprep.subr.bf16.mxu0 0
    %1696 = vmatpush1.bf16.msra.mxu0 %v208
    %1697 = vmatprep.subr.bf16.mxu0 0
    %1698 = vmatpush2.bf16.msra.mxu0 0
    %1699 = vmatprep.subr.bf16.mxu0 0
    %1700 = vmatpush2.bf16.msra.mxu0 0
    %1701 = vmatprep.subr.bf16.mxu0 0
    %1702 = vmatpush2.bf16.msra.mxu0 0
    %1703 = vmatprep.subr.bf16.mxu0 0
    %1704 = vmatpush2.bf16.msra.mxu0 0
    %1705 = vmatprep.subr.bf16.mxu0 0
    %1706 = vmatpush2.bf16.msra.mxu0 0
    %1707 = vmatprep.subr.bf16.mxu0 0
    %1708 = vmatpush2.bf16.msra.mxu0 0
    %1709 = vmatprep.subr.bf16.mxu0 0
    %1710 = vmatpush2.bf16.msra.mxu0 0
    %1711 = vmatprep.subr.bf16.mxu0 0
    %1712 = vmatpush2.bf16.msra.mxu0 0
    %1713 = vmatprep.mubr.bf16.mxu0 0
    %1714 = vmatmul.mubr.bf16.gmra.mxu0 %v1679
    %v1715 = vpop.f32.mrf.mxu0
    %v1716 = vadd.f32 %v85, %v1715
    %v1717 = vpop.f32.mrf.mxu0
    %v1718 = vpop.f32.mrf.mxu0
    %v1719 = vpop.f32.mrf.mxu0
    %1720 = vdwg.mxu0
    %v1721 = vsub.f32 0.0, %v1716
    %v1722 = vmul.f32 %v1721, 1.442695
    %v1723 = vpow.pop %v1722
    %v1724 = vadd.f32 %v1723, 1.0
    %v1725 = vrcp.pop %v1724
    %v1726 = vmul.f32 1.0, %v1725
    %v1727 = vtanh.pop %v1716
    %v1728 = vmul.f32 %v1726, %v1542
    %1730 = vrot.lane.b32.xlu0 %v1727, 64
    %v1731 = vpop.permute.xlu0 %1730
    %v1733 = vmul.f32 %v1726, %v1731
    %1735 = vrot.lane.b32.xlu0 %v1733, 32
    %v1736 = vpop.permute.xlu0 %1735
    %v1738 = vadd.f32 %v1728, %v1736
    %v1739 = vtanh.pop %v1738
    %1741 = vrot.lane.b32.xlu0 %v1739, 64
    %v1742 = vpop.permute.xlu0 %1741
    %v1744 = vmul.f32 %v1726, %v1742
    %v1745 = vpack.c.bf16 %v1744, %v1744
    %1747 = vrot.lane.b32.xlu0 %v1745, 32
    %v1748 = vpop.permute.xlu0 %1747
    %v1750 = vsel %vm189, %v1748, 0
    %1752 = vmatprep.subr.bf16.mxu0 0
    %1753 = vmatpush1.bf16.msra.mxu0 0
    %1754 = vmatprep.subr.bf16.mxu0 0
    %1755 = vmatpush1.bf16.msra.mxu0 0
    %1756 = vmatprep.subr.bf16.mxu0 0
    %1757 = vmatpush1.bf16.msra.mxu0 0
    %1758 = vmatprep.subr.bf16.mxu0 0
    %1759 = vmatpush1.bf16.msra.mxu0 0
    %1760 = vmatprep.subr.bf16.mxu0 0
    %1761 = vmatpush1.bf16.msra.mxu0 0
    %1762 = vmatprep.subr.bf16.mxu0 0
    %1763 = vmatpush1.bf16.msra.mxu0 0
    %1764 = vmatprep.subr.bf16.mxu0 0
    %1765 = vmatpush1.bf16.msra.mxu0 %v1354
    %1766 = vmatprep.subr.bf16.mxu0 0
    %1767 = vmatpush1.bf16.msra.mxu0 %v1353
    %1768 = vmatprep.subr.bf16.mxu0 0
    %1769 = vmatpush2.bf16.msra.mxu0 0
    %1770 = vmatprep.subr.bf16.mxu0 0
    %1771 = vmatpush2.bf16.msra.mxu0 0
    %1772 = vmatprep.subr.bf16.mxu0 0
    %1773 = vmatpush2.bf16.msra.mxu0 0
    %1774 = vmatprep.subr.bf16.mxu0 0
    %1775 = vmatpush2.bf16.msra.mxu0 0
    %1776 = vmatprep.subr.bf16.mxu0 0
    %1777 = vmatpush2.bf16.msra.mxu0 0
    %1778 = vmatprep.subr.bf16.mxu0 0
    %1779 = vmatpush2.bf16.msra.mxu0 0
    %1780 = vmatprep.subr.bf16.mxu0 0
    %1781 = vmatpush2.bf16.msra.mxu0 0
    %1782 = vmatprep.subr.bf16.mxu0 0
    %1783 = vmatpush2.bf16.msra.mxu0 0
    %1784 = vmatprep.mubr.bf16.mxu0 0
    %1785 = vmatmul.mubr.bf16.gmra.mxu0 %v1750
    %v1786 = vpop.f32.mrf.mxu0
    %v1787 = vadd.f32 %v92, %v1786
    %v1788 = vpop.f32.mrf.mxu0
    %v1789 = vpop.f32.mrf.mxu0
    %v1790 = vpop.f32.mrf.mxu0
    %1791 = vdwg.mxu0
    %1792 = vrot.lane.b32.xlu0 %v1667, 40
    %v1793 = vpop.permute.xlu0 %1792
    %v1795 = vsel %vm95, %v1787, %v1793
    %v1796 = vpack.c.bf16 %v1795, %v1795
    %v1798 = vsel %vm113, %v1796, 0
    %1800 = vmatprep.subr.bf16.mxu0 0
    %1801 = vmatpush1.bf16.msra.mxu0 0
    %1802 = vmatprep.subr.bf16.mxu0 0
    %1803 = vmatpush1.bf16.msra.mxu0 0
    %1804 = vmatprep.subr.bf16.mxu0 0
    %1805 = vmatpush1.bf16.msra.mxu0 0
    %1806 = vmatprep.subr.bf16.mxu0 0
    %1807 = vmatpush1.bf16.msra.mxu0 0
    %1808 = vmatprep.subr.bf16.mxu0 0
    %1809 = vmatpush1.bf16.msra.mxu0 0
    %1810 = vmatprep.subr.bf16.mxu0 0
    %1811 = vmatpush1.bf16.msra.mxu0 %v119
    %1812 = vmatprep.subr.bf16.mxu0 0
    %1813 = vmatpush1.bf16.msra.mxu0 %v109
    %1814 = vmatprep.subr.bf16.mxu0 0
    %1815 = vmatpush1.bf16.msra.mxu0 %v108
    %1816 = vmatprep.subr.bf16.mxu0 0
    %1817 = vmatpush2.bf16.msra.mxu0 0
    %1818 = vmatprep.subr.bf16.mxu0 0
    %1819 = vmatpush2.bf16.msra.mxu0 0
    %1820 = vmatprep.subr.bf16.mxu0 0
    %1821 = vmatpush2.bf16.msra.mxu0 0
    %1822 = vmatprep.subr.bf16.mxu0 0
    %1823 = vmatpush2.bf16.msra.mxu0 0
    %1824 = vmatprep.subr.bf16.mxu0 0
    %1825 = vmatpush2.bf16.msra.mxu0 0
    %1826 = vmatprep.subr.bf16.mxu0 0
    %1827 = vmatpush2.bf16.msra.mxu0 0
    %1828 = vmatprep.subr.bf16.mxu0 0
    %1829 = vmatpush2.bf16.msra.mxu0 0
    %1830 = vmatprep.subr.bf16.mxu0 0
    %1831 = vmatpush2.bf16.msra.mxu0 0
    %1832 = vmatprep.mubr.bf16.mxu0 0
    %1833 = vmatmul.mubr.bf16.gmra.mxu0 %v1798
    %v1834 = vpop.f32.mrf.mxu0
    %v1835 = vadd.f32 %v78, %v1834
    %v1836 = vpop.f32.mrf.mxu0
    %v1837 = vpop.f32.mrf.mxu0
    %v1838 = vpop.f32.mrf.mxu0
    %1839 = vdwg.mxu0
    %v1840 = vsub.f32 0.0, %v1835
    %v1841 = vmul.f32 %v1840, 1.442695
    %v1842 = vpow.pop %v1841
    %v1843 = vadd.f32 %v1842, 1.0
    %v1844 = vrcp.pop %v1843
    %v1845 = vmul.f32 1.0, %v1844
    %v1846 = vtanh.pop %v1835
    %v1847 = vmul.f32 %v1845, %v1661
    %1849 = vrot.lane.b32.xlu0 %v1846, 64
    %v1850 = vpop.permute.xlu0 %1849
    %v1852 = vmul.f32 %v1845, %v1850
    %1854 = vrot.lane.b32.xlu0 %v1852, 32
    %v1855 = vpop.permute.xlu0 %1854
    %v1857 = vadd.f32 %v1847, %v1855
    %v1858 = vtanh.pop %v1857
    %1860 = vrot.lane.b32.xlu0 %v1858, 64
    %v1861 = vpop.permute.xlu0 %1860
    %v1863 = vmul.f32 %v1845, %v1861
    %1865 = vrot.lane.b32.xlu0 %v1863, 32
    %v1866 = vpop.permute.xlu0 %1865
    %1869 = vrot.lane.b32.xlu0 %v1744, 64
    %v1870 = vpop.permute.xlu0 %1869
    %v1872 = vsel %vm189, %v1866, %v1870
    %v1873 = vpack.c.bf16 %v1872, %v1872
    %v1875 = vsel %vm216, %v1873, 0
    %1877 = vmatprep.subr.bf16.mxu0 0
    %1878 = vmatpush1.bf16.msra.mxu0 0
    %1879 = vmatprep.subr.bf16.mxu0 0
    %1880 = vmatpush1.bf16.msra.mxu0 0
    %1881 = vmatprep.subr.bf16.mxu0 0
    %1882 = vmatpush1.bf16.msra.mxu0 0
    %1883 = vmatprep.subr.bf16.mxu0 0
    %1884 = vmatpush1.bf16.msra.mxu0 0
    %1885 = vmatprep.subr.bf16.mxu0 0
    %1886 = vmatpush1.bf16.msra.mxu0 %v211
    %1887 = vmatprep.subr.bf16.mxu0 0
    %1888 = vmatpush1.bf16.msra.mxu0 %v210
    %1889 = vmatprep.subr.bf16.mxu0 0
    %1890 = vmatpush1.bf16.msra.mxu0 %v209
    %1891 = vmatprep.subr.bf16.mxu0 0
    %1892 = vmatpush1.bf16.msra.mxu0 %v208
    %1893 = vmatprep.subr.bf16.mxu0 0
    %1894 = vmatpush2.bf16.msra.mxu0 0
    %1895 = vmatprep.subr.bf16.mxu0 0
    %1896 = vmatpush2.bf16.msra.mxu0 0
    %1897 = vmatprep.subr.bf16.mxu0 0
    %1898 = vmatpush2.bf16.msra.mxu0 0
    %1899 = vmatprep.subr.bf16.mxu0 0
    %1900 = vmatpush2.bf16.msra.mxu0 0
    %1901 = vmatprep.subr.bf16.mxu0 0
    %1902 = vmatpush2.bf16.msra.mxu0 0
    %1903 = vmatprep.subr.bf16.mxu0 0
    %1904 = vmatpush2.bf16.msra.mxu0 0
    %1905 = vmatprep.subr.bf16.mxu0 0
    %1906 = vmatpush2.bf16.msra.mxu0 0
    %1907 = vmatprep.subr.bf16.mxu0 0
    %1908 = vmatpush2.bf16.msra.mxu0 0
    %1909 = vmatprep.mubr.bf16.mxu0 0
    %1910 = vmatmul.mubr.bf16.gmra.mxu0 %v1875
    %v1911 = vpop.f32.mrf.mxu0
    %v1912 = vadd.f32 %v85, %v1911
    %v1913 = vpop.f32.mrf.mxu0
    %v1914 = vpop.f32.mrf.mxu0
    %v1915 = vpop.f32.mrf.mxu0
    %1916 = vdwg.mxu0
    %v1917 = vsub.f32 0.0, %v1912
    %v1918 = vmul.f32 %v1917, 1.442695
    %v1919 = vpow.pop %v1918
    %v1920 = vadd.f32 %v1919, 1.0
    %v1921 = vrcp.pop %v1920
    %v1922 = vmul.f32 1.0, %v1921
    %v1923 = vtanh.pop %v1912
    %v1924 = vmul.f32 %v1922, %v1738
    %1926 = vrot.lane.b32.xlu0 %v1923, 64
    %v1927 = vpop.permute.xlu0 %1926
    %v1929 = vmul.f32 %v1922, %v1927
    %1931 = vrot.lane.b32.xlu0 %v1929, 32
    %v1932 = vpop.permute.xlu0 %1931
    %v1934 = vadd.f32 %v1924, %v1932
    %v1935 = vtanh.pop %v1934
    %1937 = vrot.lane.b32.xlu0 %v1935, 64
    %v1938 = vpop.permute.xlu0 %1937
    %v1940 = vmul.f32 %v1922, %v1938
    %v1941 = vpack.c.bf16 %v1940, %v1940
    %1943 = vrot.lane.b32.xlu0 %v1941, 32
    %v1944 = vpop.permute.xlu0 %1943
    %v1946 = vsel %vm189, %v1944, 0
    %1948 = vmatprep.subr.bf16.mxu0 0
    %1949 = vmatpush1.bf16.msra.mxu0 0
    %1950 = vmatprep.subr.bf16.mxu0 0
    %1951 = vmatpush1.bf16.msra.mxu0 0
    %1952 = vmatprep.subr.bf16.mxu0 0
    %1953 = vmatpush1.bf16.msra.mxu0 0
    %1954 = vmatprep.subr.bf16.mxu0 0
    %1955 = vmatpush1.bf16.msra.mxu0 0
    %1956 = vmatprep.subr.bf16.mxu0 0
    %1957 = vmatpush1.bf16.msra.mxu0 0
    %1958 = vmatprep.subr.bf16.mxu0 0
    %1959 = vmatpush1.bf16.msra.mxu0 0
    %1960 = vmatprep.subr.bf16.mxu0 0
    %1961 = vmatpush1.bf16.msra.mxu0 %v1354
    %1962 = vmatprep.subr.bf16.mxu0 0
    %1963 = vmatpush1.bf16.msra.mxu0 %v1353
    %1964 = vmatprep.subr.bf16.mxu0 0
    %1965 = vmatpush2.bf16.msra.mxu0 0
    %1966 = vmatprep.subr.bf16.mxu0 0
    %1967 = vmatpush2.bf16.msra.mxu0 0
    %1968 = vmatprep.subr.bf16.mxu0 0
    %1969 = vmatpush2.bf16.msra.mxu0 0
    %1970 = vmatprep.subr.bf16.mxu0 0
    %1971 = vmatpush2.bf16.msra.mxu0 0
    %1972 = vmatprep.subr.bf16.mxu0 0
    %1973 = vmatpush2.bf16.msra.mxu0 0
    %1974 = vmatprep.subr.bf16.mxu0 0
    %1975 = vmatpush2.bf16.msra.mxu0 0
    %1976 = vmatprep.subr.bf16.mxu0 0
    %1977 = vmatpush2.bf16.msra.mxu0 0
    %1978 = vmatprep.subr.bf16.mxu0 0
    %1979 = vmatpush2.bf16.msra.mxu0 0
    %1980 = vmatprep.mubr.bf16.mxu0 0
    %1981 = vmatmul.mubr.bf16.gmra.mxu0 %v1946
    %v1982 = vpop.f32.mrf.mxu0
    %v1983 = vadd.f32 %v92, %v1982
    %v1984 = vpop.f32.mrf.mxu0
    %v1985 = vpop.f32.mrf.mxu0
    %v1986 = vpop.f32.mrf.mxu0
    %1987 = vdwg.mxu0
    %vm1988 = vcmask 58368
    %1989 = vst.msk [vmem:[#allocation7] sm:$0x3] %vm1988, %v1395
    %1990 = vst.msk [vmem:[#allocation7 + $0x2] sm:$0x3] %vm1988, %v1591
    %1991 = vst.msk [vmem:[#allocation7 + $0x4] sm:$0x3] %vm1988, %v1787
    %1992 = vst.msk [vmem:[#allocation7 + $0x6] sm:$0x3] %vm1988, %v1983
    // Predicated region
    $region38: #{tpu_custom_call.1} parent=1 // pred_check
      _
    $region39: #{tpu_custom_call.1} parent=1 // pred_check_branch
      %1994 = sbr.rel (0) target = $region41
    $region40: #{tpu_custom_call.1} parent=1 // pred_region
      %s1996 = ssub.s32 128, 128
      %1997 = vsyncadd [#allocation4], %s1996
      %s1998 = sshll.u32 [#allocation7], 4
      %s1999 = int_to_ptr.vmem [resolvable:$true] %s1998
      %2004 = dma.vmem_to_hbm [thread:$0]  %s1999, 128, %s7, [#allocation4], 32, 32, 2
    $region41: #{tpu_custom_call.1} parent=1 // pred_fallthru
      _
    // Predicated region
    $region42: #{tpu_custom_call.1} parent=1 // pred_check
      _
    $region43: #{tpu_custom_call.1} parent=1 // pred_check_branch
      %2006 = sbr.rel (0) target = $region45
    $region44: #{tpu_custom_call.1} parent=1 // pred_region
      %2007 = dma.done [#allocation4], 128
    $region45: #{tpu_custom_call.1} parent=1 // pred_fallthru
      _
    %2008 = vsyncpa [#allocation3], 1
    %2009 = vsyncpa [#allocation6], 1
    %2010 = vsyncpa [#allocation4], 1

</llo_original>
